<compile_context>
chip_gen: v7x
topology: tpu7x:2x2x1
jax: 0.10.0
libtpu: 0.0.40
codegen_flags: <defaults>
</compile_context>

<pallas_src>
import numpy as np
import jax
import jax.numpy as jnp
from jax import lax
from jax.experimental import pallas as pl
from jax.experimental.pallas import tpu as pltpu

NEG_SLOPE = 0.01     # F.leaky_relu default negative slope
NORM_EPS = 1e-12     # F.normalize default eps
LANE = 128


def _leaky_relu(v):
    return jnp.where(v > 0, v, NEG_SLOPE * v)


def _round_up(n, m):
    return ((n + m - 1) // m) * m


def mygnn_kernel(
    # scalar-prefetch (SMEM): flat per-core schedule
    owner_ref, etile_ref, first_ref, last_ref, valid_ref,
    # inputs
    x_ref, dinv_ref, xs_ref, idsr_ref, idsc_ref,
    w1_ref, b1_ref, w2_ref, b2_ref, w3_ref, b3_ref, w4_ref, b4_ref,
    wself_ref, wneigh_ref, bsage_ref,
    # outputs
    a_ref, e_ref,
    # scratch
    acc_ref,
):
    c = pl.program_id(0)                      # core slice ("parallel")
    j = pl.program_id(1)                      # flat edge-tile step ("arbitrary")
    t = c * pl.num_programs(1) + j            # flat schedule index
    tN = acc_ref.shape[0]
    tE = xs_ref.shape[0]

    @pl.when(first_ref[t] == 1)
    def _init():
        acc_ref[...] = jnp.zeros_like(acc_ref)

    @pl.when(valid_ref[t] == 1)
    def _edges():
        xs = xs_ref[...]                                      # [tE, F] f32 (x[src])
        x_blk = x_ref[...]                                    # [tN, F] f32 (dst node tile)
        ids_r = idsr_ref[...]                                 # [1, tE] int32 (pad slots = tN)
        ids_c = idsc_ref[...]                                 # [tE, 1] int32

        row_iota = lax.broadcasted_iota(jnp.int32, (tN, tE), 0)
        col_iota = lax.broadcasted_iota(jnp.int32, (tE, tN), 1)
        oh_scatter = (ids_r == row_iota).astype(jnp.float32)  # [tN, tE]
        oh_gather = (ids_c == col_iota).astype(jnp.float32)   # [tE, tN]

        # x[dst] reconstructed from the resident node tile (f32 gather matmul;
        # padded slots hit an all-zero one-hot row -> xd = 0).
        xd = jnp.dot(oh_gather, x_blk, preferred_element_type=jnp.float32)
        diff = (xs - xd).astype(jnp.bfloat16)                 # f32 subtraction, one bf16 cast

        # ---- edge scorer MLP: bf16 MXU matmuls, f32 accumulation ----
        h = _leaky_relu(jnp.dot(diff, w1_ref[...],
                                preferred_element_type=jnp.float32) + b1_ref[...])
        h = _leaky_relu(jnp.dot(h.astype(jnp.bfloat16), w2_ref[...],
                                preferred_element_type=jnp.float32) + b2_ref[...])
        h = _leaky_relu(jnp.dot(h.astype(jnp.bfloat16), w3_ref[...],
                                preferred_element_type=jnp.float32) + b3_ref[...])
        # 64(->128 padded) -> 1 head, produced directly in lane-dense [1, tE] row
        # form via an A @ B^T matmul (real head weights live in row 0 of w4).
        logits8 = lax.dot_general(w4_ref[...], h.astype(jnp.bfloat16),
                                  dimension_numbers=(((1,), (1,)), ((), ())),
                                  preferred_element_type=jnp.float32)   # [8, tE]
        score = jax.nn.sigmoid(logits8[0:1, :] + b4_ref[...])           # [1, tE] f32
        e_ref[0] = score                                                # lane-dense store

        # ---- segment-sum of messages: fold the edge score into the one-hot
        # scatter matrix, then a single [tN,tE] x [tE,F] MXU matmul ----
        wmat = (oh_scatter * score).astype(jnp.bfloat16)
        acc_ref[...] += jnp.dot(wmat, xs.astype(jnp.bfloat16),
                                preferred_element_type=jnp.float32)

    # ---- SAGE epilogue: once per node tile, on its last edge tile ----
    @pl.when(last_ref[t] == 1)
    def _finalize():
        agg = acc_ref[...] * dinv_ref[...]                    # mean over in-edges
        rst = (jnp.dot(x_ref[...].astype(jnp.bfloat16), wself_ref[...],
                       preferred_element_type=jnp.float32)
               + jnp.dot(agg.astype(jnp.bfloat16), wneigh_ref[...],
                         preferred_element_type=jnp.float32)
               + bsage_ref[...])
        rst = _leaky_relu(rst)
        ssq = jnp.sum(rst * rst, axis=-1, keepdims=True)
        # F.normalize: x / max(||x||, eps)  ==  x * rsqrt(max(||x||^2, eps^2))
        a_ref[...] = rst * lax.rsqrt(jnp.maximum(ssq, NORM_EPS * NORM_EPS))


def mygnn_forward(x, src, dst, params, *, tile_n=128, tile_e=512):
    assert tile_e % LANE == 0 and tile_n % 8 == 0
    N, F = x.shape
    E = int(src.shape[0])
    F_pad = _round_up(F, LANE)
    N_pad = _round_up(N, tile_n)
    n_node_tiles = N_pad // tile_n

    # ---- host-side grouping: sort edges by dst, pack per-node-tile edge slots ----
    src_np = np.asarray(src).astype(np.int64)
    dst_np = np.asarray(dst).astype(np.int64)
    order = np.argsort(dst_np, kind="stable")
    src_s = src_np[order]
    dst_s = dst_np[order]
    tile_of = dst_s // tile_n                                           # owning node tile
    counts = np.bincount(tile_of, minlength=n_node_tiles)
    ntiles = np.maximum(1, -(-counts // tile_e)).astype(np.int64)       # >=1 edge tile / node tile
    tstart = np.zeros(n_node_tiles, np.int64)
    tstart[1:] = np.cumsum(ntiles)[:-1]
    total_tiles = int(ntiles.sum())
    S = total_tiles * tile_e                                            # padded edge slots
    edge_base = np.zeros(n_node_tiles, np.int64)
    edge_base[1:] = np.cumsum(counts)[:-1]
    slot = (tstart[tile_of] * tile_e
            + (np.arange(E) - edge_base[tile_of])).astype(np.int64)     # slot per sorted edge

    # ---- flat schedule, split into 2 edge-tile-balanced contiguous halves ----
    if n_node_tiles >= 2:
        n_cores = 2
        csum = np.cumsum(ntiles)
        split = int(np.searchsorted(csum, total_tiles / 2.0)) + 1
        split = int(np.clip(split, 1, n_node_tiles - 1))
        core_ranges = [(0, split), (split, n_node_tiles)]
    else:
        n_cores = 1
        core_ranges = [(0, n_node_tiles)]
    per_core = [int(ntiles[lo:hi].sum()) for lo, hi in core_ranges]
    T_core = max(max(per_core), 1)

    owners = np.zeros((n_cores, T_core), np.int32)
    etiles = np.zeros((n_cores, T_core), np.int32)
    firsts = np.zeros((n_cores, T_core), np.int32)
    lasts = np.zeros((n_cores, T_core), np.int32)
    valids = np.zeros((n_cores, T_core), np.int32)
    for c, (lo, hi) in enumerate(core_ranges):
        pos = 0
        for nt in range(lo, hi):
            k = int(ntiles[nt])
            for jj in range(k):
                owners[c, pos] = nt
                etiles[c, pos] = int(tstart[nt]) + jj
                firsts[c, pos] = int(jj == 0)
                lasts[c, pos] = int(jj == k - 1)
                valids[c, pos] = 1
                pos += 1
        if pos < T_core:                          # padded steps: revisit last blocks, do nothing
            owners[c, pos:] = owners[c, pos - 1]
            etiles[c, pos:] = etiles[c, pos - 1]

    order_j = jnp.asarray(order.astype(np.int32))
    slot_j = jnp.asarray(slot.astype(np.int32))
    src_s_j = jnp.asarray(src_s.astype(np.int32))
    dst_local = jnp.asarray((dst_s % tile_n).astype(np.int32))

    # ---- padded device-side operands ----
    xp = jnp.zeros((N_pad, F_pad), jnp.float32).at[:N, :F].set(x)
    # TODO(synk): the x[src] gather still runs in XLA; an in-kernel DMA gather of x
    #             rows would avoid materializing xs in HBM.
    xs_pad = jnp.zeros((S, F_pad), jnp.float32).at[slot_j].set(xp[src_s_j])
    ids_row = jnp.full((1, S), tile_n, jnp.int32).at[0, slot_j].set(dst_local)
    ids_col = jnp.full((S, 1), tile_n, jnp.int32).at[slot_j, 0].set(dst_local)

    deg = np.bincount(dst_np, minlength=N).astype(np.float32)
    dinv_np = np.zeros((N_pad, 1), np.float32)
    dinv_np[:N, 0] = np.where(deg > 0, 1.0 / np.maximum(deg, 1.0), 0.0)
    dinv = jnp.asarray(dinv_np)

    # ---- padded / bf16 weights (zero padding is numerically exact) ----
    def pad2(a, r, c, dt):
        return jnp.zeros((r, c), dt).at[:a.shape[0], :a.shape[1]].set(a.astype(dt))

    H1, H2, H3P = 256, 128, 128
    w1 = pad2(params["w1"], F_pad, H1, jnp.bfloat16)
    b1 = params["b1"].astype(jnp.float32)
    w2 = params["w2"].astype(jnp.bfloat16)
    b2 = params["b2"].astype(jnp.float32)
    w3 = pad2(params["w3"], H2, H3P, jnp.bfloat16)
    b3 = pad2(params["b3"], 1, H3P, jnp.float32)
    w4rows = pad2(params["w4"].T, 8, H3P, jnp.bfloat16)                 # head in row 0
    b4 = params["b4"].astype(jnp.float32)                               # [1, 1]
    w_self = pad2(params["w_self"], F_pad, F_pad, jnp.bfloat16)
    w_neigh = pad2(params["w_neigh"], F_pad, F_pad, jnp.bfloat16)
    b_sage = pad2(params["b_sage"], 1, F_pad, jnp.float32)

    # ---- BlockSpecs (index maps see grid idx + the 5 scalar-prefetch refs) ----
    def node_map(c, j, owner, etile, first, last, valid):
        return (owner[c * T_core + j], 0)

    def edge_map(c, j, owner, etile, first, last, valid):
        return (etile[c * T_core + j], 0)

    def ids_row_map(c, j, owner, etile, first, last, valid):
        return (0, etile[c * T_core + j])

    def escore_map(c, j, owner, etile, first, last, valid):
        return (etile[c * T_core + j], 0, 0)

    def const_map(c, j, *_):
        return (0, 0)

    def full_spec(a):
        return pl.BlockSpec(a.shape, const_map)

    in_specs = [
        pl.BlockSpec((tile_n, F_pad), node_map),      # x (owner node tile, f32)
        pl.BlockSpec((tile_n, 1), node_map),          # 1/deg
        pl.BlockSpec((tile_e, F_pad), edge_map),      # x[src] (grouped / padded, f32)
        pl.BlockSpec((1, tile_e), ids_row_map),       # local dst ids (lane layout)
        pl.BlockSpec((tile_e, 1), edge_map),          # local dst ids (sublane layout)
        full_spec(w1), full_spec(b1), full_spec(w2), full_spec(b2),
        full_spec(w3), full_spec(b3), full_spec(w4rows), full_spec(b4),
        full_spec(w_self), full_spec(w_neigh), full_spec(b_sage),
    ]
    out_specs = (
        pl.BlockSpec((tile_n, F_pad), node_map),      # A (node embeddings)
        pl.BlockSpec((1, 1, tile_e), escore_map),     # per-tile edge scores (lane-dense)
    )

    grid_spec = pltpu.PrefetchScalarGridSpec(
        num_scalar_prefetch=5,
        grid=(n_cores, T_core),
        in_specs=in_specs,
        out_specs=out_specs,
        scratch_shapes=[pltpu.VMEM((tile_n, F_pad), jnp.float32)],
    )

    A_pad, e_tiles = pl.pallas_call(
        mygnn_kernel,
        out_shape=(jax.ShapeDtypeStruct((N_pad, F_pad), jnp.float32),
                   jax.ShapeDtypeStruct((total_tiles, 1, tile_e), jnp.float32)),
        grid_spec=grid_spec,
        compiler_params=pltpu.CompilerParams(
            dimension_semantics=("parallel", "arbitrary"),
            vmem_limit_bytes=32 * 1024 * 1024),
    )(jnp.asarray(owners.reshape(-1)), jnp.asarray(etiles.reshape(-1)),
      jnp.asarray(firsts.reshape(-1)), jnp.asarray(lasts.reshape(-1)),
      jnp.asarray(valids.reshape(-1)),
      xp, dinv, xs_pad, ids_row, ids_col,
      w1, b1, w2, b2, w3, b3, w4rows, b4, w_self, w_neigh, b_sage)

    A = A_pad[:N, :F]
    # un-pad / un-sort the edge scores back to the original edge order
    e_flat = e_tiles.reshape(S)
    e = jnp.zeros((E, 1), jnp.float32).at[order_j, 0].set(e_flat[slot_j])
    return A, e


def init_params(key, in_feats):
    # Deterministic synthetic init (PyTorch-Linear-style uniform / xavier for SAGE).
    def linear(k, fin, fout):
        kw, kb = jax.random.split(k)
        bound = 1.0 / (fin ** 0.5)
        w = jax.random.uniform(kw, (fin, fout), jnp.float32, -bound, bound)
        b = jax.random.uniform(kb, (1, fout), jnp.float32, -bound, bound)
        return w, b

    def xavier(k, fin, fout):
        bound = (6.0 / (fin + fout)) ** 0.5
        return jax.random.uniform(k, (fin, fout), jnp.float32, -bound, bound)

    ks = jax.random.split(key, 6)
    w1, b1 = linear(ks[0], in_feats, 256)
    w2, b2 = linear(ks[1], 256, 128)
    w3, b3 = linear(ks[2], 128, 64)
    w4, b4 = linear(ks[3], 64, 1)
    w_self = xavier(ks[4], in_feats, in_feats)      # fc_self (bias=False)
    w_neigh = xavier(ks[5], in_feats, in_feats)     # fc_neigh (bias=False)
    b_sage = jnp.zeros((1, in_feats), jnp.float32)  # DGL SAGEConv bias inits to zero
    # TODO(synk): nn.BatchNorm1d(self.BN) is defined in __init__ but never used in forward;
    #             MLP's out_feats ctor arg is also unused — both intentionally omitted.
    return dict(w1=w1, b1=b1, w2=w2, b2=b2, w3=w3, b3=b3, w4=w4, b4=b4,
                w_self=w_self, w_neigh=w_neigh, b_sage=b_sage)


def reference(x, src, dst, params):
    # Pure-JAX f32 reference of the PyTorch/DGL forward for a sanity check.
    hp = jax.lax.Precision.HIGHEST
    d = x[src] - x[dst]
    h = _leaky_relu(jnp.dot(d, params["w1"], precision=hp) + params["b1"])
    h = _leaky_relu(jnp.dot(h, params["w2"], precision=hp) + params["b2"])
    h = _leaky_relu(jnp.dot(h, params["w3"], precision=hp) + params["b3"])
    e = jax.nn.sigmoid(jnp.dot(h, params["w4"], precision=hp) + params["b4"])
    msg = x[src] * e
    N = x.shape[0]
    agg_sum = jax.ops.segment_sum(msg, dst, num_segments=N)
    deg = jax.ops.segment_sum(jnp.ones((src.shape[0],), x.dtype), dst, num_segments=N)
    agg = jnp.where(deg[:, None] > 0, agg_sum / jnp.maximum(deg[:, None], 1.0), 0.0)
    rst = (jnp.dot(x, params["w_self"], precision=hp)
           + jnp.dot(agg, params["w_neigh"], precision=hp) + params["b_sage"])
    rst = _leaky_relu(rst)
    norm = jnp.sqrt(jnp.sum(rst * rst, axis=1, keepdims=True))
    return rst / jnp.maximum(norm, NORM_EPS), e


if __name__ == "__main__":
    key = jax.random.PRNGKey(0)
    k_x, k_e, k_p = jax.random.split(key, 3)

    # small demo: 300 nodes, 16 features, 3072 edges -> 3 node tiles / 7 edge tiles,
    # exercising the 2-core split, multi-tile reductions and padded schedule steps.
    N, F, E = 300, 16, 3072
    x = jax.random.normal(k_x, (N, F), jnp.float32)
    k_s, k_d = jax.random.split(k_e)
    src = jax.random.randint(k_s, (E,), 0, N, jnp.int32)
    dst = jax.random.randint(k_d, (E,), 0, N, jnp.int32)
    params = init_params(k_p, F)

    A, e = jax.block_until_ready(mygnn_forward(x, src, dst, params,
                                               tile_n=128, tile_e=512))

    A_ref, e_ref = reference(x, src, dst, params)
    assert A.shape == (N, F) and e.shape == (E, 1)
    assert bool(jnp.all(jnp.isfinite(A))) and bool(jnp.all(jnp.isfinite(e)))
    assert jnp.allclose(A, A_ref, atol=3e-2, rtol=3e-2), float(jnp.max(jnp.abs(A - A_ref)))
    assert jnp.allclose(e, e_ref, atol=3e-2, rtol=3e-2), float(jnp.max(jnp.abs(e - e_ref)))
    print("KERNEL_OK")
</pallas_src>

<mosaic_0001>
module attributes {stable_mosaic.version = 11 : i64} {
  func.func @mygnn_kernel(%arg0: i32, %arg1: i32, %arg2: memref<12xi32, #tpu.memory_space<smem>>, %arg3: memref<12xi32, #tpu.memory_space<smem>>, %arg4: memref<12xi32, #tpu.memory_space<smem>>, %arg5: memref<12xi32, #tpu.memory_space<smem>>, %arg6: memref<12xi32, #tpu.memory_space<smem>>, %arg7: memref<128x128xf32, #tpu.memory_space<vmem>>, %arg8: memref<128x1xf32, #tpu.memory_space<vmem>>, %arg9: memref<512x128xf32, #tpu.memory_space<vmem>>, %arg10: memref<1x512xi32, #tpu.memory_space<vmem>>, %arg11: memref<512x1xi32, #tpu.memory_space<vmem>>, %arg12: memref<128x256xbf16, #tpu.memory_space<vmem>>, %arg13: memref<1x256xf32, #tpu.memory_space<vmem>>, %arg14: memref<256x128xbf16, #tpu.memory_space<vmem>>, %arg15: memref<1x128xf32, #tpu.memory_space<vmem>>, %arg16: memref<128x128xbf16, #tpu.memory_space<vmem>>, %arg17: memref<1x128xf32, #tpu.memory_space<vmem>>, %arg18: memref<8x128xbf16, #tpu.memory_space<vmem>>, %arg19: memref<1x1xf32, #tpu.memory_space<vmem>>, %arg20: memref<128x128xbf16, #tpu.memory_space<vmem>>, %arg21: memref<128x128xbf16, #tpu.memory_space<vmem>>, %arg22: memref<1x128xf32, #tpu.memory_space<vmem>>, %arg23: memref<128x128xf32, #tpu.memory_space<vmem>>, %arg24: memref<1x1x512xf32, #tpu.memory_space<vmem>>, %arg25: memref<128x128xf32, #tpu.memory_space<vmem>>) attributes {dimension_semantics = [#tpu.dimension_semantics<parallel>, #tpu.dimension_semantics<arbitrary>], iteration_bounds = array<i64: 2, 6>, scalar_prefetch = 5 : i64, scratch_operands = 1 : i64, tpu.core_type = #tpu.core_type<tc>, window_params = [{transform_indices = @transform_0, window_bounds = array<i64: 128, 128>}, {transform_indices = @transform_1, window_bounds = array<i64: 128, 1>}, {transform_indices = @transform_2, window_bounds = array<i64: 512, 128>}, {transform_indices = @transform_3, window_bounds = array<i64: 1, 512>}, {transform_indices = @transform_4, window_bounds = array<i64: 512, 1>}, {pipeline_mode = #tpu.pipeline_mode<synchronous>, transform_indices = @transform_5, window_bounds = array<i64: 128, 256>}, {pipeline_mode = #tpu.pipeline_mode<synchronous>, transform_indices = @transform_6, window_bounds = array<i64: 1, 256>}, {pipeline_mode = #tpu.pipeline_mode<synchronous>, transform_indices = @transform_7, window_bounds = array<i64: 256, 128>}, {pipeline_mode = #tpu.pipeline_mode<synchronous>, transform_indices = @transform_8, window_bounds = array<i64: 1, 128>}, {pipeline_mode = #tpu.pipeline_mode<synchronous>, transform_indices = @transform_9, window_bounds = array<i64: 128, 128>}, {pipeline_mode = #tpu.pipeline_mode<synchronous>, transform_indices = @transform_10, window_bounds = array<i64: 1, 128>}, {pipeline_mode = #tpu.pipeline_mode<synchronous>, transform_indices = @transform_11, window_bounds = array<i64: 8, 128>}, {pipeline_mode = #tpu.pipeline_mode<synchronous>, transform_indices = @transform_12, window_bounds = array<i64: 1, 1>}, {pipeline_mode = #tpu.pipeline_mode<synchronous>, transform_indices = @transform_13, window_bounds = array<i64: 128, 128>}, {pipeline_mode = #tpu.pipeline_mode<synchronous>, transform_indices = @transform_14, window_bounds = array<i64: 128, 128>}, {pipeline_mode = #tpu.pipeline_mode<synchronous>, transform_indices = @transform_15, window_bounds = array<i64: 1, 128>}, {transform_indices = @transform_16, window_bounds = array<i64: 128, 128>}, {transform_indices = @transform_17, window_bounds = array<i64: 1, 1, 512>}]} {
    %c6_i32 = arith.constant 6 : i32
    %0 = arith.muli %arg0, %c6_i32 : i32
    %1 = arith.addi %0, %arg1 : i32
    %2 = arith.index_cast %1 : i32 to index
    %3 = memref.load %arg4[%2] : memref<12xi32, #tpu.memory_space<smem>>
    %c1_i32 = arith.constant 1 : i32
    %4 = arith.cmpi eq, %3, %c1_i32 : i32
    %5 = arith.extui %4 : i1 to i32
    %c0_i32 = arith.constant 0 : i32
    %6 = arith.cmpi ne, %5, %c0_i32 : i32
    scf.if %6 {
      %cst = arith.constant 0.000000e+00 : f32
      %17 = vector.broadcast %cst : f32 to vector<128x128xf32>
      %c0 = arith.constant 0 : index
      %c0_4 = arith.constant 0 : index
      %18 = vector.load %arg25[%c0, %c0_4] : memref<128x128xf32, #tpu.memory_space<vmem>>, vector<128x128xf32>
      tpu.vector_store %arg25[%c0, %c0_4], %17 {strides = array<i32>} : memref<128x128xf32, #tpu.memory_space<vmem>>, vector<128x128xf32>,
    } else {
    }
    %7 = arith.index_cast %1 : i32 to index
    %8 = memref.load %arg6[%7] : memref<12xi32, #tpu.memory_space<smem>>
    %c1_i32_0 = arith.constant 1 : i32
    %9 = arith.cmpi eq, %8, %c1_i32_0 : i32
    %10 = arith.extui %9 : i1 to i32
    %c0_i32_1 = arith.constant 0 : i32
    %11 = arith.cmpi ne, %10, %c0_i32_1 : i32
    scf.if %11 {
      %c0 = arith.constant 0 : index
      %c0_4 = arith.constant 0 : index
      %17 = vector.load %arg9[%c0, %c0_4] : memref<512x128xf32, #tpu.memory_space<vmem>>, vector<512x128xf32>
      %c0_5 = arith.constant 0 : index
      %c0_6 = arith.constant 0 : index
      %18 = vector.load %arg7[%c0_5, %c0_6] : memref<128x128xf32, #tpu.memory_space<vmem>>, vector<128x128xf32>
      %c0_7 = arith.constant 0 : index
      %c0_8 = arith.constant 0 : index
      %19 = vector.load %arg10[%c0_7, %c0_8] : memref<1x512xi32, #tpu.memory_space<vmem>>, vector<1x512xi32>
      %c0_9 = arith.constant 0 : index
      %c0_10 = arith.constant 0 : index
      %20 = vector.load %arg11[%c0_9, %c0_10] : memref<512x1xi32, #tpu.memory_space<vmem>>, vector<512x1xi32>
      %21 = tpu.iota {dimensions = array<i32: 0>} : vector<128x512xi32>
      %22 = tpu.iota {dimensions = array<i32: 1>} : vector<512x128xi32>
      %23 = vector.broadcast %19 : vector<1x512xi32> to vector<128x512xi32>
      %24 = arith.cmpi eq, %23, %21 : vector<128x512xi32>
      %25 = arith.extui %24 : vector<128x512xi1> to vector<128x512xi32>
      %26 = arith.sitofp %25 : vector<128x512xi32> to vector<128x512xf32>
      %27 = vector.broadcast %20 : vector<512x1xi32> to vector<512x128xi32>
      %28 = arith.cmpi eq, %27, %22 : vector<512x128xi32>
      %29 = arith.extui %28 : vector<512x128xi1> to vector<512x128xi32>
      %30 = arith.sitofp %29 : vector<512x128xi32> to vector<512x128xf32>
      %cst = arith.constant dense<0.000000e+00> : vector<512x128xf32>
      %31 = tpu.matmul %30, %18, %cst {dimension_numbers = #tpu.dot_dimension_numbers<[1], [0], [0], [1], [0, 0, 1, 1], [], []>} : vector<512x128xf32>, vector<128x128xf32>, vector<512x128xf32> -> vector<512x128xf32>
      %32 = arith.subf %17, %31 : vector<512x128xf32>
      %33 = arith.truncf %32 : vector<512x128xf32> to vector<512x128xbf16>
      %c0_11 = arith.constant 0 : index
      %c0_12 = arith.constant 0 : index
      %34 = vector.load %arg12[%c0_11, %c0_12] : memref<128x256xbf16, #tpu.memory_space<vmem>>, vector<128x256xbf16>
      %cst_13 = arith.constant dense<0.000000e+00> : vector<512x256xf32>
      %35 = tpu.matmul %33, %34, %cst_13 {dimension_numbers = #tpu.dot_dimension_numbers<[1], [0], [0], [1], [0, 0, 1, 1], [], []>} : vector<512x128xbf16>, vector<128x256xbf16>, vector<512x256xf32> -> vector<512x256xf32>
      %c0_14 = arith.constant 0 : index
      %c0_15 = arith.constant 0 : index
      %36 = vector.load %arg13[%c0_14, %c0_15] : memref<1x256xf32, #tpu.memory_space<vmem>>, vector<1x256xf32>
      %37 = vector.broadcast %36 : vector<1x256xf32> to vector<512x256xf32>
      %38 = arith.addf %35, %37 : vector<512x256xf32>
      %cst_16 = arith.constant 0.000000e+00 : f32
      %39 = vector.broadcast %cst_16 : f32 to vector<512x256xf32>
      %40 = arith.cmpf ogt, %38, %39 : vector<512x256xf32>
      %cst_17 = arith.constant 0.00999999977 : f32
      %41 = vector.broadcast %cst_17 : f32 to vector<512x256xf32>
      %42 = arith.mulf %41, %38 : vector<512x256xf32>
      %43 = arith.select %40, %38, %42 : vector<512x256xi1>, vector<512x256xf32>
      %44 = arith.truncf %43 : vector<512x256xf32> to vector<512x256xbf16>
      %c0_18 = arith.constant 0 : index
      %c0_19 = arith.constant 0 : index
      %45 = vector.load %arg14[%c0_18, %c0_19] : memref<256x128xbf16, #tpu.memory_space<vmem>>, vector<256x128xbf16>
      %cst_20 = arith.constant dense<0.000000e+00> : vector<512x128xf32>
      %46 = tpu.matmul %44, %45, %cst_20 {dimension_numbers = #tpu.dot_dimension_numbers<[1], [0], [0], [1], [0, 0, 1, 1], [], []>} : vector<512x256xbf16>, vector<256x128xbf16>, vector<512x128xf32> -> vector<512x128xf32>
      %c0_21 = arith.constant 0 : index
      %c0_22 = arith.constant 0 : index
      %47 = vector.load %arg15[%c0_21, %c0_22] : memref<1x128xf32, #tpu.memory_space<vmem>>, vector<1x128xf32>
      %48 = vector.broadcast %47 : vector<1x128xf32> to vector<512x128xf32>
      %49 = arith.addf %46, %48 : vector<512x128xf32>
      %cst_23 = arith.constant 0.000000e+00 : f32
      %50 = vector.broadcast %cst_23 : f32 to vector<512x128xf32>
      %51 = arith.cmpf ogt, %49, %50 : vector<512x128xf32>
      %cst_24 = arith.constant 0.00999999977 : f32
      %52 = vector.broadcast %cst_24 : f32 to vector<512x128xf32>
      %53 = arith.mulf %52, %49 : vector<512x128xf32>
      %54 = arith.select %51, %49, %53 : vector<512x128xi1>, vector<512x128xf32>
      %55 = arith.truncf %54 : vector<512x128xf32> to vector<512x128xbf16>
      %c0_25 = arith.constant 0 : index
      %c0_26 = arith.constant 0 : index
      %56 = vector.load %arg16[%c0_25, %c0_26] : memref<128x128xbf16, #tpu.memory_space<vmem>>, vector<128x128xbf16>
      %cst_27 = arith.constant dense<0.000000e+00> : vector<512x128xf32>
      %57 = tpu.matmul %55, %56, %cst_27 {dimension_numbers = #tpu.dot_dimension_numbers<[1], [0], [0], [1], [0, 0, 1, 1], [], []>} : vector<512x128xbf16>, vector<128x128xbf16>, vector<512x128xf32> -> vector<512x128xf32>
      %c0_28 = arith.constant 0 : index
      %c0_29 = arith.constant 0 : index
      %58 = vector.load %arg17[%c0_28, %c0_29] : memref<1x128xf32, #tpu.memory_space<vmem>>, vector<1x128xf32>
      %59 = vector.broadcast %58 : vector<1x128xf32> to vector<512x128xf32>
      %60 = arith.addf %57, %59 : vector<512x128xf32>
      %cst_30 = arith.constant 0.000000e+00 : f32
      %61 = vector.broadcast %cst_30 : f32 to vector<512x128xf32>
      %62 = arith.cmpf ogt, %60, %61 : vector<512x128xf32>
      %cst_31 = arith.constant 0.00999999977 : f32
      %63 = vector.broadcast %cst_31 : f32 to vector<512x128xf32>
      %64 = arith.mulf %63, %60 : vector<512x128xf32>
      %65 = arith.select %62, %60, %64 : vector<512x128xi1>, vector<512x128xf32>
      %c0_32 = arith.constant 0 : index
      %c0_33 = arith.constant 0 : index
      %66 = vector.load %arg18[%c0_32, %c0_33] : memref<8x128xbf16, #tpu.memory_space<vmem>>, vector<8x128xbf16>
      %67 = arith.truncf %65 : vector<512x128xf32> to vector<512x128xbf16>
      %cst_34 = arith.constant dense<0.000000e+00> : vector<8x512xf32>
      %68 = tpu.matmul %66, %67, %cst_34 {dimension_numbers = #tpu.dot_dimension_numbers<[1], [1], [0], [0], [0, 0, 1, 0], [], []>} : vector<8x128xbf16>, vector<512x128xbf16>, vector<8x512xf32> -> vector<8x512xf32>
      %69 = vector.extract_strided_slice %68 {offsets = [0, 0], sizes = [1, 512], strides = [1, 1]} : vector<8x512xf32> to vector<1x512xf32>
      %c0_35 = arith.constant 0 : index
      %c0_36 = arith.constant 0 : index
      %70 = vector.load %arg19[%c0_35, %c0_36] : memref<1x1xf32, #tpu.memory_space<vmem>>, vector<1x1xf32>
      %71 = vector.broadcast %70 : vector<1x1xf32> to vector<1x512xf32>
      %72 = arith.addf %69, %71 : vector<1x512xf32>
      %73 = arith.negf %72 : vector<1x512xf32>
      %74 = math.exp %73 : vector<1x512xf32>
      %cst_37 = arith.constant 1.000000e+00 : f32
      %75 = vector.broadcast %cst_37 : f32 to vector<1x512xf32>
      %76 = arith.addf %75, %74 : vector<1x512xf32>
      %77 = arith.divf %75, %76 : vector<1x512xf32>
      %c0_38 = arith.constant 0 : index
      %c0_39 = arith.constant 0 : index
      %c0_40 = arith.constant 0 : index
      %78 = vector.load %arg24[%c0_38, %c0_39, %c0_40] : memref<1x1x512xf32, #tpu.memory_space<vmem>>, vector<1x1x512xf32>
      %79 = vector.shape_cast %78 : vector<1x1x512xf32> to vector<1x512xf32>
      %80 = vector.shape_cast %77 : vector<1x512xf32> to vector<1x1x512xf32>
      tpu.vector_store %arg24[%c0_38, %c0_39, %c0_40], %80 {strides = array<i32>} : memref<1x1x512xf32, #tpu.memory_space<vmem>>, vector<1x1x512xf32>,
      %81 = vector.broadcast %77 : vector<1x512xf32> to vector<128x512xf32>
      %82 = arith.mulf %26, %81 : vector<128x512xf32>
      %83 = arith.truncf %82 : vector<128x512xf32> to vector<128x512xbf16>
      %c0_41 = arith.constant 0 : index
      %c0_42 = arith.constant 0 : index
      %84 = vector.load %arg25[%c0_41, %c0_42] : memref<128x128xf32, #tpu.memory_space<vmem>>, vector<128x128xf32>
      %85 = arith.truncf %17 : vector<512x128xf32> to vector<512x128xbf16>
      %cst_43 = arith.constant dense<0.000000e+00> : vector<128x128xf32>
      %86 = tpu.matmul %83, %85, %cst_43 {dimension_numbers = #tpu.dot_dimension_numbers<[1], [0], [0], [1], [0, 0, 1, 1], [], []>} : vector<128x512xbf16>, vector<512x128xbf16>, vector<128x128xf32> -> vector<128x128xf32>
      %87 = arith.addf %84, %86 : vector<128x128xf32>
      %c0_44 = arith.constant 0 : index
      %c0_45 = arith.constant 0 : index
      %88 = vector.load %arg25[%c0_44, %c0_45] : memref<128x128xf32, #tpu.memory_space<vmem>>, vector<128x128xf32>
      tpu.vector_store %arg25[%c0_44, %c0_45], %87 {strides = array<i32>} : memref<128x128xf32, #tpu.memory_space<vmem>>, vector<128x128xf32>,
    } else {
    }
    %12 = arith.index_cast %1 : i32 to index
    %13 = memref.load %arg5[%12] : memref<12xi32, #tpu.memory_space<smem>>
    %c1_i32_2 = arith.constant 1 : i32
    %14 = arith.cmpi eq, %13, %c1_i32_2 : i32
    %15 = arith.extui %14 : i1 to i32
    %c0_i32_3 = arith.constant 0 : i32
    %16 = arith.cmpi ne, %15, %c0_i32_3 : i32
    scf.if %16 {
      %c0 = arith.constant 0 : index
      %c0_4 = arith.constant 0 : index
      %17 = vector.load %arg25[%c0, %c0_4] : memref<128x128xf32, #tpu.memory_space<vmem>>, vector<128x128xf32>
      %c0_5 = arith.constant 0 : index
      %c0_6 = arith.constant 0 : index
      %18 = vector.load %arg8[%c0_5, %c0_6] : memref<128x1xf32, #tpu.memory_space<vmem>>, vector<128x1xf32>
      %19 = vector.broadcast %18 : vector<128x1xf32> to vector<128x128xf32>
      %20 = arith.mulf %17, %19 : vector<128x128xf32>
      %c0_7 = arith.constant 0 : index
      %c0_8 = arith.constant 0 : index
      %21 = vector.load %arg7[%c0_7, %c0_8] : memref<128x128xf32, #tpu.memory_space<vmem>>, vector<128x128xf32>
      %22 = arith.truncf %21 : vector<128x128xf32> to vector<128x128xbf16>
      %c0_9 = arith.constant 0 : index
      %c0_10 = arith.constant 0 : index
      %23 = vector.load %arg20[%c0_9, %c0_10] : memref<128x128xbf16, #tpu.memory_space<vmem>>, vector<128x128xbf16>
      %cst = arith.constant dense<0.000000e+00> : vector<128x128xf32>
      %24 = tpu.matmul %22, %23, %cst {dimension_numbers = #tpu.dot_dimension_numbers<[1], [0], [0], [1], [0, 0, 1, 1], [], []>} : vector<128x128xbf16>, vector<128x128xbf16>, vector<128x128xf32> -> vector<128x128xf32>
      %25 = arith.truncf %20 : vector<128x128xf32> to vector<128x128xbf16>
      %c0_11 = arith.constant 0 : index
      %c0_12 = arith.constant 0 : index
      %26 = vector.load %arg21[%c0_11, %c0_12] : memref<128x128xbf16, #tpu.memory_space<vmem>>, vector<128x128xbf16>
      %cst_13 = arith.constant dense<0.000000e+00> : vector<128x128xf32>
      %27 = tpu.matmul %25, %26, %cst_13 {dimension_numbers = #tpu.dot_dimension_numbers<[1], [0], [0], [1], [0, 0, 1, 1], [], []>} : vector<128x128xbf16>, vector<128x128xbf16>, vector<128x128xf32> -> vector<128x128xf32>
      %28 = arith.addf %24, %27 : vector<128x128xf32>
      %c0_14 = arith.constant 0 : index
      %c0_15 = arith.constant 0 : index
      %29 = vector.load %arg22[%c0_14, %c0_15] : memref<1x128xf32, #tpu.memory_space<vmem>>, vector<1x128xf32>
      %30 = vector.broadcast %29 : vector<1x128xf32> to vector<128x128xf32>
      %31 = arith.addf %28, %30 : vector<128x128xf32>
      %cst_16 = arith.constant 0.000000e+00 : f32
      %32 = vector.broadcast %cst_16 : f32 to vector<128x128xf32>
      %33 = arith.cmpf ogt, %31, %32 : vector<128x128xf32>
      %cst_17 = arith.constant 0.00999999977 : f32
      %34 = vector.broadcast %cst_17 : f32 to vector<128x128xf32>
      %35 = arith.mulf %34, %31 : vector<128x128xf32>
      %36 = arith.select %33, %31, %35 : vector<128x128xi1>, vector<128x128xf32>
      %37 = arith.mulf %36, %36 : vector<128x128xf32>
      %cst_18 = arith.constant dense<0.000000e+00> : vector<128xf32>
      %38 = vector.multi_reduction <add>, %37, %cst_18 [1] : vector<128x128xf32> to vector<128xf32>
      %39 = vector.shape_cast %38 : vector<128xf32> to vector<128x1xf32>
      %cst_19 = arith.constant 1.000000e-24 : f32
      %40 = vector.broadcast %cst_19 : f32 to vector<128x1xf32>
      %41 = arith.maximumf %39, %40 : vector<128x1xf32>
      %42 = math.rsqrt %41 : vector<128x1xf32>
      %43 = vector.broadcast %42 : vector<128x1xf32> to vector<128x128xf32>
      %44 = arith.mulf %36, %43 : vector<128x128xf32>
      %c0_20 = arith.constant 0 : index
      %c0_21 = arith.constant 0 : index
      %45 = vector.load %arg23[%c0_20, %c0_21] : memref<128x128xf32, #tpu.memory_space<vmem>>, vector<128x128xf32>
      tpu.vector_store %arg23[%c0_20, %c0_21], %44 {strides = array<i32>} : memref<128x128xf32, #tpu.memory_space<vmem>>, vector<128x128xf32>,
    } else {
    }
    return
  }
  func.func @transform_0(%arg0: i32, %arg1: i32, %arg2: memref<12xi32, #tpu.memory_space<smem>>, %arg3: memref<12xi32, #tpu.memory_space<smem>>, %arg4: memref<12xi32, #tpu.memory_space<smem>>, %arg5: memref<12xi32, #tpu.memory_space<smem>>, %arg6: memref<12xi32, #tpu.memory_space<smem>>) -> (i32, i32) {
    %c6_i32 = arith.constant 6 : i32
    %0 = arith.muli %arg0, %c6_i32 : i32
    %1 = arith.addi %0, %arg1 : i32
    %2 = arith.index_cast %1 : i32 to index
    %3 = memref.load %arg2[%2] : memref<12xi32, #tpu.memory_space<smem>>
    %c0_i32 = arith.constant 0 : i32
    %c0_i32_0 = arith.constant 0 : i32
    return %3, %c0_i32 : i32, i32
  }
  func.func @transform_1(%arg0: i32, %arg1: i32, %arg2: memref<12xi32, #tpu.memory_space<smem>>, %arg3: memref<12xi32, #tpu.memory_space<smem>>, %arg4: memref<12xi32, #tpu.memory_space<smem>>, %arg5: memref<12xi32, #tpu.memory_space<smem>>, %arg6: memref<12xi32, #tpu.memory_space<smem>>) -> (i32, i32) {
    %c6_i32 = arith.constant 6 : i32
    %0 = arith.muli %arg0, %c6_i32 : i32
    %1 = arith.addi %0, %arg1 : i32
    %2 = arith.index_cast %1 : i32 to index
    %3 = memref.load %arg2[%2] : memref<12xi32, #tpu.memory_space<smem>>
    %c0_i32 = arith.constant 0 : i32
    %c0_i32_0 = arith.constant 0 : i32
    return %3, %c0_i32 : i32, i32
  }
  func.func @transform_2(%arg0: i32, %arg1: i32, %arg2: memref<12xi32, #tpu.memory_space<smem>>, %arg3: memref<12xi32, #tpu.memory_space<smem>>, %arg4: memref<12xi32, #tpu.memory_space<smem>>, %arg5: memref<12xi32, #tpu.memory_space<smem>>, %arg6: memref<12xi32, #tpu.memory_space<smem>>) -> (i32, i32) {
    %c6_i32 = arith.constant 6 : i32
    %0 = arith.muli %arg0, %c6_i32 : i32
    %1 = arith.addi %0, %arg1 : i32
    %2 = arith.index_cast %1 : i32 to index
    %3 = memref.load %arg3[%2] : memref<12xi32, #tpu.memory_space<smem>>
    %c0_i32 = arith.constant 0 : i32
    %c0_i32_0 = arith.constant 0 : i32
    return %3, %c0_i32 : i32, i32
  }
  func.func @transform_3(%arg0: i32, %arg1: i32, %arg2: memref<12xi32, #tpu.memory_space<smem>>, %arg3: memref<12xi32, #tpu.memory_space<smem>>, %arg4: memref<12xi32, #tpu.memory_space<smem>>, %arg5: memref<12xi32, #tpu.memory_space<smem>>, %arg6: memref<12xi32, #tpu.memory_space<smem>>) -> (i32, i32) {
    %c6_i32 = arith.constant 6 : i32
    %0 = arith.muli %arg0, %c6_i32 : i32
    %1 = arith.addi %0, %arg1 : i32
    %2 = arith.index_cast %1 : i32 to index
    %3 = memref.load %arg3[%2] : memref<12xi32, #tpu.memory_space<smem>>
    %c0_i32 = arith.constant 0 : i32
    %c0_i32_0 = arith.constant 0 : i32
    return %c0_i32, %3 : i32, i32
  }
  func.func @transform_4(%arg0: i32, %arg1: i32, %arg2: memref<12xi32, #tpu.memory_space<smem>>, %arg3: memref<12xi32, #tpu.memory_space<smem>>, %arg4: memref<12xi32, #tpu.memory_space<smem>>, %arg5: memref<12xi32, #tpu.memory_space<smem>>, %arg6: memref<12xi32, #tpu.memory_space<smem>>) -> (i32, i32) {
    %c6_i32 = arith.constant 6 : i32
    %0 = arith.muli %arg0, %c6_i32 : i32
    %1 = arith.addi %0, %arg1 : i32
    %2 = arith.index_cast %1 : i32 to index
    %3 = memref.load %arg3[%2] : memref<12xi32, #tpu.memory_space<smem>>
    %c0_i32 = arith.constant 0 : i32
    %c0_i32_0 = arith.constant 0 : i32
    return %3, %c0_i32 : i32, i32
  }
  func.func @transform_5(%arg0: i32, %arg1: i32, %arg2: memref<12xi32, #tpu.memory_space<smem>>, %arg3: memref<12xi32, #tpu.memory_space<smem>>, %arg4: memref<12xi32, #tpu.memory_space<smem>>, %arg5: memref<12xi32, #tpu.memory_space<smem>>, %arg6: memref<12xi32, #tpu.memory_space<smem>>) -> (i32, i32) {
    %c0_i32 = arith.constant 0 : i32
    %c0_i32_0 = arith.constant 0 : i32
    %c0_i32_1 = arith.constant 0 : i32
    return %c0_i32, %c0_i32_0 : i32, i32
  }
  func.func @transform_6(%arg0: i32, %arg1: i32, %arg2: memref<12xi32, #tpu.memory_space<smem>>, %arg3: memref<12xi32, #tpu.memory_space<smem>>, %arg4: memref<12xi32, #tpu.memory_space<smem>>, %arg5: memref<12xi32, #tpu.memory_space<smem>>, %arg6: memref<12xi32, #tpu.memory_space<smem>>) -> (i32, i32) {
    %c0_i32 = arith.constant 0 : i32
    %c0_i32_0 = arith.constant 0 : i32
    %c0_i32_1 = arith.constant 0 : i32
    return %c0_i32, %c0_i32_0 : i32, i32
  }
  func.func @transform_7(%arg0: i32, %arg1: i32, %arg2: memref<12xi32, #tpu.memory_space<smem>>, %arg3: memref<12xi32, #tpu.memory_space<smem>>, %arg4: memref<12xi32, #tpu.memory_space<smem>>, %arg5: memref<12xi32, #tpu.memory_space<smem>>, %arg6: memref<12xi32, #tpu.memory_space<smem>>) -> (i32, i32) {
    %c0_i32 = arith.constant 0 : i32
    %c0_i32_0 = arith.constant 0 : i32
    %c0_i32_1 = arith.constant 0 : i32
    return %c0_i32, %c0_i32_0 : i32, i32
  }
  func.func @transform_8(%arg0: i32, %arg1: i32, %arg2: memref<12xi32, #tpu.memory_space<smem>>, %arg3: memref<12xi32, #tpu.memory_space<smem>>, %arg4: memref<12xi32, #tpu.memory_space<smem>>, %arg5: memref<12xi32, #tpu.memory_space<smem>>, %arg6: memref<12xi32, #tpu.memory_space<smem>>) -> (i32, i32) {
    %c0_i32 = arith.constant 0 : i32
    %c0_i32_0 = arith.constant 0 : i32
    %c0_i32_1 = arith.constant 0 : i32
    return %c0_i32, %c0_i32_0 : i32, i32
  }
  func.func @transform_9(%arg0: i32, %arg1: i32, %arg2: memref<12xi32, #tpu.memory_space<smem>>, %arg3: memref<12xi32, #tpu.memory_space<smem>>, %arg4: memref<12xi32, #tpu.memory_space<smem>>, %arg5: memref<12xi32, #tpu.memory_space<smem>>, %arg6: memref<12xi32, #tpu.memory_space<smem>>) -> (i32, i32) {
    %c0_i32 = arith.constant 0 : i32
    %c0_i32_0 = arith.constant 0 : i32
    %c0_i32_1 = arith.constant 0 : i32
    return %c0_i32, %c0_i32_0 : i32, i32
  }
  func.func @transform_10(%arg0: i32, %arg1: i32, %arg2: memref<12xi32, #tpu.memory_space<smem>>, %arg3: memref<12xi32, #tpu.memory_space<smem>>, %arg4: memref<12xi32, #tpu.memory_space<smem>>, %arg5: memref<12xi32, #tpu.memory_space<smem>>, %arg6: memref<12xi32, #tpu.memory_space<smem>>) -> (i32, i32) {
    %c0_i32 = arith.constant 0 : i32
    %c0_i32_0 = arith.constant 0 : i32
    %c0_i32_1 = arith.constant 0 : i32
    return %c0_i32, %c0_i32_0 : i32, i32
  }
  func.func @transform_11(%arg0: i32, %arg1: i32, %arg2: memref<12xi32, #tpu.memory_space<smem>>, %arg3: memref<12xi32, #tpu.memory_space<smem>>, %arg4: memref<12xi32, #tpu.memory_space<smem>>, %arg5: memref<12xi32, #tpu.memory_space<smem>>, %arg6: memref<12xi32, #tpu.memory_space<smem>>) -> (i32, i32) {
    %c0_i32 = arith.constant 0 : i32
    %c0_i32_0 = arith.constant 0 : i32
    %c0_i32_1 = arith.constant 0 : i32
    return %c0_i32, %c0_i32_0 : i32, i32
  }
  func.func @transform_12(%arg0: i32, %arg1: i32, %arg2: memref<12xi32, #tpu.memory_space<smem>>, %arg3: memref<12xi32, #tpu.memory_space<smem>>, %arg4: memref<12xi32, #tpu.memory_space<smem>>, %arg5: memref<12xi32, #tpu.memory_space<smem>>, %arg6: memref<12xi32, #tpu.memory_space<smem>>) -> (i32, i32) {
    %c0_i32 = arith.constant 0 : i32
    %c0_i32_0 = arith.constant 0 : i32
    %c0_i32_1 = arith.constant 0 : i32
    return %c0_i32, %c0_i32_0 : i32, i32
  }
  func.func @transform_13(%arg0: i32, %arg1: i32, %arg2: memref<12xi32, #tpu.memory_space<smem>>, %arg3: memref<12xi32, #tpu.memory_space<smem>>, %arg4: memref<12xi32, #tpu.memory_space<smem>>, %arg5: memref<12xi32, #tpu.memory_space<smem>>, %arg6: memref<12xi32, #tpu.memory_space<smem>>) -> (i32, i32) {
    %c0_i32 = arith.constant 0 : i32
    %c0_i32_0 = arith.constant 0 : i32
    %c0_i32_1 = arith.constant 0 : i32
    return %c0_i32, %c0_i32_0 : i32, i32
  }
  func.func @transform_14(%arg0: i32, %arg1: i32, %arg2: memref<12xi32, #tpu.memory_space<smem>>, %arg3: memref<12xi32, #tpu.memory_space<smem>>, %arg4: memref<12xi32, #tpu.memory_space<smem>>, %arg5: memref<12xi32, #tpu.memory_space<smem>>, %arg6: memref<12xi32, #tpu.memory_space<smem>>) -> (i32, i32) {
    %c0_i32 = arith.constant 0 : i32
    %c0_i32_0 = arith.constant 0 : i32
    %c0_i32_1 = arith.constant 0 : i32
    return %c0_i32, %c0_i32_0 : i32, i32
  }
  func.func @transform_15(%arg0: i32, %arg1: i32, %arg2: memref<12xi32, #tpu.memory_space<smem>>, %arg3: memref<12xi32, #tpu.memory_space<smem>>, %arg4: memref<12xi32, #tpu.memory_space<smem>>, %arg5: memref<12xi32, #tpu.memory_space<smem>>, %arg6: memref<12xi32, #tpu.memory_space<smem>>) -> (i32, i32) {
    %c0_i32 = arith.constant 0 : i32
    %c0_i32_0 = arith.constant 0 : i32
    %c0_i32_1 = arith.constant 0 : i32
    return %c0_i32, %c0_i32_0 : i32, i32
  }
  func.func @transform_16(%arg0: i32, %arg1: i32, %arg2: memref<12xi32, #tpu.memory_space<smem>>, %arg3: memref<12xi32, #tpu.memory_space<smem>>, %arg4: memref<12xi32, #tpu.memory_space<smem>>, %arg5: memref<12xi32, #tpu.memory_space<smem>>, %arg6: memref<12xi32, #tpu.memory_space<smem>>) -> (i32, i32) {
    %c6_i32 = arith.constant 6 : i32
    %0 = arith.muli %arg0, %c6_i32 : i32
    %1 = arith.addi %0, %arg1 : i32
    %2 = arith.index_cast %1 : i32 to index
    %3 = memref.load %arg2[%2] : memref<12xi32, #tpu.memory_space<smem>>
    %c0_i32 = arith.constant 0 : i32
    %c0_i32_0 = arith.constant 0 : i32
    return %3, %c0_i32 : i32, i32
  }
  func.func @transform_17(%arg0: i32, %arg1: i32, %arg2: memref<12xi32, #tpu.memory_space<smem>>, %arg3: memref<12xi32, #tpu.memory_space<smem>>, %arg4: memref<12xi32, #tpu.memory_space<smem>>, %arg5: memref<12xi32, #tpu.memory_space<smem>>, %arg6: memref<12xi32, #tpu.memory_space<smem>>) -> (i32, i32, i32) {
    %c6_i32 = arith.constant 6 : i32
    %0 = arith.muli %arg0, %c6_i32 : i32
    %1 = arith.addi %0, %arg1 : i32
    %2 = arith.index_cast %1 : i32 to index
    %3 = memref.load %arg3[%2] : memref<12xi32, #tpu.memory_space<smem>>
    %c0_i32 = arith.constant 0 : i32
    %c0_i32_0 = arith.constant 0 : i32
    %c0_i32_1 = arith.constant 0 : i32
    return %3, %c0_i32, %c0_i32_0 : i32, i32, i32
  }
}

</mosaic_0001>

<llo_original>
// kernel: tpu_custom_call.1
$region0: #{tpu_custom_call.1}
  #allocation0 [shape = 'u32[]', space=smem, size = 0x4, offset = 0x4, fixed_abs, tag = 'smem constant byte address 0x4 - core index']
  #allocation1 [shape = 'u32[144,128]{1,0:T(1,128)}', space=vmem, size = 0x12000, scoped, tag = 'internal scratch']
  #allocation2 [shape = 'f32[128,128]{1,0:T(8,128)}', space=vmem, size = 0x10000, scoped, tag = 'scratch operand']
  #allocation3 [shape = 's32[1]{0}', space=sflag, size = 0x4, scoped, tag = 'scoped memory for tpu_custom_call.1']
  #allocation4 [shape = 'u8[512]{0}', space=smem, size = 0x200, scoped, tag = 'prefetched SMEM operand 0']
  #allocation5 [shape = 'u8[512]{0}', space=smem, size = 0x200, scoped, tag = 'prefetched SMEM operand 1']
  #allocation6 [shape = 'u8[512]{0}', space=smem, size = 0x200, scoped, tag = 'prefetched SMEM operand 2']
  #allocation7 [shape = 'u8[512]{0}', space=smem, size = 0x200, scoped, tag = 'prefetched SMEM operand 3']
  #allocation8 [shape = 'u8[512]{0}', space=smem, size = 0x200, scoped, tag = 'prefetched SMEM operand 4']
  #allocation9 [shape = 'f32[1,1]{1,0:T(1,128)S(1)}', space=vmem, size = 0x200, scoped, tag = 'scoped memory for tpu_custom_call.1']
  %s0 = inlined_call_operand.vmem [shape: s32[12], index: 0, kind: input, shape index: {}]
  %s1 = inlined_call_operand.vmem [shape: s32[12], index: 1, kind: input, shape index: {}]
  %s2 = inlined_call_operand.vmem [shape: s32[12], index: 2, kind: input, shape index: {}]
  %s3 = inlined_call_operand.vmem [shape: s32[12], index: 3, kind: input, shape index: {}]
  %s4 = inlined_call_operand.vmem [shape: s32[12], index: 4, kind: input, shape index: {}]
  %s5 = inlined_call_operand.vmem [shape: f32[384,128], index: 5, kind: input, shape index: {}]
  %s6 = inlined_call_operand.vmem [shape: f32[384,1], index: 6, kind: input, shape index: {}]
  %s7 = inlined_call_operand.vmem [shape: f32[3584,128], index: 7, kind: input, shape index: {}]
  %s8 = inlined_call_operand.hbm [shape: s32[1,3584], index: 8, kind: input, shape index: {}]
  %s9 = inlined_call_operand.vmem [shape: s32[3584,1], index: 9, kind: input, shape index: {}]
  %s10 = inlined_call_operand.hbm [shape: bf16[128,256], index: 10, kind: input, shape index: {}]
  %s11 = inlined_call_operand.vmem [shape: f32[1,256], index: 11, kind: input, shape index: {}]
  %s12 = inlined_call_operand.hbm [shape: bf16[256,128], index: 12, kind: input, shape index: {}]
  %s13 = inlined_call_operand.vmem [shape: f32[1,128], index: 13, kind: input, shape index: {}]
  %s14 = inlined_call_operand.vmem [shape: bf16[128,128], index: 14, kind: input, shape index: {}]
  %s15 = inlined_call_operand.vmem [shape: f32[1,128], index: 15, kind: input, shape index: {}]
  %s16 = inlined_call_operand.vmem [shape: bf16[8,128], index: 16, kind: input, shape index: {}]
  %s17 = inlined_call_operand.<no memory space> [shape: f32[1,1], index: 17, kind: input, shape index: {}]
  %s18 = inlined_call_operand.hbm [shape: bf16[128,128], index: 18, kind: input, shape index: {}]
  %s19 = inlined_call_operand.hbm [shape: bf16[128,128], index: 19, kind: input, shape index: {}]
  %s20 = inlined_call_operand.vmem [shape: f32[1,128], index: 20, kind: input, shape index: {}]
  %s21 = inlined_call_operand.hbm [shape: f32[384,128], index: 21, kind: output, shape index: {0}]
  %s22 = inlined_call_operand.hbm [shape: f32[7,1,512], index: 22, kind: output, shape index: {1}]
  %23 = xla_tuple %s21, %s22
  %s24 = sld [smem:[#allocation0]]
  $region137: #{tpu_custom_call.1} parent=0
    _
  %s26 = ssub.s32 1, %s24
  %s27 = scalar_select 0, %s26, %s24
  %s28 = sshll.u32 %s0, 4
  %s29 = int_to_ptr.vmem [resolvable:$true] %s28
  %31 = dma.vmem_to_smem %s29, 16, [#allocation4], [#allocation3]
  %s32 = sshll.u32 %s1, 4
  %s33 = int_to_ptr.vmem [resolvable:$true] %s32
  %35 = dma.vmem_to_smem %s33, 16, [#allocation5], [#allocation3]
  %s36 = sshll.u32 %s2, 4
  %s37 = int_to_ptr.vmem [resolvable:$true] %s36
  %39 = dma.vmem_to_smem %s37, 16, [#allocation6], [#allocation3]
  %s40 = sshll.u32 %s3, 4
  %s41 = int_to_ptr.vmem [resolvable:$true] %s40
  %43 = dma.vmem_to_smem %s41, 16, [#allocation7], [#allocation3]
  %s44 = sshll.u32 %s4, 4
  %s45 = int_to_ptr.vmem [resolvable:$true] %s44
  %47 = dma.vmem_to_smem %s45, 16, [#allocation8], [#allocation3]
  %v48 = vstv %s17
  %49 = vst [vmem:[#allocation9] sm:$0x1] %v48
  %50 = dma.done [#allocation3], 80
  %51 = sfence
  $region1: #{tpu_custom_call.1} parent=0
    #allocation10 [shape = 'u8[4096]{0}', space=vmem, size = 0x1000, scoped, tag = 'input window, operand 8']
    #allocation11 [shape = 's32[2]{0}', space=sflag, size = 0x8, scoped, tag = 'scoped memory for tpu_custom_call.1']
    #allocation12 [shape = 's32[2]{0}', space=sflag, size = 0x8, scoped, tag = 'scoped memory for tpu_custom_call.1']
    #allocation13 [shape = 'u8[65536]{0}', space=vmem, size = 0x10000, scoped, tag = 'input window, operand 10, single buffered']
    #allocation14 [shape = 's32[1]{0}', space=sflag, size = 0x4, scoped, tag = 'scoped memory for tpu_custom_call.1']
    #allocation15 [shape = 'u8[65536]{0}', space=vmem, size = 0x10000, scoped, tag = 'input window, operand 12, single buffered']
    #allocation16 [shape = 'u8[32768]{0}', space=vmem, size = 0x8000, scoped, tag = 'input window, operand 18, single buffered']
    #allocation17 [shape = 's32[1]{0}', space=sflag, size = 0x4, scoped, tag = 'scoped memory for tpu_custom_call.1']
    #allocation18 [shape = 'u8[32768]{0}', space=vmem, size = 0x8000, scoped, tag = 'input window, operand 19, single buffered']
    #allocation19 [shape = 'u8[131072]{0}', space=vmem, size = 0x20000, scoped, tag = 'output window, operand 0']
    #allocation20 [shape = 'u8[4096]{0}', space=vmem, size = 0x1000, scoped, tag = 'output window, operand 1']
    #allocation21 [shape = 's32[2]{0}', space=sflag, size = 0x8, scoped, tag = 'scoped memory for tpu_custom_call.1']
    %52 = vsyncpa [#allocation11], 0
    %s53 = scalar_lea.sflag [#allocation11], 1
    %54 = vsyncpa %s53, 0
    %55 = vsyncpa [#allocation14], 0
    %56 = vsyncpa [#allocation17], 0
    %57 = vsyncpa [#allocation12], 0
    %s58 = scalar_lea.sflag [#allocation12], 1
    %59 = vsyncpa %s58, 0
    %60 = vsyncpa [#allocation21], 0
    %s61 = scalar_lea.sflag [#allocation21], 1
    %62 = vsyncpa %s61, 0
    loop: start=0, step=1, limit=14
    $region2: #{tpu_custom_call.1} parent=1 // loop_pre_header
      _
    $region3: #{tpu_custom_call.1} parent=1 // loop_header
      %s64 = sphi 0, %s68
      %p65 = scmp.ge.s32.totalorder %s64, 14
      %s71 = sphi 0, %s83
      %s72 = sphi 0, %s79
      %s73 = sphi 0, %s71
      %s74 = sphi 0, %s72
      %s75 = sphi 0, %s73
      %s76 = sphi 0, %s74
      %s92 = sphi 0, %s94
      %s95 = sphi 0, %s92
      %s96 = sphi 0, %s95
      %s112 = sphi 0, %s96
      %s124 = sphi 0, %s126
      %s127 = sphi 0, %s124
      %s128 = sphi 0, %s127
      %s144 = sphi 0, %s128
      %s156 = sphi 0, %s158
      %s159 = sphi 0, %s156
      %s160 = sphi 0, %s159
      %s176 = sphi 0, %s160
      %s188 = sphi 0, %s190
      %s191 = sphi 0, %s188
      %s192 = sphi 0, %s191
      %s208 = sphi 0, %s192
      %s220 = sphi 0, %s222
      %s223 = sphi 0, %s220
      %s224 = sphi 0, %s223
      %s240 = sphi 0, %s224
      %s244 = sphi 0, %s244
      %s246 = sphi 0, %s244
      %s247 = sphi 0, %s246
      %s261 = sphi 0, %s247
      %s265 = sphi 0, %s265
      %s267 = sphi 0, %s265
      %s268 = sphi 0, %s267
      %s282 = sphi 0, %s268
      %s286 = sphi 0, %s286
      %s288 = sphi 0, %s286
      %s289 = sphi 0, %s288
      %s303 = sphi 0, %s289
      %s307 = sphi 0, %s307
      %s309 = sphi 0, %s307
      %s310 = sphi 0, %s309
      %s324 = sphi 0, %s310
      %s328 = sphi 0, %s328
      %s330 = sphi 0, %s328
      %s331 = sphi 0, %s330
      %s345 = sphi 0, %s331
      %s349 = sphi 0, %s349
      %s351 = sphi 0, %s349
      %s352 = sphi 0, %s351
      %s366 = sphi 0, %s352
      %s370 = sphi 0, %s370
      %s372 = sphi 0, %s370
      %s373 = sphi 0, %s372
      %s387 = sphi 0, %s373
      %s391 = sphi 0, %s391
      %s393 = sphi 0, %s391
      %s394 = sphi 0, %s393
      %s408 = sphi 0, %s394
      %s412 = sphi 0, %s412
      %s414 = sphi 0, %s412
      %s415 = sphi 0, %s414
      %s429 = sphi 0, %s415
      %s433 = sphi 0, %s433
      %s435 = sphi 0, %s433
      %s436 = sphi 0, %s435
      %s450 = sphi 0, %s436
      %s454 = sphi 0, %s454
      %s456 = sphi 0, %s454
      %s457 = sphi 0, %s456
      %s471 = sphi 0, %s457
      %s483 = sphi 0, %s485
      %s486 = sphi 0, %s483
      %s487 = sphi 0, %s486
      %s503 = sphi 0, %s487
      %s515 = sphi 0, %s517
      %s518 = sphi 0, %s515
      %s519 = sphi 0, %s518
      %s535 = sphi 0, %s519
    $region4: #{tpu_custom_call.1} parent=1 // loop_header_branch
      %67 = sbr.rel (%p65) target = $region8
    $region5: #{tpu_custom_call.1} parent=1 // loop_body
      %s69 = ssub.s32 %s64, 1
      %s70 = ssub.s32 %s64, 2
      %s77 = sadd.s32 1, %s72
      %p78 = scmp.ge.s32.totalorder %s77, 6
      %s79 = scalar_select %p78, 0, %s77
      %s80 = sadd.s32 1, %s71
      %s81 = scalar_select %p78, %s80, %s71
      %p82 = scmp.ge.s32.totalorder %s81, 2
      %s83 = scalar_select %p82, 0, %s81
      %s84 = smul.u32 %s71, 6
      %s85 = sadd.s32 %s84, %s72
      %s86 = sld [smem:[#allocation4 + %s85]]
      %s87 = smul.u32 %s83, 6
      %s88 = sadd.s32 %s87, %s79
      %s89 = sld [smem:[#allocation4 + %s88]]
      %s90 = ssub.s32 %s86, %s89
      %p91 = scmp.eq.s32.totalorder %s90, 0
      %s93 = sadd.s32 %s92, 1
      %s94 = scalar_select %p91, %s92, %s93
      %p97 = pneg %p91
      %p98 = scmp.eq.s32.totalorder %s64, 11
      %p99 = por %p97, %p98
      %p100 = scmp.ne.s32.totalorder %s92, %s95
      %p101 = scmp.eq.s32.totalorder %s64, 0
      %p102 = por %p100, %p101
      %p103 = scmp.ne.s32.totalorder %s92, %s95
      %p104 = scmp.eq.s32.totalorder %s69, 11
      %p105 = por %p103, %p104
      %p106 = scmp.ne.s32.totalorder %s95, %s96
      %p107 = scmp.eq.s32.totalorder %s69, 0
      %p108 = por %p106, %p107
      %p109 = scmp.ne.s32.totalorder %s95, %s96
      %p110 = scmp.eq.s32.totalorder %s70, 11
      %p111 = por %p109, %p110
      %p113 = scmp.ne.s32.totalorder %s96, %s112
      %p114 = scmp.eq.s32.totalorder %s70, 0
      %p115 = por %p113, %p114
      %s116 = smul.u32 %s71, 6
      %s117 = sadd.s32 %s116, %s72
      %s118 = sld [smem:[#allocation4 + %s117]]
      %s119 = smul.u32 %s83, 6
      %s120 = sadd.s32 %s119, %s79
      %s121 = sld [smem:[#allocation4 + %s120]]
      %s122 = ssub.s32 %s118, %s121
      %p123 = scmp.eq.s32.totalorder %s122, 0
      %s125 = sadd.s32 %s124, 1
      %s126 = scalar_select %p123, %s124, %s125
      %p129 = pneg %p123
      %p130 = scmp.eq.s32.totalorder %s64, 11
      %p131 = por %p129, %p130
      %p132 = scmp.ne.s32.totalorder %s124, %s127
      %p133 = scmp.eq.s32.totalorder %s64, 0
      %p134 = por %p132, %p133
      %p135 = scmp.ne.s32.totalorder %s124, %s127
      %p136 = scmp.eq.s32.totalorder %s69, 11
      %p137 = por %p135, %p136
      %p138 = scmp.ne.s32.totalorder %s127, %s128
      %p139 = scmp.eq.s32.totalorder %s69, 0
      %p140 = por %p138, %p139
      %p141 = scmp.ne.s32.totalorder %s127, %s128
      %p142 = scmp.eq.s32.totalorder %s70, 11
      %p143 = por %p141, %p142
      %p145 = scmp.ne.s32.totalorder %s128, %s144
      %p146 = scmp.eq.s32.totalorder %s70, 0
      %p147 = por %p145, %p146
      %s148 = smul.u32 %s71, 6
      %s149 = sadd.s32 %s148, %s72
      %s150 = sld [smem:[#allocation5 + %s149]]
      %s151 = smul.u32 %s83, 6
      %s152 = sadd.s32 %s151, %s79
      %s153 = sld [smem:[#allocation5 + %s152]]
      %s154 = ssub.s32 %s150, %s153
      %p155 = scmp.eq.s32.totalorder %s154, 0
      %s157 = sadd.s32 %s156, 1
      %s158 = scalar_select %p155, %s156, %s157
      %p161 = pneg %p155
      %p162 = scmp.eq.s32.totalorder %s64, 11
      %p163 = por %p161, %p162
      %p164 = scmp.ne.s32.totalorder %s156, %s159
      %p165 = scmp.eq.s32.totalorder %s64, 0
      %p166 = por %p164, %p165
      %p167 = scmp.ne.s32.totalorder %s156, %s159
      %p168 = scmp.eq.s32.totalorder %s69, 11
      %p169 = por %p167, %p168
      %p170 = scmp.ne.s32.totalorder %s159, %s160
      %p171 = scmp.eq.s32.totalorder %s69, 0
      %p172 = por %p170, %p171
      %p173 = scmp.ne.s32.totalorder %s159, %s160
      %p174 = scmp.eq.s32.totalorder %s70, 11
      %p175 = por %p173, %p174
      %p177 = scmp.ne.s32.totalorder %s160, %s176
      %p178 = scmp.eq.s32.totalorder %s70, 0
      %p179 = por %p177, %p178
      %s180 = smul.u32 %s71, 6
      %s181 = sadd.s32 %s180, %s72
      %s182 = sld [smem:[#allocation5 + %s181]]
      %s183 = smul.u32 %s83, 6
      %s184 = sadd.s32 %s183, %s79
      %s185 = sld [smem:[#allocation5 + %s184]]
      %s186 = ssub.s32 %s182, %s185
      %p187 = scmp.eq.s32.totalorder %s186, 0
      %s189 = sadd.s32 %s188, 1
      %s190 = scalar_select %p187, %s188, %s189
      %p193 = pneg %p187
      %p194 = scmp.eq.s32.totalorder %s64, 11
      %p195 = por %p193, %p194
      %p196 = scmp.ne.s32.totalorder %s188, %s191
      %p197 = scmp.eq.s32.totalorder %s64, 0
      %p198 = por %p196, %p197
      %p199 = scmp.ne.s32.totalorder %s188, %s191
      %p200 = scmp.eq.s32.totalorder %s69, 11
      %p201 = por %p199, %p200
      %p202 = scmp.ne.s32.totalorder %s191, %s192
      %p203 = scmp.eq.s32.totalorder %s69, 0
      %p204 = por %p202, %p203
      %p205 = scmp.ne.s32.totalorder %s191, %s192
      %p206 = scmp.eq.s32.totalorder %s70, 11
      %p207 = por %p205, %p206
      %p209 = scmp.ne.s32.totalorder %s192, %s208
      %p210 = scmp.eq.s32.totalorder %s70, 0
      %p211 = por %p209, %p210
      %s212 = smul.u32 %s71, 6
      %s213 = sadd.s32 %s212, %s72
      %s214 = sld [smem:[#allocation5 + %s213]]
      %s215 = smul.u32 %s83, 6
      %s216 = sadd.s32 %s215, %s79
      %s217 = sld [smem:[#allocation5 + %s216]]
      %s218 = ssub.s32 %s214, %s217
      %p219 = scmp.eq.s32.totalorder %s218, 0
      %s221 = sadd.s32 %s220, 1
      %s222 = scalar_select %p219, %s220, %s221
      %p225 = pneg %p219
      %p226 = scmp.eq.s32.totalorder %s64, 11
      %p227 = por %p225, %p226
      %p228 = scmp.ne.s32.totalorder %s220, %s223
      %p229 = scmp.eq.s32.totalorder %s64, 0
      %p230 = por %p228, %p229
      %p231 = scmp.ne.s32.totalorder %s220, %s223
      %p232 = scmp.eq.s32.totalorder %s69, 11
      %p233 = por %p231, %p232
      %p234 = scmp.ne.s32.totalorder %s223, %s224
      %p235 = scmp.eq.s32.totalorder %s69, 0
      %p236 = por %p234, %p235
      %p237 = scmp.ne.s32.totalorder %s223, %s224
      %p238 = scmp.eq.s32.totalorder %s70, 11
      %p239 = por %p237, %p238
      %p241 = scmp.ne.s32.totalorder %s224, %s240
      %p242 = scmp.eq.s32.totalorder %s70, 0
      %p243 = por %p241, %p242
      %s245 = sadd.s32 %s244, 1
      %p248 = scmp.eq.s32.totalorder %s64, 11
      %p249 = scmp.ne.s32.totalorder %s244, %s246
      %p250 = scmp.eq.s32.totalorder %s64, 0
      %p251 = por %p249, %p250
      %p252 = scmp.ne.s32.totalorder %s244, %s246
      %p253 = scmp.eq.s32.totalorder %s69, 11
      %p254 = por %p252, %p253
      %p255 = scmp.ne.s32.totalorder %s246, %s247
      %p256 = scmp.eq.s32.totalorder %s69, 0
      %p257 = por %p255, %p256
      %p258 = scmp.ne.s32.totalorder %s246, %s247
      %p259 = scmp.eq.s32.totalorder %s70, 11
      %p260 = por %p258, %p259
      %p262 = scmp.ne.s32.totalorder %s247, %s261
      %p263 = scmp.eq.s32.totalorder %s70, 0
      %p264 = por %p262, %p263
      %s266 = sadd.s32 %s265, 1
      %p269 = scmp.eq.s32.totalorder %s64, 11
      %p270 = scmp.ne.s32.totalorder %s265, %s267
      %p271 = scmp.eq.s32.totalorder %s64, 0
      %p272 = por %p270, %p271
      %p273 = scmp.ne.s32.totalorder %s265, %s267
      %p274 = scmp.eq.s32.totalorder %s69, 11
      %p275 = por %p273, %p274
      %p276 = scmp.ne.s32.totalorder %s267, %s268
      %p277 = scmp.eq.s32.totalorder %s69, 0
      %p278 = por %p276, %p277
      %p279 = scmp.ne.s32.totalorder %s267, %s268
      %p280 = scmp.eq.s32.totalorder %s70, 11
      %p281 = por %p279, %p280
      %p283 = scmp.ne.s32.totalorder %s268, %s282
      %p284 = scmp.eq.s32.totalorder %s70, 0
      %p285 = por %p283, %p284
      %s287 = sadd.s32 %s286, 1
      %p290 = scmp.eq.s32.totalorder %s64, 11
      %p291 = scmp.ne.s32.totalorder %s286, %s288
      %p292 = scmp.eq.s32.totalorder %s64, 0
      %p293 = por %p291, %p292
      %p294 = scmp.ne.s32.totalorder %s286, %s288
      %p295 = scmp.eq.s32.totalorder %s69, 11
      %p296 = por %p294, %p295
      %p297 = scmp.ne.s32.totalorder %s288, %s289
      %p298 = scmp.eq.s32.totalorder %s69, 0
      %p299 = por %p297, %p298
      %p300 = scmp.ne.s32.totalorder %s288, %s289
      %p301 = scmp.eq.s32.totalorder %s70, 11
      %p302 = por %p300, %p301
      %p304 = scmp.ne.s32.totalorder %s289, %s303
      %p305 = scmp.eq.s32.totalorder %s70, 0
      %p306 = por %p304, %p305
      %s308 = sadd.s32 %s307, 1
      %p311 = scmp.eq.s32.totalorder %s64, 11
      %p312 = scmp.ne.s32.totalorder %s307, %s309
      %p313 = scmp.eq.s32.totalorder %s64, 0
      %p314 = por %p312, %p313
      %p315 = scmp.ne.s32.totalorder %s307, %s309
      %p316 = scmp.eq.s32.totalorder %s69, 11
      %p317 = por %p315, %p316
      %p318 = scmp.ne.s32.totalorder %s309, %s310
      %p319 = scmp.eq.s32.totalorder %s69, 0
      %p320 = por %p318, %p319
      %p321 = scmp.ne.s32.totalorder %s309, %s310
      %p322 = scmp.eq.s32.totalorder %s70, 11
      %p323 = por %p321, %p322
      %p325 = scmp.ne.s32.totalorder %s310, %s324
      %p326 = scmp.eq.s32.totalorder %s70, 0
      %p327 = por %p325, %p326
      %s329 = sadd.s32 %s328, 1
      %p332 = scmp.eq.s32.totalorder %s64, 11
      %p333 = scmp.ne.s32.totalorder %s328, %s330
      %p334 = scmp.eq.s32.totalorder %s64, 0
      %p335 = por %p333, %p334
      %p336 = scmp.ne.s32.totalorder %s328, %s330
      %p337 = scmp.eq.s32.totalorder %s69, 11
      %p338 = por %p336, %p337
      %p339 = scmp.ne.s32.totalorder %s330, %s331
      %p340 = scmp.eq.s32.totalorder %s69, 0
      %p341 = por %p339, %p340
      %p342 = scmp.ne.s32.totalorder %s330, %s331
      %p343 = scmp.eq.s32.totalorder %s70, 11
      %p344 = por %p342, %p343
      %p346 = scmp.ne.s32.totalorder %s331, %s345
      %p347 = scmp.eq.s32.totalorder %s70, 0
      %p348 = por %p346, %p347
      %s350 = sadd.s32 %s349, 1
      %p353 = scmp.eq.s32.totalorder %s64, 11
      %p354 = scmp.ne.s32.totalorder %s349, %s351
      %p355 = scmp.eq.s32.totalorder %s64, 0
      %p356 = por %p354, %p355
      %p357 = scmp.ne.s32.totalorder %s349, %s351
      %p358 = scmp.eq.s32.totalorder %s69, 11
      %p359 = por %p357, %p358
      %p360 = scmp.ne.s32.totalorder %s351, %s352
      %p361 = scmp.eq.s32.totalorder %s69, 0
      %p362 = por %p360, %p361
      %p363 = scmp.ne.s32.totalorder %s351, %s352
      %p364 = scmp.eq.s32.totalorder %s70, 11
      %p365 = por %p363, %p364
      %p367 = scmp.ne.s32.totalorder %s352, %s366
      %p368 = scmp.eq.s32.totalorder %s70, 0
      %p369 = por %p367, %p368
      %s371 = sadd.s32 %s370, 1
      %p374 = scmp.eq.s32.totalorder %s64, 11
      %p375 = scmp.ne.s32.totalorder %s370, %s372
      %p376 = scmp.eq.s32.totalorder %s64, 0
      %p377 = por %p375, %p376
      %p378 = scmp.ne.s32.totalorder %s370, %s372
      %p379 = scmp.eq.s32.totalorder %s69, 11
      %p380 = por %p378, %p379
      %p381 = scmp.ne.s32.totalorder %s372, %s373
      %p382 = scmp.eq.s32.totalorder %s69, 0
      %p383 = por %p381, %p382
      %p384 = scmp.ne.s32.totalorder %s372, %s373
      %p385 = scmp.eq.s32.totalorder %s70, 11
      %p386 = por %p384, %p385
      %p388 = scmp.ne.s32.totalorder %s373, %s387
      %p389 = scmp.eq.s32.totalorder %s70, 0
      %p390 = por %p388, %p389
      %s392 = sadd.s32 %s391, 1
      %p395 = scmp.eq.s32.totalorder %s64, 11
      %p396 = scmp.ne.s32.totalorder %s391, %s393
      %p397 = scmp.eq.s32.totalorder %s64, 0
      %p398 = por %p396, %p397
      %p399 = scmp.ne.s32.totalorder %s391, %s393
      %p400 = scmp.eq.s32.totalorder %s69, 11
      %p401 = por %p399, %p400
      %p402 = scmp.ne.s32.totalorder %s393, %s394
      %p403 = scmp.eq.s32.totalorder %s69, 0
      %p404 = por %p402, %p403
      %p405 = scmp.ne.s32.totalorder %s393, %s394
      %p406 = scmp.eq.s32.totalorder %s70, 11
      %p407 = por %p405, %p406
      %p409 = scmp.ne.s32.totalorder %s394, %s408
      %p410 = scmp.eq.s32.totalorder %s70, 0
      %p411 = por %p409, %p410
      %s413 = sadd.s32 %s412, 1
      %p416 = scmp.eq.s32.totalorder %s64, 11
      %p417 = scmp.ne.s32.totalorder %s412, %s414
      %p418 = scmp.eq.s32.totalorder %s64, 0
      %p419 = por %p417, %p418
      %p420 = scmp.ne.s32.totalorder %s412, %s414
      %p421 = scmp.eq.s32.totalorder %s69, 11
      %p422 = por %p420, %p421
      %p423 = scmp.ne.s32.totalorder %s414, %s415
      %p424 = scmp.eq.s32.totalorder %s69, 0
      %p425 = por %p423, %p424
      %p426 = scmp.ne.s32.totalorder %s414, %s415
      %p427 = scmp.eq.s32.totalorder %s70, 11
      %p428 = por %p426, %p427
      %p430 = scmp.ne.s32.totalorder %s415, %s429
      %p431 = scmp.eq.s32.totalorder %s70, 0
      %p432 = por %p430, %p431
      %s434 = sadd.s32 %s433, 1
      %p437 = scmp.eq.s32.totalorder %s64, 11
      %p438 = scmp.ne.s32.totalorder %s433, %s435
      %p439 = scmp.eq.s32.totalorder %s64, 0
      %p440 = por %p438, %p439
      %p441 = scmp.ne.s32.totalorder %s433, %s435
      %p442 = scmp.eq.s32.totalorder %s69, 11
      %p443 = por %p441, %p442
      %p444 = scmp.ne.s32.totalorder %s435, %s436
      %p445 = scmp.eq.s32.totalorder %s69, 0
      %p446 = por %p444, %p445
      %p447 = scmp.ne.s32.totalorder %s435, %s436
      %p448 = scmp.eq.s32.totalorder %s70, 11
      %p449 = por %p447, %p448
      %p451 = scmp.ne.s32.totalorder %s436, %s450
      %p452 = scmp.eq.s32.totalorder %s70, 0
      %p453 = por %p451, %p452
      %s455 = sadd.s32 %s454, 1
      %p458 = scmp.eq.s32.totalorder %s64, 11
      %p459 = scmp.ne.s32.totalorder %s454, %s456
      %p460 = scmp.eq.s32.totalorder %s64, 0
      %p461 = por %p459, %p460
      %p462 = scmp.ne.s32.totalorder %s454, %s456
      %p463 = scmp.eq.s32.totalorder %s69, 11
      %p464 = por %p462, %p463
      %p465 = scmp.ne.s32.totalorder %s456, %s457
      %p466 = scmp.eq.s32.totalorder %s69, 0
      %p467 = por %p465, %p466
      %p468 = scmp.ne.s32.totalorder %s456, %s457
      %p469 = scmp.eq.s32.totalorder %s70, 11
      %p470 = por %p468, %p469
      %p472 = scmp.ne.s32.totalorder %s457, %s471
      %p473 = scmp.eq.s32.totalorder %s70, 0
      %p474 = por %p472, %p473
      %s475 = smul.u32 %s71, 6
      %s476 = sadd.s32 %s475, %s72
      %s477 = sld [smem:[#allocation4 + %s476]]
      %s478 = smul.u32 %s83, 6
      %s479 = sadd.s32 %s478, %s79
      %s480 = sld [smem:[#allocation4 + %s479]]
      %s481 = ssub.s32 %s477, %s480
      %p482 = scmp.eq.s32.totalorder %s481, 0
      %s484 = sadd.s32 %s483, 1
      %s485 = scalar_select %p482, %s483, %s484
      %p488 = pneg %p482
      %p489 = scmp.eq.s32.totalorder %s64, 11
      %p490 = por %p488, %p489
      %p491 = scmp.ne.s32.totalorder %s483, %s486
      %p492 = scmp.eq.s32.totalorder %s64, 0
      %p493 = por %p491, %p492
      %p494 = scmp.ne.s32.totalorder %s483, %s486
      %p495 = scmp.eq.s32.totalorder %s69, 11
      %p496 = por %p494, %p495
      %p497 = scmp.ne.s32.totalorder %s486, %s487
      %p498 = scmp.eq.s32.totalorder %s69, 0
      %p499 = por %p497, %p498
      %p500 = scmp.ne.s32.totalorder %s486, %s487
      %p501 = scmp.eq.s32.totalorder %s70, 11
      %p502 = por %p500, %p501
      %p504 = scmp.ne.s32.totalorder %s487, %s503
      %p505 = scmp.eq.s32.totalorder %s70, 0
      %p506 = por %p504, %p505
      %s507 = smul.u32 %s71, 6
      %s508 = sadd.s32 %s507, %s72
      %s509 = sld [smem:[#allocation5 + %s508]]
      %s510 = smul.u32 %s83, 6
      %s511 = sadd.s32 %s510, %s79
      %s512 = sld [smem:[#allocation5 + %s511]]
      %s513 = ssub.s32 %s509, %s512
      %p514 = scmp.eq.s32.totalorder %s513, 0
      %s516 = sadd.s32 %s515, 1
      %s517 = scalar_select %p514, %s515, %s516
      %p520 = pneg %p514
      %p521 = scmp.eq.s32.totalorder %s64, 11
      %p522 = por %p520, %p521
      %p523 = scmp.ne.s32.totalorder %s515, %s518
      %p524 = scmp.eq.s32.totalorder %s64, 0
      %p525 = por %p523, %p524
      %p526 = scmp.ne.s32.totalorder %s515, %s518
      %p527 = scmp.eq.s32.totalorder %s69, 11
      %p528 = por %p526, %p527
      %p529 = scmp.ne.s32.totalorder %s518, %s519
      %p530 = scmp.eq.s32.totalorder %s69, 0
      %p531 = por %p529, %p530
      %p532 = scmp.ne.s32.totalorder %s518, %s519
      %p533 = scmp.eq.s32.totalorder %s70, 11
      %p534 = por %p532, %p533
      %p536 = scmp.ne.s32.totalorder %s519, %s535
      %p537 = scmp.eq.s32.totalorder %s70, 0
      %p538 = por %p536, %p537
      %p539 = scmp.le.s32.totalorder 1, %s64
      %p540 = scmp.lt.s32.totalorder %s64, 13
      %p541 = pnand %p539, %p540
      %p542 = pneg %p541
      // Predicated region
      $region9: #{tpu_custom_call.1} parent=5 // pred_check
        _
      $region10: #{tpu_custom_call.1} parent=5 // pred_check_branch
        %544 = sbr.rel (%p541) target = $region12
      $region11: #{tpu_custom_call.1} parent=5 // pred_region
        %s545 = ssub.s32 %s64, 1
        // Predicated region
        $region13: #{tpu_custom_call.1} parent=11 // pred_check
          %p546 = pneg %p257
        $region14: #{tpu_custom_call.1} parent=11 // pred_check_branch
          %548 = sbr.rel (%p546) target = $region16
        $region15: #{tpu_custom_call.1} parent=11 // pred_region
          %s550 = ssub.s32 2048, 2048
          %551 = vsyncadd [#allocation14], %s550
          %s552 = sshll.u32 [#allocation13], 4
          %s553 = int_to_ptr.vmem [resolvable:$true] %s552
          %558 = dma.hbm_to_vmem [thread:$0]  %s10, 2048, %s553, [#allocation14], 128, 128, 8
        $region16: #{tpu_custom_call.1} parent=11 // pred_fallthru
          _
        // Predicated region
        $region17: #{tpu_custom_call.1} parent=11 // pred_check
          %p559 = pneg %p278
        $region18: #{tpu_custom_call.1} parent=11 // pred_check_branch
          %561 = sbr.rel (%p559) target = $region20
        $region19: #{tpu_custom_call.1} parent=11 // pred_region
          _
        $region20: #{tpu_custom_call.1} parent=11 // pred_fallthru
          _
        // Predicated region
        $region21: #{tpu_custom_call.1} parent=11 // pred_check
          %p562 = pneg %p299
        $region22: #{tpu_custom_call.1} parent=11 // pred_check_branch
          %564 = sbr.rel (%p562) target = $region24
        $region23: #{tpu_custom_call.1} parent=11 // pred_region
          %s566 = ssub.s32 2048, 2048
          %567 = vsyncadd [#allocation14], %s566
          %s568 = sshll.u32 [#allocation15], 4
          %s569 = int_to_ptr.vmem [resolvable:$true] %s568
          %574 = dma.hbm_to_vmem [thread:$0]  %s12, 2048, %s569, [#allocation14], 64, 64, 4
        $region24: #{tpu_custom_call.1} parent=11 // pred_fallthru
          _
        // Predicated region
        $region25: #{tpu_custom_call.1} parent=11 // pred_check
          %p575 = pneg %p320
        $region26: #{tpu_custom_call.1} parent=11 // pred_check_branch
          %577 = sbr.rel (%p575) target = $region28
        $region27: #{tpu_custom_call.1} parent=11 // pred_region
          _
        $region28: #{tpu_custom_call.1} parent=11 // pred_fallthru
          _
        // Predicated region
        $region29: #{tpu_custom_call.1} parent=11 // pred_check
          %p578 = pneg %p341
        $region30: #{tpu_custom_call.1} parent=11 // pred_check_branch
          %580 = sbr.rel (%p578) target = $region32
        $region31: #{tpu_custom_call.1} parent=11 // pred_region
          _
        $region32: #{tpu_custom_call.1} parent=11 // pred_fallthru
          _
        // Predicated region
        $region33: #{tpu_custom_call.1} parent=11 // pred_check
          %p581 = pneg %p362
        $region34: #{tpu_custom_call.1} parent=11 // pred_check_branch
          %583 = sbr.rel (%p581) target = $region36
        $region35: #{tpu_custom_call.1} parent=11 // pred_region
          _
        $region36: #{tpu_custom_call.1} parent=11 // pred_fallthru
          _
        // Predicated region
        $region37: #{tpu_custom_call.1} parent=11 // pred_check
          %p584 = pneg %p383
        $region38: #{tpu_custom_call.1} parent=11 // pred_check_branch
          %586 = sbr.rel (%p584) target = $region40
        $region39: #{tpu_custom_call.1} parent=11 // pred_region
          _
        $region40: #{tpu_custom_call.1} parent=11 // pred_fallthru
          _
        // Predicated region
        $region41: #{tpu_custom_call.1} parent=11 // pred_check
          %p587 = pneg %p404
        $region42: #{tpu_custom_call.1} parent=11 // pred_check_branch
          %589 = sbr.rel (%p587) target = $region44
        $region43: #{tpu_custom_call.1} parent=11 // pred_region
          _
        $region44: #{tpu_custom_call.1} parent=11 // pred_fallthru
          _
        // Predicated region
        $region45: #{tpu_custom_call.1} parent=11 // pred_check
          %p590 = pneg %p425
        $region46: #{tpu_custom_call.1} parent=11 // pred_check_branch
          %592 = sbr.rel (%p590) target = $region48
        $region47: #{tpu_custom_call.1} parent=11 // pred_region
          %s594 = ssub.s32 1024, 1024
          %595 = vsyncadd [#allocation17], %s594
          %s596 = sshll.u32 [#allocation16], 4
          %s597 = int_to_ptr.vmem [resolvable:$true] %s596
          %602 = dma.hbm_to_vmem [thread:$0]  %s18, 1024, %s597, [#allocation17], 64, 64, 4
        $region48: #{tpu_custom_call.1} parent=11 // pred_fallthru
          _
        // Predicated region
        $region49: #{tpu_custom_call.1} parent=11 // pred_check
          %p603 = pneg %p446
        $region50: #{tpu_custom_call.1} parent=11 // pred_check_branch
          %605 = sbr.rel (%p603) target = $region52
        $region51: #{tpu_custom_call.1} parent=11 // pred_region
          %s607 = ssub.s32 1024, 1024
          %608 = vsyncadd [#allocation17], %s607
          %s609 = sshll.u32 [#allocation18], 4
          %s610 = int_to_ptr.vmem [resolvable:$true] %s609
          %615 = dma.hbm_to_vmem [thread:$0]  %s19, 1024, %s610, [#allocation17], 64, 64, 4
        $region52: #{tpu_custom_call.1} parent=11 // pred_fallthru
          _
        // Predicated region
        $region53: #{tpu_custom_call.1} parent=11 // pred_check
          %p616 = pneg %p467
        $region54: #{tpu_custom_call.1} parent=11 // pred_check_branch
          %618 = sbr.rel (%p616) target = $region56
        $region55: #{tpu_custom_call.1} parent=11 // pred_region
          _
        $region56: #{tpu_custom_call.1} parent=11 // pred_fallthru
          _
      $region12: #{tpu_custom_call.1} parent=5 // pred_fallthru
        _
      %p619 = scmp.lt.s32.totalorder %s64, 12
      // Predicated region
      $region57: #{tpu_custom_call.1} parent=5 // pred_check
        %p620 = pneg %p619
      $region58: #{tpu_custom_call.1} parent=5 // pred_check_branch
        %622 = sbr.rel (%p620) target = $region60
      $region59: #{tpu_custom_call.1} parent=5 // pred_region
        // Predicated region
        $region61: #{tpu_custom_call.1} parent=59 // pred_check
          %p623 = pneg %p102
        $region62: #{tpu_custom_call.1} parent=59 // pred_check_branch
          %625 = sbr.rel (%p623) target = $region64
        $region63: #{tpu_custom_call.1} parent=59 // pred_region
          %s626 = smul.u32 %s71, 6
          %s627 = sadd.s32 %s626, %s72
          %s628 = sld [smem:[#allocation4 + %s627]]
          %s629 = smul.u32 16, %s628
          %p630 = scmp.lt.s32.totalorder %s629, 47
          %s631 = scalar_select %p630, %s629, 47
          %s632 = smul.addr %s631, 8
          %s633 = scalar_lea.vmem %s5, %s632
          %s634 = smul.u32 %s71, 6
          %s635 = sadd.s32 %s634, %s72
          %s636 = sld [smem:[#allocation4 + %s635]]
          %s637 = smul.u32 16, %s636
        $region64: #{tpu_custom_call.1} parent=59 // pred_fallthru
          _
        // Predicated region
        $region65: #{tpu_custom_call.1} parent=59 // pred_check
          %p638 = pneg %p134
        $region66: #{tpu_custom_call.1} parent=59 // pred_check_branch
          %640 = sbr.rel (%p638) target = $region68
        $region67: #{tpu_custom_call.1} parent=59 // pred_region
          %s641 = smul.u32 %s71, 6
          %s642 = sadd.s32 %s641, %s72
          %s643 = sld [smem:[#allocation4 + %s642]]
          %s644 = smul.u32 16, %s643
          %p645 = scmp.lt.s32.totalorder %s644, 47
          %s646 = scalar_select %p645, %s644, 47
          %s647 = smul.addr %s646, 8
          %s648 = scalar_lea.vmem %s6, %s647
          %s649 = smul.u32 %s71, 6
          %s650 = sadd.s32 %s649, %s72
          %s651 = sld [smem:[#allocation4 + %s650]]
          %s652 = smul.u32 16, %s651
        $region68: #{tpu_custom_call.1} parent=59 // pred_fallthru
          _
        // Predicated region
        $region69: #{tpu_custom_call.1} parent=59 // pred_check
          %p653 = pneg %p166
        $region70: #{tpu_custom_call.1} parent=59 // pred_check_branch
          %655 = sbr.rel (%p653) target = $region72
        $region71: #{tpu_custom_call.1} parent=59 // pred_region
          %s656 = smul.u32 %s71, 6
          %s657 = sadd.s32 %s656, %s72
          %s658 = sld [smem:[#allocation5 + %s657]]
          %s659 = smul.u32 64, %s658
          %p660 = scmp.lt.s32.totalorder %s659, 447
          %s661 = scalar_select %p660, %s659, 447
          %s662 = smul.addr %s661, 8
          %s663 = scalar_lea.vmem %s7, %s662
          %s664 = smul.u32 %s71, 6
          %s665 = sadd.s32 %s664, %s72
          %s666 = sld [smem:[#allocation5 + %s665]]
          %s667 = smul.u32 64, %s666
        $region72: #{tpu_custom_call.1} parent=59 // pred_fallthru
          _
        // Predicated region
        $region73: #{tpu_custom_call.1} parent=59 // pred_check
          %p668 = pneg %p198
        $region74: #{tpu_custom_call.1} parent=59 // pred_check_branch
          %670 = sbr.rel (%p668) target = $region76
        $region75: #{tpu_custom_call.1} parent=59 // pred_region
          %s671 = sand.u32 %s188, 1
          %s672 = scalar_lea.sflag [#allocation11], %s671
          %s673 = sand.u32 %s188, 1
          %s674 = smul.addr %s673, 4
          %s675 = scalar_lea.vmem [#allocation10], %s674
          %s676 = smul.u32 %s71, 6
          %s677 = sadd.s32 %s676, %s72
          %s678 = sld [smem:[#allocation5 + %s677]]
          %s679 = smul.u32 4, %s678
          %s681 = ssub.s32 64, 64
          %682 = vsyncadd %s672, %s681
          %s683 = smul.addr %s679, 16
          %s684 = scalar_lea.hbm %s8, %s683
          %s686 = sshll.u32 %s675, 4
          %s687 = int_to_ptr.vmem [resolvable:$true] %s686
          %689 = dma.hbm_to_vmem [thread:$0]  %s684, 64, %s687, %s672
        $region76: #{tpu_custom_call.1} parent=59 // pred_fallthru
          _
        // Predicated region
        $region77: #{tpu_custom_call.1} parent=59 // pred_check
          %p690 = pneg %p230
        $region78: #{tpu_custom_call.1} parent=59 // pred_check_branch
          %692 = sbr.rel (%p690) target = $region80
        $region79: #{tpu_custom_call.1} parent=59 // pred_region
          %s693 = smul.u32 %s71, 6
          %s694 = sadd.s32 %s693, %s72
          %s695 = sld [smem:[#allocation5 + %s694]]
          %s696 = smul.u32 64, %s695
          %p697 = scmp.lt.s32.totalorder %s696, 447
          %s698 = scalar_select %p697, %s696, 447
          %s699 = smul.addr %s698, 8
          %s700 = scalar_lea.vmem %s9, %s699
          %s701 = smul.u32 %s71, 6
          %s702 = sadd.s32 %s701, %s72
          %s703 = sld [smem:[#allocation5 + %s702]]
          %s704 = smul.u32 64, %s703
        $region80: #{tpu_custom_call.1} parent=59 // pred_fallthru
          _
      $region60: #{tpu_custom_call.1} parent=5 // pred_fallthru
        _
      %p705 = scmp.le.s32.totalorder 1, %s64
      %p706 = scmp.lt.s32.totalorder %s64, 13
      %p707 = pnand %p705, %p706
      %p708 = pneg %p707
      // Predicated region
      $region81: #{tpu_custom_call.1} parent=5 // pred_check
        _
      $region82: #{tpu_custom_call.1} parent=5 // pred_check_branch
        %710 = sbr.rel (%p707) target = $region84
      $region83: #{tpu_custom_call.1} parent=5 // pred_region
        %s711 = ssub.s32 %s64, 1
        %s712 = sand.u32 %s191, 1
        %s713 = scalar_lea.sflag [#allocation11], %s712
        %s714 = sand.u32 %s191, 1
        %s715 = smul.addr %s714, 4
        %s716 = scalar_lea.vmem [#allocation10], %s715
        // Predicated region
        $region85: #{tpu_custom_call.1} parent=83 // pred_check
          %p717 = pneg %p204
        $region86: #{tpu_custom_call.1} parent=83 // pred_check_branch
          %719 = sbr.rel (%p717) target = $region88
        $region87: #{tpu_custom_call.1} parent=83 // pred_region
          %720 = dma.done %s713, 64
        $region88: #{tpu_custom_call.1} parent=83 // pred_fallthru
          _
        // Predicated region
        $region89: #{tpu_custom_call.1} parent=83 // pred_check
          %p721 = pneg %p257
        $region90: #{tpu_custom_call.1} parent=83 // pred_check_branch
          %723 = sbr.rel (%p721) target = $region92
        $region91: #{tpu_custom_call.1} parent=83 // pred_region
          %724 = dma.done [#allocation14], 2048
        $region92: #{tpu_custom_call.1} parent=83 // pred_fallthru
          _
        // Predicated region
        $region93: #{tpu_custom_call.1} parent=83 // pred_check
          %p725 = pneg %p299
        $region94: #{tpu_custom_call.1} parent=83 // pred_check_branch
          %727 = sbr.rel (%p725) target = $region96
        $region95: #{tpu_custom_call.1} parent=83 // pred_region
          %728 = dma.done [#allocation14], 2048
        $region96: #{tpu_custom_call.1} parent=83 // pred_fallthru
          _
        // Predicated region
        $region97: #{tpu_custom_call.1} parent=83 // pred_check
          %p729 = pneg %p425
        $region98: #{tpu_custom_call.1} parent=83 // pred_check_branch
          %731 = sbr.rel (%p729) target = $region100
        $region99: #{tpu_custom_call.1} parent=83 // pred_region
          %732 = dma.done [#allocation17], 1024
        $region100: #{tpu_custom_call.1} parent=83 // pred_fallthru
          _
        // Predicated region
        $region101: #{tpu_custom_call.1} parent=83 // pred_check
          %p733 = pneg %p446
        $region102: #{tpu_custom_call.1} parent=83 // pred_check_branch
          %735 = sbr.rel (%p733) target = $region104
        $region103: #{tpu_custom_call.1} parent=83 // pred_region
          %736 = dma.done [#allocation17], 1024
        $region104: #{tpu_custom_call.1} parent=83 // pred_fallthru
          _
        %s737 = smul.u32 %s73, 6
        %s738 = sadd.s32 %s737, %s74
        %s739 = sld [smem:[#allocation4 + %s738]]
        %s740 = smul.u32 16, %s739
        %p741 = scmp.lt.s32.totalorder %s740, 47
        %s742 = scalar_select %p741, %s740, 47
        %s743 = smul.addr %s742, 8
        %s744 = scalar_lea.vmem %s5, %s743
        %p745 = pneg %p108
        %p746 = pneg %p105
        %s747 = smul.u32 %s73, 6
        %s748 = sadd.s32 %s747, %s74
        %s749 = sld [smem:[#allocation4 + %s748]]
        %s750 = smul.u32 16, %s749
        %p751 = scmp.lt.s32.totalorder %s750, 47
        %s752 = scalar_select %p751, %s750, 47
        %s753 = smul.addr %s752, 8
        %s754 = scalar_lea.vmem %s6, %s753
        %p755 = pneg %p140
        %p756 = pneg %p137
        %s757 = smul.u32 %s73, 6
        %s758 = sadd.s32 %s757, %s74
        %s759 = sld [smem:[#allocation5 + %s758]]
        %s760 = smul.u32 64, %s759
        %p761 = scmp.lt.s32.totalorder %s760, 447
        %s762 = scalar_select %p761, %s760, 447
        %s763 = smul.addr %s762, 8
        %s764 = scalar_lea.vmem %s7, %s763
        %p765 = pneg %p172
        %p766 = pneg %p169
        %s767 = sand.u32 %s191, 1
        %s768 = scalar_lea.sflag [#allocation11], %s767
        %s769 = sand.u32 %s191, 1
        %s770 = smul.addr %s769, 4
        %s771 = scalar_lea.vmem [#allocation10], %s770
        %p772 = pneg %p204
        %p773 = pneg %p201
        %s774 = smul.u32 %s73, 6
        %s775 = sadd.s32 %s774, %s74
        %s776 = sld [smem:[#allocation5 + %s775]]
        %s777 = smul.u32 64, %s776
        %p778 = scmp.lt.s32.totalorder %s777, 447
        %s779 = scalar_select %p778, %s777, 447
        %s780 = smul.addr %s779, 8
        %s781 = scalar_lea.vmem %s9, %s780
        %p782 = pneg %p236
        %p783 = pneg %p233
        %p784 = pneg %p257
        %p785 = pneg %p254
        %p786 = pneg %p278
        %p787 = pneg %p275
        %p788 = pneg %p299
        %p789 = pneg %p296
        %p790 = pneg %p320
        %p791 = pneg %p317
        %p792 = pneg %p341
        %p793 = pneg %p338
        %p794 = pneg %p362
        %p795 = pneg %p359
        %p796 = pneg %p383
        %p797 = pneg %p380
        %p798 = pneg %p404
        %p799 = pneg %p401
        %p800 = pneg %p425
        %p801 = pneg %p422
        %p802 = pneg %p446
        %p803 = pneg %p443
        %p804 = pneg %p467
        %p805 = pneg %p464
        %p806 = pneg %p499
        %p807 = pneg %p496
        %s808 = sand.u32 %s486, 1
        %s809 = scalar_lea.sflag [#allocation12], %s808
        %s810 = sand.u32 %s486, 1
        %s811 = smul.addr %s810, 128
        %s812 = scalar_lea.vmem [#allocation19], %s811
        %p813 = pneg %p531
        %p814 = pneg %p528
        %s815 = sand.u32 %s518, 1
        %s816 = scalar_lea.sflag [#allocation21], %s815
        %s817 = sand.u32 %s518, 1
        %s818 = smul.addr %s817, 4
        %s819 = scalar_lea.vmem [#allocation20], %s818
        %s820 = smul.u32 %s73, 6
        %s821 = sadd.s32 %s820, %s74
        %s822 = sld [smem:[#allocation4 + %s821]]
        %s823 = smul.u32 16, %s822
        %p824 = scmp.lt.s32.totalorder %s823, 47
        %s825 = scalar_select %p824, %s823, 47
        %s826 = smul.addr %s825, 8
        %s827 = scalar_lea.vmem %s5, %s826
        %s828 = smul.u32 %s73, 6
        %s829 = sadd.s32 %s828, %s74
        %s830 = sld [smem:[#allocation4 + %s829]]
        %s831 = smul.u32 16, %s830
        %s832 = smul.u32 %s73, 6
        %s833 = sadd.s32 %s832, %s74
        %s834 = sld [smem:[#allocation4 + %s833]]
        %s835 = smul.u32 16, %s834
        %p836 = scmp.lt.s32.totalorder %s835, 47
        %s837 = scalar_select %p836, %s835, 47
        %s838 = smul.addr %s837, 8
        %s839 = scalar_lea.vmem %s6, %s838
        %s840 = smul.u32 %s73, 6
        %s841 = sadd.s32 %s840, %s74
        %s842 = sld [smem:[#allocation4 + %s841]]
        %s843 = smul.u32 16, %s842
        %s844 = smul.u32 %s73, 6
        %s845 = sadd.s32 %s844, %s74
        %s846 = sld [smem:[#allocation5 + %s845]]
        %s847 = smul.u32 64, %s846
        %p848 = scmp.lt.s32.totalorder %s847, 447
        %s849 = scalar_select %p848, %s847, 447
        %s850 = smul.addr %s849, 8
        %s851 = scalar_lea.vmem %s7, %s850
        %s852 = smul.u32 %s73, 6
        %s853 = sadd.s32 %s852, %s74
        %s854 = sld [smem:[#allocation5 + %s853]]
        %s855 = smul.u32 64, %s854
        %s856 = smul.u32 %s73, 6
        %s857 = sadd.s32 %s856, %s74
        %s858 = sld [smem:[#allocation5 + %s857]]
        %s859 = smul.u32 4, %s858
        %s860 = smul.u32 %s73, 6
        %s861 = sadd.s32 %s860, %s74
        %s862 = sld [smem:[#allocation5 + %s861]]
        %s863 = smul.u32 64, %s862
        %p864 = scmp.lt.s32.totalorder %s863, 447
        %s865 = scalar_select %p864, %s863, 447
        %s866 = smul.addr %s865, 8
        %s867 = scalar_lea.vmem %s9, %s866
        %s868 = smul.u32 %s73, 6
        %s869 = sadd.s32 %s868, %s74
        %s870 = sld [smem:[#allocation5 + %s869]]
        %s871 = smul.u32 64, %s870
        %s872 = smul.u32 %s73, 6
        %s873 = sadd.s32 %s872, %s74
        %s874 = sld [smem:[#allocation4 + %s873]]
        %s875 = smul.u32 16, %s874
        %s876 = smul.u32 %s73, 6
        %s877 = sadd.s32 %s876, %s74
        %s878 = sld [smem:[#allocation5 + %s877]]
        %s880 = smul.u32 %s73, 6
        %s881 = sadd.s32 %s880, %s74
        %s882 = sld [smem:[#allocation6 + %s881]]
        %p883 = scmp.eq.s32.totalorder %s882, 1
        // Predicated region
        $region105: #{tpu_custom_call.1} parent=83 // pred_check
          %p884 = pneg %p883
        $region106: #{tpu_custom_call.1} parent=83 // pred_check_branch
          %886 = sbr.rel (%p884) target = $region108
        $region107: #{tpu_custom_call.1} parent=83 // pred_region
          %887 = vst [vmem:[#allocation2] sm:$0xff] 0.0
          %888 = vst [vmem:[#allocation2 + $0x8] sm:$0xff] 0.0
          %889 = vst [vmem:[#allocation2 + $0x10] sm:$0xff] 0.0
          %890 = vst [vmem:[#allocation2 + $0x18] sm:$0xff] 0.0
          %891 = vst [vmem:[#allocation2 + $0x20] sm:$0xff] 0.0
          %892 = vst [vmem:[#allocation2 + $0x28] sm:$0xff] 0.0
          %893 = vst [vmem:[#allocation2 + $0x30] sm:$0xff] 0.0
          %894 = vst [vmem:[#allocation2 + $0x38] sm:$0xff] 0.0
          %895 = vst [vmem:[#allocation2 + $0x40] sm:$0xff] 0.0
          %896 = vst [vmem:[#allocation2 + $0x48] sm:$0xff] 0.0
          %897 = vst [vmem:[#allocation2 + $0x50] sm:$0xff] 0.0
          %898 = vst [vmem:[#allocation2 + $0x58] sm:$0xff] 0.0
          %899 = vst [vmem:[#allocation2 + $0x60] sm:$0xff] 0.0
          %900 = vst [vmem:[#allocation2 + $0x68] sm:$0xff] 0.0
          %901 = vst [vmem:[#allocation2 + $0x70] sm:$0xff] 0.0
          %902 = vst [vmem:[#allocation2 + $0x78] sm:$0xff] 0.0
        $region108: #{tpu_custom_call.1} parent=83 // pred_fallthru
          _
        %s903 = sld [smem:[#allocation8 + %s881]]
        %p904 = scmp.eq.s32.totalorder %s903, 1
        // Predicated region
        $region109: #{tpu_custom_call.1} parent=83 // pred_check
          %p905 = pneg %p904
        $region110: #{tpu_custom_call.1} parent=83 // pred_check_branch
          %907 = sbr.rel (%p905) target = $region112
        $region111: #{tpu_custom_call.1} parent=83 // pred_region
          %v908 = vld [vmem:[%s851] sm:$0xff]
          %v909 = vld [vmem:[%s851 + $0x8] sm:$0xff]
          %v910 = vld [vmem:[%s851 + $0x10] sm:$0xff]
          %v911 = vld [vmem:[%s851 + $0x18] sm:$0xff]
          %v912 = vld [vmem:[%s851 + $0x20] sm:$0xff]
          %v913 = vld [vmem:[%s851 + $0x28] sm:$0xff]
          %v914 = vld [vmem:[%s851 + $0x30] sm:$0xff]
          %v915 = vld [vmem:[%s851 + $0x38] sm:$0xff]
          %v916 = vld [vmem:[%s851 + $0x40] sm:$0xff]
          %v917 = vld [vmem:[%s851 + $0x48] sm:$0xff]
          %v918 = vld [vmem:[%s851 + $0x50] sm:$0xff]
          %v919 = vld [vmem:[%s851 + $0x58] sm:$0xff]
          %v920 = vld [vmem:[%s851 + $0x60] sm:$0xff]
          %v921 = vld [vmem:[%s851 + $0x68] sm:$0xff]
          %v922 = vld [vmem:[%s851 + $0x70] sm:$0xff]
          %v923 = vld [vmem:[%s851 + $0x78] sm:$0xff]
          %v924 = vld [vmem:[%s851 + $0x80] sm:$0xff]
          %v925 = vld [vmem:[%s851 + $0x88] sm:$0xff]
          %v926 = vld [vmem:[%s851 + $0x90] sm:$0xff]
          %v927 = vld [vmem:[%s851 + $0x98] sm:$0xff]
          %v928 = vld [vmem:[%s851 + $0xa0] sm:$0xff]
          %v929 = vld [vmem:[%s851 + $0xa8] sm:$0xff]
          %v930 = vld [vmem:[%s851 + $0xb0] sm:$0xff]
          %v931 = vld [vmem:[%s851 + $0xb8] sm:$0xff]
          %v932 = vld [vmem:[%s851 + $0xc0] sm:$0xff]
          %v933 = vld [vmem:[%s851 + $0xc8] sm:$0xff]
          %v934 = vld [vmem:[%s851 + $0xd0] sm:$0xff]
          %v935 = vld [vmem:[%s851 + $0xd8] sm:$0xff]
          %v936 = vld [vmem:[%s851 + $0xe0] sm:$0xff]
          %v937 = vld [vmem:[%s851 + $0xe8] sm:$0xff]
          %v938 = vld [vmem:[%s851 + $0xf0] sm:$0xff]
          %v939 = vld [vmem:[%s851 + $0xf8] sm:$0xff]
          %v940 = vld [vmem:[%s851 + $0x100] sm:$0xff]
          %v941 = vld [vmem:[%s851 + $0x108] sm:$0xff]
          %v942 = vld [vmem:[%s851 + $0x110] sm:$0xff]
          %v943 = vld [vmem:[%s851 + $0x118] sm:$0xff]
          %v944 = vld [vmem:[%s851 + $0x120] sm:$0xff]
          %v945 = vld [vmem:[%s851 + $0x128] sm:$0xff]
          %v946 = vld [vmem:[%s851 + $0x130] sm:$0xff]
          %v947 = vld [vmem:[%s851 + $0x138] sm:$0xff]
          %v948 = vld [vmem:[%s851 + $0x140] sm:$0xff]
          %v949 = vld [vmem:[%s851 + $0x148] sm:$0xff]
          %v950 = vld [vmem:[%s851 + $0x150] sm:$0xff]
          %v951 = vld [vmem:[%s851 + $0x158] sm:$0xff]
          %v952 = vld [vmem:[%s851 + $0x160] sm:$0xff]
          %v953 = vld [vmem:[%s851 + $0x168] sm:$0xff]
          %v954 = vld [vmem:[%s851 + $0x170] sm:$0xff]
          %v955 = vld [vmem:[%s851 + $0x178] sm:$0xff]
          %v956 = vld [vmem:[%s851 + $0x180] sm:$0xff]
          %v957 = vld [vmem:[%s851 + $0x188] sm:$0xff]
          %v958 = vld [vmem:[%s851 + $0x190] sm:$0xff]
          %v959 = vld [vmem:[%s851 + $0x198] sm:$0xff]
          %v960 = vld [vmem:[%s851 + $0x1a0] sm:$0xff]
          %v961 = vld [vmem:[%s851 + $0x1a8] sm:$0xff]
          %v962 = vld [vmem:[%s851 + $0x1b0] sm:$0xff]
          %v963 = vld [vmem:[%s851 + $0x1b8] sm:$0xff]
          %v964 = vld [vmem:[%s851 + $0x1c0] sm:$0xff]
          %v965 = vld [vmem:[%s851 + $0x1c8] sm:$0xff]
          %v966 = vld [vmem:[%s851 + $0x1d0] sm:$0xff]
          %v967 = vld [vmem:[%s851 + $0x1d8] sm:$0xff]
          %v968 = vld [vmem:[%s851 + $0x1e0] sm:$0xff]
          %v969 = vld [vmem:[%s851 + $0x1e8] sm:$0xff]
          %v970 = vld [vmem:[%s851 + $0x1f0] sm:$0xff]
          %v971 = vld [vmem:[%s851 + $0x1f8] sm:$0xff]
          %v972 = vld [vmem:[%s827] sm:$0xff]
          %v973 = vld [vmem:[%s827 + $0x8] sm:$0xff]
          %v974 = vld [vmem:[%s827 + $0x10] sm:$0xff]
          %v975 = vld [vmem:[%s827 + $0x18] sm:$0xff]
          %v976 = vld [vmem:[%s827 + $0x20] sm:$0xff]
          %v977 = vld [vmem:[%s827 + $0x28] sm:$0xff]
          %v978 = vld [vmem:[%s827 + $0x30] sm:$0xff]
          %v979 = vld [vmem:[%s827 + $0x38] sm:$0xff]
          %v980 = vld [vmem:[%s827 + $0x40] sm:$0xff]
          %v981 = vld [vmem:[%s827 + $0x48] sm:$0xff]
          %v982 = vld [vmem:[%s827 + $0x50] sm:$0xff]
          %v983 = vld [vmem:[%s827 + $0x58] sm:$0xff]
          %v984 = vld [vmem:[%s827 + $0x60] sm:$0xff]
          %v985 = vld [vmem:[%s827 + $0x68] sm:$0xff]
          %v986 = vld [vmem:[%s827 + $0x70] sm:$0xff]
          %v987 = vld [vmem:[%s827 + $0x78] sm:$0xff]
          %v988 = vld [vmem:[%s716] sm:$0xf]
          %v989 = vld [vmem:[%s867] sm:$0xff]
          %v990 = vld [vmem:[%s867 + $0x8] sm:$0xff]
          %v991 = vld [vmem:[%s867 + $0x10] sm:$0xff]
          %v992 = vld [vmem:[%s867 + $0x18] sm:$0xff]
          %v993 = vld [vmem:[%s867 + $0x20] sm:$0xff]
          %v994 = vld [vmem:[%s867 + $0x28] sm:$0xff]
          %v995 = vld [vmem:[%s867 + $0x30] sm:$0xff]
          %v996 = vld [vmem:[%s867 + $0x38] sm:$0xff]
          %v997 = vld [vmem:[%s867 + $0x40] sm:$0xff]
          %v998 = vld [vmem:[%s867 + $0x48] sm:$0xff]
          %v999 = vld [vmem:[%s867 + $0x50] sm:$0xff]
          %v1000 = vld [vmem:[%s867 + $0x58] sm:$0xff]
          %v1001 = vld [vmem:[%s867 + $0x60] sm:$0xff]
          %v1002 = vld [vmem:[%s867 + $0x68] sm:$0xff]
          %v1003 = vld [vmem:[%s867 + $0x70] sm:$0xff]
          %v1004 = vld [vmem:[%s867 + $0x78] sm:$0xff]
          %v1005 = vld [vmem:[%s867 + $0x80] sm:$0xff]
          %v1006 = vld [vmem:[%s867 + $0x88] sm:$0xff]
          %v1007 = vld [vmem:[%s867 + $0x90] sm:$0xff]
          %v1008 = vld [vmem:[%s867 + $0x98] sm:$0xff]
          %v1009 = vld [vmem:[%s867 + $0xa0] sm:$0xff]
          %v1010 = vld [vmem:[%s867 + $0xa8] sm:$0xff]
          %v1011 = vld [vmem:[%s867 + $0xb0] sm:$0xff]
          %v1012 = vld [vmem:[%s867 + $0xb8] sm:$0xff]
          %v1013 = vld [vmem:[%s867 + $0xc0] sm:$0xff]
          %v1014 = vld [vmem:[%s867 + $0xc8] sm:$0xff]
          %v1015 = vld [vmem:[%s867 + $0xd0] sm:$0xff]
          %v1016 = vld [vmem:[%s867 + $0xd8] sm:$0xff]
          %v1017 = vld [vmem:[%s867 + $0xe0] sm:$0xff]
          %v1018 = vld [vmem:[%s867 + $0xe8] sm:$0xff]
          %v1019 = vld [vmem:[%s867 + $0xf0] sm:$0xff]
          %v1020 = vld [vmem:[%s867 + $0xf8] sm:$0xff]
          %v1021 = vld [vmem:[%s867 + $0x100] sm:$0xff]
          %v1022 = vld [vmem:[%s867 + $0x108] sm:$0xff]
          %v1023 = vld [vmem:[%s867 + $0x110] sm:$0xff]
          %v1024 = vld [vmem:[%s867 + $0x118] sm:$0xff]
          %v1025 = vld [vmem:[%s867 + $0x120] sm:$0xff]
          %v1026 = vld [vmem:[%s867 + $0x128] sm:$0xff]
          %v1027 = vld [vmem:[%s867 + $0x130] sm:$0xff]
          %v1028 = vld [vmem:[%s867 + $0x138] sm:$0xff]
          %v1029 = vld [vmem:[%s867 + $0x140] sm:$0xff]
          %v1030 = vld [vmem:[%s867 + $0x148] sm:$0xff]
          %v1031 = vld [vmem:[%s867 + $0x150] sm:$0xff]
          %v1032 = vld [vmem:[%s867 + $0x158] sm:$0xff]
          %v1033 = vld [vmem:[%s867 + $0x160] sm:$0xff]
          %v1034 = vld [vmem:[%s867 + $0x168] sm:$0xff]
          %v1035 = vld [vmem:[%s867 + $0x170] sm:$0xff]
          %v1036 = vld [vmem:[%s867 + $0x178] sm:$0xff]
          %v1037 = vld [vmem:[%s867 + $0x180] sm:$0xff]
          %v1038 = vld [vmem:[%s867 + $0x188] sm:$0xff]
          %v1039 = vld [vmem:[%s867 + $0x190] sm:$0xff]
          %v1040 = vld [vmem:[%s867 + $0x198] sm:$0xff]
          %v1041 = vld [vmem:[%s867 + $0x1a0] sm:$0xff]
          %v1042 = vld [vmem:[%s867 + $0x1a8] sm:$0xff]
          %v1043 = vld [vmem:[%s867 + $0x1b0] sm:$0xff]
          %v1044 = vld [vmem:[%s867 + $0x1b8] sm:$0xff]
          %v1045 = vld [vmem:[%s867 + $0x1c0] sm:$0xff]
          %v1046 = vld [vmem:[%s867 + $0x1c8] sm:$0xff]
          %v1047 = vld [vmem:[%s867 + $0x1d0] sm:$0xff]
          %v1048 = vld [vmem:[%s867 + $0x1d8] sm:$0xff]
          %v1049 = vld [vmem:[%s867 + $0x1e0] sm:$0xff]
          %v1050 = vld [vmem:[%s867 + $0x1e8] sm:$0xff]
          %v1051 = vld [vmem:[%s867 + $0x1f0] sm:$0xff]
          %v1052 = vld [vmem:[%s867 + $0x1f8] sm:$0xff]
          %v1053 = vlaneseq
          %v1054 = vshrl.u32 %v1053, 7
          %v1055 = vadd.s32 %v1054, 8
          %v1056 = vadd.s32 %v1054, 16
          %v1057 = vadd.s32 %v1054, 24
          %v1058 = vadd.s32 %v1054, 32
          %v1059 = vadd.s32 %v1054, 40
          %v1060 = vadd.s32 %v1054, 48
          %v1061 = vadd.s32 %v1054, 56
          %v1062 = vadd.s32 %v1054, 64
          %v1063 = vadd.s32 %v1054, 72
          %v1064 = vadd.s32 %v1054, 80
          %v1065 = vadd.s32 %v1054, 88
          %v1066 = vadd.s32 %v1054, 96
          %v1067 = vadd.s32 %v1054, 104
          %v1068 = vadd.s32 %v1054, 112
          %v1069 = vadd.s32 %v1054, 120
          %v1070 = vlaneseq
          %v1071 = vand.u32 %v1070, 127
          %v1072 = vlaneseq
          %v1073 = vshrl.u32 %v1072, 7
          %v1074 = vsub.s32 0, %v1073
          %v1075 = vrot.slane %v988, %v1074
          %v1076 = vlaneseq
          %v1077 = vshrl.u32 %v1076, 7
          %v1078 = vsub.s32 1, %v1077
          %v1079 = vrot.slane %v988, %v1078
          %v1080 = vlaneseq
          %v1081 = vshrl.u32 %v1080, 7
          %v1082 = vsub.s32 2, %v1081
          %v1083 = vrot.slane %v988, %v1082
          %v1084 = vlaneseq
          %v1085 = vshrl.u32 %v1084, 7
          %v1086 = vsub.s32 3, %v1085
          %v1087 = vrot.slane %v988, %v1086
          %vm1088 = vcmp.eq.s32.totalorder %v1075, %v1054
          %vm1089 = vcmp.eq.s32.totalorder %v1079, %v1054
          %vm1090 = vcmp.eq.s32.totalorder %v1083, %v1054
          %vm1091 = vcmp.eq.s32.totalorder %v1087, %v1054
          %vm1092 = vcmp.eq.s32.totalorder %v1075, %v1055
          %vm1093 = vcmp.eq.s32.totalorder %v1079, %v1055
          %vm1094 = vcmp.eq.s32.totalorder %v1083, %v1055
          %vm1095 = vcmp.eq.s32.totalorder %v1087, %v1055
          %vm1096 = vcmp.eq.s32.totalorder %v1075, %v1056
          %vm1097 = vcmp.eq.s32.totalorder %v1079, %v1056
          %vm1098 = vcmp.eq.s32.totalorder %v1083, %v1056
          %vm1099 = vcmp.eq.s32.totalorder %v1087, %v1056
          %vm1100 = vcmp.eq.s32.totalorder %v1075, %v1057
          %vm1101 = vcmp.eq.s32.totalorder %v1079, %v1057
          %vm1102 = vcmp.eq.s32.totalorder %v1083, %v1057
          %vm1103 = vcmp.eq.s32.totalorder %v1087, %v1057
          %vm1104 = vcmp.eq.s32.totalorder %v1075, %v1058
          %vm1105 = vcmp.eq.s32.totalorder %v1079, %v1058
          %vm1106 = vcmp.eq.s32.totalorder %v1083, %v1058
          %vm1107 = vcmp.eq.s32.totalorder %v1087, %v1058
          %vm1108 = vcmp.eq.s32.totalorder %v1075, %v1059
          %vm1109 = vcmp.eq.s32.totalorder %v1079, %v1059
          %vm1110 = vcmp.eq.s32.totalorder %v1083, %v1059
          %vm1111 = vcmp.eq.s32.totalorder %v1087, %v1059
          %vm1112 = vcmp.eq.s32.totalorder %v1075, %v1060
          %vm1113 = vcmp.eq.s32.totalorder %v1079, %v1060
          %vm1114 = vcmp.eq.s32.totalorder %v1083, %v1060
          %vm1115 = vcmp.eq.s32.totalorder %v1087, %v1060
          %vm1116 = vcmp.eq.s32.totalorder %v1075, %v1061
          %vm1117 = vcmp.eq.s32.totalorder %v1079, %v1061
          %vm1118 = vcmp.eq.s32.totalorder %v1083, %v1061
          %vm1119 = vcmp.eq.s32.totalorder %v1087, %v1061
          %vm1120 = vcmp.eq.s32.totalorder %v1075, %v1062
          %vm1121 = vcmp.eq.s32.totalorder %v1079, %v1062
          %vm1122 = vcmp.eq.s32.totalorder %v1083, %v1062
          %vm1123 = vcmp.eq.s32.totalorder %v1087, %v1062
          %vm1124 = vcmp.eq.s32.totalorder %v1075, %v1063
          %vm1125 = vcmp.eq.s32.totalorder %v1079, %v1063
          %vm1126 = vcmp.eq.s32.totalorder %v1083, %v1063
          %vm1127 = vcmp.eq.s32.totalorder %v1087, %v1063
          %vm1128 = vcmp.eq.s32.totalorder %v1075, %v1064
          %vm1129 = vcmp.eq.s32.totalorder %v1079, %v1064
          %vm1130 = vcmp.eq.s32.totalorder %v1083, %v1064
          %vm1131 = vcmp.eq.s32.totalorder %v1087, %v1064
          %vm1132 = vcmp.eq.s32.totalorder %v1075, %v1065
          %vm1133 = vcmp.eq.s32.totalorder %v1079, %v1065
          %vm1134 = vcmp.eq.s32.totalorder %v1083, %v1065
          %vm1135 = vcmp.eq.s32.totalorder %v1087, %v1065
          %vm1136 = vcmp.eq.s32.totalorder %v1075, %v1066
          %vm1137 = vcmp.eq.s32.totalorder %v1079, %v1066
          %vm1138 = vcmp.eq.s32.totalorder %v1083, %v1066
          %vm1139 = vcmp.eq.s32.totalorder %v1087, %v1066
          %vm1140 = vcmp.eq.s32.totalorder %v1075, %v1067
          %vm1141 = vcmp.eq.s32.totalorder %v1079, %v1067
          %vm1142 = vcmp.eq.s32.totalorder %v1083, %v1067
          %vm1143 = vcmp.eq.s32.totalorder %v1087, %v1067
          %vm1144 = vcmp.eq.s32.totalorder %v1075, %v1068
          %vm1145 = vcmp.eq.s32.totalorder %v1079, %v1068
          %vm1146 = vcmp.eq.s32.totalorder %v1083, %v1068
          %vm1147 = vcmp.eq.s32.totalorder %v1087, %v1068
          %vm1148 = vcmp.eq.s32.totalorder %v1075, %v1069
          %vm1149 = vcmp.eq.s32.totalorder %v1079, %v1069
          %vm1150 = vcmp.eq.s32.totalorder %v1083, %v1069
          %vm1151 = vcmp.eq.s32.totalorder %v1087, %v1069
          %v1152 = vsel %vm1088, 1, 0
          %v1153 = vsel %vm1089, 1, 0
          %v1154 = vsel %vm1090, 1, 0
          %v1155 = vsel %vm1091, 1, 0
          %v1156 = vsel %vm1092, 1, 0
          %v1157 = vsel %vm1093, 1, 0
          %v1158 = vsel %vm1094, 1, 0
          %v1159 = vsel %vm1095, 1, 0
          %v1160 = vsel %vm1096, 1, 0
          %v1161 = vsel %vm1097, 1, 0
          %v1162 = vsel %vm1098, 1, 0
          %v1163 = vsel %vm1099, 1, 0
          %v1164 = vsel %vm1100, 1, 0
          %v1165 = vsel %vm1101, 1, 0
          %v1166 = vsel %vm1102, 1, 0
          %v1167 = vsel %vm1103, 1, 0
          %v1168 = vsel %vm1104, 1, 0
          %v1169 = vsel %vm1105, 1, 0
          %v1170 = vsel %vm1106, 1, 0
          %v1171 = vsel %vm1107, 1, 0
          %v1172 = vsel %vm1108, 1, 0
          %v1173 = vsel %vm1109, 1, 0
          %v1174 = vsel %vm1110, 1, 0
          %v1175 = vsel %vm1111, 1, 0
          %v1176 = vsel %vm1112, 1, 0
          %v1177 = vsel %vm1113, 1, 0
          %v1178 = vsel %vm1114, 1, 0
          %v1179 = vsel %vm1115, 1, 0
          %v1180 = vsel %vm1116, 1, 0
          %v1181 = vsel %vm1117, 1, 0
          %v1182 = vsel %vm1118, 1, 0
          %v1183 = vsel %vm1119, 1, 0
          %v1184 = vsel %vm1120, 1, 0
          %v1185 = vsel %vm1121, 1, 0
          %v1186 = vsel %vm1122, 1, 0
          %v1187 = vsel %vm1123, 1, 0
          %v1188 = vsel %vm1124, 1, 0
          %v1189 = vsel %vm1125, 1, 0
          %v1190 = vsel %vm1126, 1, 0
          %v1191 = vsel %vm1127, 1, 0
          %v1192 = vsel %vm1128, 1, 0
          %v1193 = vsel %vm1129, 1, 0
          %v1194 = vsel %vm1130, 1, 0
          %v1195 = vsel %vm1131, 1, 0
          %v1196 = vsel %vm1132, 1, 0
          %v1197 = vsel %vm1133, 1, 0
          %v1198 = vsel %vm1134, 1, 0
          %v1199 = vsel %vm1135, 1, 0
          %v1200 = vsel %vm1136, 1, 0
          %v1201 = vsel %vm1137, 1, 0
          %v1202 = vsel %vm1138, 1, 0
          %v1203 = vsel %vm1139, 1, 0
          %v1204 = vsel %vm1140, 1, 0
          %v1205 = vsel %vm1141, 1, 0
          %v1206 = vsel %vm1142, 1, 0
          %v1207 = vsel %vm1143, 1, 0
          %v1208 = vsel %vm1144, 1, 0
          %v1209 = vsel %vm1145, 1, 0
          %v1210 = vsel %vm1146, 1, 0
          %v1211 = vsel %vm1147, 1, 0
          %v1212 = vsel %vm1148, 1, 0
          %v1213 = vsel %vm1149, 1, 0
          %v1214 = vsel %vm1150, 1, 0
          %v1215 = vsel %vm1151, 1, 0
          %v1216 = vcvt.s32.f32 %v1152
          %v1217 = vcvt.s32.f32 %v1153
          %v1218 = vcvt.s32.f32 %v1154
          %v1219 = vcvt.s32.f32 %v1155
          %v1220 = vcvt.s32.f32 %v1156
          %v1221 = vcvt.s32.f32 %v1157
          %v1222 = vcvt.s32.f32 %v1158
          %v1223 = vcvt.s32.f32 %v1159
          %v1224 = vcvt.s32.f32 %v1160
          %v1225 = vcvt.s32.f32 %v1161
          %v1226 = vcvt.s32.f32 %v1162
          %v1227 = vcvt.s32.f32 %v1163
          %v1228 = vcvt.s32.f32 %v1164
          %v1229 = vcvt.s32.f32 %v1165
          %v1230 = vcvt.s32.f32 %v1166
          %v1231 = vcvt.s32.f32 %v1167
          %v1232 = vcvt.s32.f32 %v1168
          %v1233 = vcvt.s32.f32 %v1169
          %v1234 = vcvt.s32.f32 %v1170
          %v1235 = vcvt.s32.f32 %v1171
          %v1236 = vcvt.s32.f32 %v1172
          %v1237 = vcvt.s32.f32 %v1173
          %v1238 = vcvt.s32.f32 %v1174
          %v1239 = vcvt.s32.f32 %v1175
          %v1240 = vcvt.s32.f32 %v1176
          %v1241 = vcvt.s32.f32 %v1177
          %v1242 = vcvt.s32.f32 %v1178
          %v1243 = vcvt.s32.f32 %v1179
          %v1244 = vcvt.s32.f32 %v1180
          %v1245 = vcvt.s32.f32 %v1181
          %v1246 = vcvt.s32.f32 %v1182
          %v1247 = vcvt.s32.f32 %v1183
          %v1248 = vcvt.s32.f32 %v1184
          %v1249 = vcvt.s32.f32 %v1185
          %v1250 = vcvt.s32.f32 %v1186
          %v1251 = vcvt.s32.f32 %v1187
          %v1252 = vcvt.s32.f32 %v1188
          %v1253 = vcvt.s32.f32 %v1189
          %v1254 = vcvt.s32.f32 %v1190
          %v1255 = vcvt.s32.f32 %v1191
          %v1256 = vcvt.s32.f32 %v1192
          %v1257 = vcvt.s32.f32 %v1193
          %v1258 = vcvt.s32.f32 %v1194
          %v1259 = vcvt.s32.f32 %v1195
          %v1260 = vcvt.s32.f32 %v1196
          %v1261 = vcvt.s32.f32 %v1197
          %v1262 = vcvt.s32.f32 %v1198
          %v1263 = vcvt.s32.f32 %v1199
          %v1264 = vcvt.s32.f32 %v1200
          %v1265 = vcvt.s32.f32 %v1201
          %v1266 = vcvt.s32.f32 %v1202
          %v1267 = vcvt.s32.f32 %v1203
          %v1268 = vcvt.s32.f32 %v1204
          %v1269 = vcvt.s32.f32 %v1205
          %v1270 = vcvt.s32.f32 %v1206
          %v1271 = vcvt.s32.f32 %v1207
          %v1272 = vcvt.s32.f32 %v1208
          %v1273 = vcvt.s32.f32 %v1209
          %v1274 = vcvt.s32.f32 %v1210
          %v1275 = vcvt.s32.f32 %v1211
          %v1276 = vcvt.s32.f32 %v1212
          %v1277 = vcvt.s32.f32 %v1213
          %v1278 = vcvt.s32.f32 %v1214
          %v1279 = vcvt.s32.f32 %v1215
          %1280 = vset.pattern.permute.xlu0 0
          %1281 = vperm.xlu0 %1280, %v989
          %v1282 = vpop.permute.xlu0 %1281
          %1283 = vset.pattern.permute.xlu0 0
          %1284 = vperm.xlu0 %1283, %v990
          %v1285 = vpop.permute.xlu0 %1284
          %1286 = vset.pattern.permute.xlu0 0
          %1287 = vperm.xlu0 %1286, %v991
          %v1288 = vpop.permute.xlu0 %1287
          %1289 = vset.pattern.permute.xlu0 0
          %1290 = vperm.xlu0 %1289, %v992
          %v1291 = vpop.permute.xlu0 %1290
          %1292 = vset.pattern.permute.xlu0 0
          %1293 = vperm.xlu0 %1292, %v993
          %v1294 = vpop.permute.xlu0 %1293
          %1295 = vset.pattern.permute.xlu0 0
          %1296 = vperm.xlu0 %1295, %v994
          %v1297 = vpop.permute.xlu0 %1296
          %1298 = vset.pattern.permute.xlu0 0
          %1299 = vperm.xlu0 %1298, %v995
          %v1300 = vpop.permute.xlu0 %1299
          %1301 = vset.pattern.permute.xlu0 0
          %1302 = vperm.xlu0 %1301, %v996
          %v1303 = vpop.permute.xlu0 %1302
          %1304 = vset.pattern.permute.xlu0 0
          %1305 = vperm.xlu0 %1304, %v997
          %v1306 = vpop.permute.xlu0 %1305
          %1307 = vset.pattern.permute.xlu0 0
          %1308 = vperm.xlu0 %1307, %v998
          %v1309 = vpop.permute.xlu0 %1308
          %1310 = vset.pattern.permute.xlu0 0
          %1311 = vperm.xlu0 %1310, %v999
          %v1312 = vpop.permute.xlu0 %1311
          %1313 = vset.pattern.permute.xlu0 0
          %1314 = vperm.xlu0 %1313, %v1000
          %v1315 = vpop.permute.xlu0 %1314
          %1316 = vset.pattern.permute.xlu0 0
          %1317 = vperm.xlu0 %1316, %v1001
          %v1318 = vpop.permute.xlu0 %1317
          %1319 = vset.pattern.permute.xlu0 0
          %1320 = vperm.xlu0 %1319, %v1002
          %v1321 = vpop.permute.xlu0 %1320
          %1322 = vset.pattern.permute.xlu0 0
          %1323 = vperm.xlu0 %1322, %v1003
          %v1324 = vpop.permute.xlu0 %1323
          %1325 = vset.pattern.permute.xlu0 0
          %1326 = vperm.xlu0 %1325, %v1004
          %v1327 = vpop.permute.xlu0 %1326
          %1328 = vset.pattern.permute.xlu0 0
          %1329 = vperm.xlu0 %1328, %v1005
          %v1330 = vpop.permute.xlu0 %1329
          %1331 = vset.pattern.permute.xlu0 0
          %1332 = vperm.xlu0 %1331, %v1006
          %v1333 = vpop.permute.xlu0 %1332
          %1334 = vset.pattern.permute.xlu0 0
          %1335 = vperm.xlu0 %1334, %v1007
          %v1336 = vpop.permute.xlu0 %1335
          %1337 = vset.pattern.permute.xlu0 0
          %1338 = vperm.xlu0 %1337, %v1008
          %v1339 = vpop.permute.xlu0 %1338
          %1340 = vset.pattern.permute.xlu0 0
          %1341 = vperm.xlu0 %1340, %v1009
          %v1342 = vpop.permute.xlu0 %1341
          %1343 = vset.pattern.permute.xlu0 0
          %1344 = vperm.xlu0 %1343, %v1010
          %v1345 = vpop.permute.xlu0 %1344
          %1346 = vset.pattern.permute.xlu0 0
          %1347 = vperm.xlu0 %1346, %v1011
          %v1348 = vpop.permute.xlu0 %1347
          %1349 = vset.pattern.permute.xlu0 0
          %1350 = vperm.xlu0 %1349, %v1012
          %v1351 = vpop.permute.xlu0 %1350
          %1352 = vset.pattern.permute.xlu0 0
          %1353 = vperm.xlu0 %1352, %v1013
          %v1354 = vpop.permute.xlu0 %1353
          %1355 = vset.pattern.permute.xlu0 0
          %1356 = vperm.xlu0 %1355, %v1014
          %v1357 = vpop.permute.xlu0 %1356
          %1358 = vset.pattern.permute.xlu0 0
          %1359 = vperm.xlu0 %1358, %v1015
          %v1360 = vpop.permute.xlu0 %1359
          %1361 = vset.pattern.permute.xlu0 0
          %1362 = vperm.xlu0 %1361, %v1016
          %v1363 = vpop.permute.xlu0 %1362
          %1364 = vset.pattern.permute.xlu0 0
          %1365 = vperm.xlu0 %1364, %v1017
          %v1366 = vpop.permute.xlu0 %1365
          %1367 = vset.pattern.permute.xlu0 0
          %1368 = vperm.xlu0 %1367, %v1018
          %v1369 = vpop.permute.xlu0 %1368
          %1370 = vset.pattern.permute.xlu0 0
          %1371 = vperm.xlu0 %1370, %v1019
          %v1372 = vpop.permute.xlu0 %1371
          %1373 = vset.pattern.permute.xlu0 0
          %1374 = vperm.xlu0 %1373, %v1020
          %v1375 = vpop.permute.xlu0 %1374
          %1376 = vset.pattern.permute.xlu0 0
          %1377 = vperm.xlu0 %1376, %v1021
          %v1378 = vpop.permute.xlu0 %1377
          %1379 = vset.pattern.permute.xlu0 0
          %1380 = vperm.xlu0 %1379, %v1022
          %v1381 = vpop.permute.xlu0 %1380
          %1382 = vset.pattern.permute.xlu0 0
          %1383 = vperm.xlu0 %1382, %v1023
          %v1384 = vpop.permute.xlu0 %1383
          %1385 = vset.pattern.permute.xlu0 0
          %1386 = vperm.xlu0 %1385, %v1024
          %v1387 = vpop.permute.xlu0 %1386
          %1388 = vset.pattern.permute.xlu0 0
          %1389 = vperm.xlu0 %1388, %v1025
          %v1390 = vpop.permute.xlu0 %1389
          %1391 = vset.pattern.permute.xlu0 0
          %1392 = vperm.xlu0 %1391, %v1026
          %v1393 = vpop.permute.xlu0 %1392
          %1394 = vset.pattern.permute.xlu0 0
          %1395 = vperm.xlu0 %1394, %v1027
          %v1396 = vpop.permute.xlu0 %1395
          %1397 = vset.pattern.permute.xlu0 0
          %1398 = vperm.xlu0 %1397, %v1028
          %v1399 = vpop.permute.xlu0 %1398
          %1400 = vset.pattern.permute.xlu0 0
          %1401 = vperm.xlu0 %1400, %v1029
          %v1402 = vpop.permute.xlu0 %1401
          %1403 = vset.pattern.permute.xlu0 0
          %1404 = vperm.xlu0 %1403, %v1030
          %v1405 = vpop.permute.xlu0 %1404
          %1406 = vset.pattern.permute.xlu0 0
          %1407 = vperm.xlu0 %1406, %v1031
          %v1408 = vpop.permute.xlu0 %1407
          %1409 = vset.pattern.permute.xlu0 0
          %1410 = vperm.xlu0 %1409, %v1032
          %v1411 = vpop.permute.xlu0 %1410
          %1412 = vset.pattern.permute.xlu0 0
          %1413 = vperm.xlu0 %1412, %v1033
          %v1414 = vpop.permute.xlu0 %1413
          %1415 = vset.pattern.permute.xlu0 0
          %1416 = vperm.xlu0 %1415, %v1034
          %v1417 = vpop.permute.xlu0 %1416
          %1418 = vset.pattern.permute.xlu0 0
          %1419 = vperm.xlu0 %1418, %v1035
          %v1420 = vpop.permute.xlu0 %1419
          %1421 = vset.pattern.permute.xlu0 0
          %1422 = vperm.xlu0 %1421, %v1036
          %v1423 = vpop.permute.xlu0 %1422
          %1424 = vset.pattern.permute.xlu0 0
          %1425 = vperm.xlu0 %1424, %v1037
          %v1426 = vpop.permute.xlu0 %1425
          %1427 = vset.pattern.permute.xlu0 0
          %1428 = vperm.xlu0 %1427, %v1038
          %v1429 = vpop.permute.xlu0 %1428
          %1430 = vset.pattern.permute.xlu0 0
          %1431 = vperm.xlu0 %1430, %v1039
          %v1432 = vpop.permute.xlu0 %1431
          %1433 = vset.pattern.permute.xlu0 0
          %1434 = vperm.xlu0 %1433, %v1040
          %v1435 = vpop.permute.xlu0 %1434
          %1436 = vset.pattern.permute.xlu0 0
          %1437 = vperm.xlu0 %1436, %v1041
          %v1438 = vpop.permute.xlu0 %1437
          %1439 = vset.pattern.permute.xlu0 0
          %1440 = vperm.xlu0 %1439, %v1042
          %v1441 = vpop.permute.xlu0 %1440
          %1442 = vset.pattern.permute.xlu0 0
          %1443 = vperm.xlu0 %1442, %v1043
          %v1444 = vpop.permute.xlu0 %1443
          %1445 = vset.pattern.permute.xlu0 0
          %1446 = vperm.xlu0 %1445, %v1044
          %v1447 = vpop.permute.xlu0 %1446
          %1448 = vset.pattern.permute.xlu0 0
          %1449 = vperm.xlu0 %1448, %v1045
          %v1450 = vpop.permute.xlu0 %1449
          %1451 = vset.pattern.permute.xlu0 0
          %1452 = vperm.xlu0 %1451, %v1046
          %v1453 = vpop.permute.xlu0 %1452
          %1454 = vset.pattern.permute.xlu0 0
          %1455 = vperm.xlu0 %1454, %v1047
          %v1456 = vpop.permute.xlu0 %1455
          %1457 = vset.pattern.permute.xlu0 0
          %1458 = vperm.xlu0 %1457, %v1048
          %v1459 = vpop.permute.xlu0 %1458
          %1460 = vset.pattern.permute.xlu0 0
          %1461 = vperm.xlu0 %1460, %v1049
          %v1462 = vpop.permute.xlu0 %1461
          %1463 = vset.pattern.permute.xlu0 0
          %1464 = vperm.xlu0 %1463, %v1050
          %v1465 = vpop.permute.xlu0 %1464
          %1466 = vset.pattern.permute.xlu0 0
          %1467 = vperm.xlu0 %1466, %v1051
          %v1468 = vpop.permute.xlu0 %1467
          %1469 = vset.pattern.permute.xlu0 0
          %1470 = vperm.xlu0 %1469, %v1052
          %v1471 = vpop.permute.xlu0 %1470
          %vm1472 = vcmp.eq.s32.totalorder %v1282, %v1071
          %vm1473 = vcmp.eq.s32.totalorder %v1285, %v1071
          %vm1474 = vcmp.eq.s32.totalorder %v1288, %v1071
          %vm1475 = vcmp.eq.s32.totalorder %v1291, %v1071
          %vm1476 = vcmp.eq.s32.totalorder %v1294, %v1071
          %vm1477 = vcmp.eq.s32.totalorder %v1297, %v1071
          %vm1478 = vcmp.eq.s32.totalorder %v1300, %v1071
          %vm1479 = vcmp.eq.s32.totalorder %v1303, %v1071
          %vm1480 = vcmp.eq.s32.totalorder %v1306, %v1071
          %vm1481 = vcmp.eq.s32.totalorder %v1309, %v1071
          %vm1482 = vcmp.eq.s32.totalorder %v1312, %v1071
          %vm1483 = vcmp.eq.s32.totalorder %v1315, %v1071
          %vm1484 = vcmp.eq.s32.totalorder %v1318, %v1071
          %vm1485 = vcmp.eq.s32.totalorder %v1321, %v1071
          %vm1486 = vcmp.eq.s32.totalorder %v1324, %v1071
          %vm1487 = vcmp.eq.s32.totalorder %v1327, %v1071
          %vm1488 = vcmp.eq.s32.totalorder %v1330, %v1071
          %vm1489 = vcmp.eq.s32.totalorder %v1333, %v1071
          %vm1490 = vcmp.eq.s32.totalorder %v1336, %v1071
          %vm1491 = vcmp.eq.s32.totalorder %v1339, %v1071
          %vm1492 = vcmp.eq.s32.totalorder %v1342, %v1071
          %vm1493 = vcmp.eq.s32.totalorder %v1345, %v1071
          %vm1494 = vcmp.eq.s32.totalorder %v1348, %v1071
          %vm1495 = vcmp.eq.s32.totalorder %v1351, %v1071
          %vm1496 = vcmp.eq.s32.totalorder %v1354, %v1071
          %vm1497 = vcmp.eq.s32.totalorder %v1357, %v1071
          %vm1498 = vcmp.eq.s32.totalorder %v1360, %v1071
          %vm1499 = vcmp.eq.s32.totalorder %v1363, %v1071
          %vm1500 = vcmp.eq.s32.totalorder %v1366, %v1071
          %vm1501 = vcmp.eq.s32.totalorder %v1369, %v1071
          %vm1502 = vcmp.eq.s32.totalorder %v1372, %v1071
          %vm1503 = vcmp.eq.s32.totalorder %v1375, %v1071
          %vm1504 = vcmp.eq.s32.totalorder %v1378, %v1071
          %vm1505 = vcmp.eq.s32.totalorder %v1381, %v1071
          %vm1506 = vcmp.eq.s32.totalorder %v1384, %v1071
          %vm1507 = vcmp.eq.s32.totalorder %v1387, %v1071
          %vm1508 = vcmp.eq.s32.totalorder %v1390, %v1071
          %vm1509 = vcmp.eq.s32.totalorder %v1393, %v1071
          %vm1510 = vcmp.eq.s32.totalorder %v1396, %v1071
          %vm1511 = vcmp.eq.s32.totalorder %v1399, %v1071
          %vm1512 = vcmp.eq.s32.totalorder %v1402, %v1071
          %vm1513 = vcmp.eq.s32.totalorder %v1405, %v1071
          %vm1514 = vcmp.eq.s32.totalorder %v1408, %v1071
          %vm1515 = vcmp.eq.s32.totalorder %v1411, %v1071
          %vm1516 = vcmp.eq.s32.totalorder %v1414, %v1071
          %vm1517 = vcmp.eq.s32.totalorder %v1417, %v1071
          %vm1518 = vcmp.eq.s32.totalorder %v1420, %v1071
          %vm1519 = vcmp.eq.s32.totalorder %v1423, %v1071
          %vm1520 = vcmp.eq.s32.totalorder %v1426, %v1071
          %vm1521 = vcmp.eq.s32.totalorder %v1429, %v1071
          %vm1522 = vcmp.eq.s32.totalorder %v1432, %v1071
          %vm1523 = vcmp.eq.s32.totalorder %v1435, %v1071
          %vm1524 = vcmp.eq.s32.totalorder %v1438, %v1071
          %vm1525 = vcmp.eq.s32.totalorder %v1441, %v1071
          %vm1526 = vcmp.eq.s32.totalorder %v1444, %v1071
          %vm1527 = vcmp.eq.s32.totalorder %v1447, %v1071
          %vm1528 = vcmp.eq.s32.totalorder %v1450, %v1071
          %vm1529 = vcmp.eq.s32.totalorder %v1453, %v1071
          %vm1530 = vcmp.eq.s32.totalorder %v1456, %v1071
          %vm1531 = vcmp.eq.s32.totalorder %v1459, %v1071
          %vm1532 = vcmp.eq.s32.totalorder %v1462, %v1071
          %vm1533 = vcmp.eq.s32.totalorder %v1465, %v1071
          %vm1534 = vcmp.eq.s32.totalorder %v1468, %v1071
          %vm1535 = vcmp.eq.s32.totalorder %v1471, %v1071
          %v1536 = vsel %vm1472, 1, 0
          %v1537 = vsel %vm1473, 1, 0
          %v1538 = vsel %vm1474, 1, 0
          %v1539 = vsel %vm1475, 1, 0
          %v1540 = vsel %vm1476, 1, 0
          %v1541 = vsel %vm1477, 1, 0
          %v1542 = vsel %vm1478, 1, 0
          %v1543 = vsel %vm1479, 1, 0
          %v1544 = vsel %vm1480, 1, 0
          %v1545 = vsel %vm1481, 1, 0
          %v1546 = vsel %vm1482, 1, 0
          %v1547 = vsel %vm1483, 1, 0
          %v1548 = vsel %vm1484, 1, 0
          %v1549 = vsel %vm1485, 1, 0
          %v1550 = vsel %vm1486, 1, 0
          %v1551 = vsel %vm1487, 1, 0
          %v1552 = vsel %vm1488, 1, 0
          %v1553 = vsel %vm1489, 1, 0
          %v1554 = vsel %vm1490, 1, 0
          %v1555 = vsel %vm1491, 1, 0
          %v1556 = vsel %vm1492, 1, 0
          %v1557 = vsel %vm1493, 1, 0
          %v1558 = vsel %vm1494, 1, 0
          %v1559 = vsel %vm1495, 1, 0
          %v1560 = vsel %vm1496, 1, 0
          %v1561 = vsel %vm1497, 1, 0
          %v1562 = vsel %vm1498, 1, 0
          %v1563 = vsel %vm1499, 1, 0
          %v1564 = vsel %vm1500, 1, 0
          %v1565 = vsel %vm1501, 1, 0
          %v1566 = vsel %vm1502, 1, 0
          %v1567 = vsel %vm1503, 1, 0
          %v1568 = vsel %vm1504, 1, 0
          %v1569 = vsel %vm1505, 1, 0
          %v1570 = vsel %vm1506, 1, 0
          %v1571 = vsel %vm1507, 1, 0
          %v1572 = vsel %vm1508, 1, 0
          %v1573 = vsel %vm1509, 1, 0
          %v1574 = vsel %vm1510, 1, 0
          %v1575 = vsel %vm1511, 1, 0
          %v1576 = vsel %vm1512, 1, 0
          %v1577 = vsel %vm1513, 1, 0
          %v1578 = vsel %vm1514, 1, 0
          %v1579 = vsel %vm1515, 1, 0
          %v1580 = vsel %vm1516, 1, 0
          %v1581 = vsel %vm1517, 1, 0
          %v1582 = vsel %vm1518, 1, 0
          %v1583 = vsel %vm1519, 1, 0
          %v1584 = vsel %vm1520, 1, 0
          %v1585 = vsel %vm1521, 1, 0
          %v1586 = vsel %vm1522, 1, 0
          %v1587 = vsel %vm1523, 1, 0
          %v1588 = vsel %vm1524, 1, 0
          %v1589 = vsel %vm1525, 1, 0
          %v1590 = vsel %vm1526, 1, 0
          %v1591 = vsel %vm1527, 1, 0
          %v1592 = vsel %vm1528, 1, 0
          %v1593 = vsel %vm1529, 1, 0
          %v1594 = vsel %vm1530, 1, 0
          %v1595 = vsel %vm1531, 1, 0
          %v1596 = vsel %vm1532, 1, 0
          %v1597 = vsel %vm1533, 1, 0
          %v1598 = vsel %vm1534, 1, 0
          %v1599 = vsel %vm1535, 1, 0
          %v1600 = vcvt.s32.f32 %v1536
          %v1601 = vcvt.s32.f32 %v1537
          %v1602 = vcvt.s32.f32 %v1538
          %v1603 = vcvt.s32.f32 %v1539
          %v1604 = vcvt.s32.f32 %v1540
          %v1605 = vcvt.s32.f32 %v1541
          %v1606 = vcvt.s32.f32 %v1542
          %v1607 = vcvt.s32.f32 %v1543
          %v1608 = vcvt.s32.f32 %v1544
          %v1609 = vcvt.s32.f32 %v1545
          %v1610 = vcvt.s32.f32 %v1546
          %v1611 = vcvt.s32.f32 %v1547
          %v1612 = vcvt.s32.f32 %v1548
          %v1613 = vcvt.s32.f32 %v1549
          %v1614 = vcvt.s32.f32 %v1550
          %v1615 = vcvt.s32.f32 %v1551
          %v1616 = vcvt.s32.f32 %v1552
          %v1617 = vcvt.s32.f32 %v1553
          %v1618 = vcvt.s32.f32 %v1554
          %v1619 = vcvt.s32.f32 %v1555
          %v1620 = vcvt.s32.f32 %v1556
          %v1621 = vcvt.s32.f32 %v1557
          %v1622 = vcvt.s32.f32 %v1558
          %v1623 = vcvt.s32.f32 %v1559
          %v1624 = vcvt.s32.f32 %v1560
          %v1625 = vcvt.s32.f32 %v1561
          %v1626 = vcvt.s32.f32 %v1562
          %v1627 = vcvt.s32.f32 %v1563
          %v1628 = vcvt.s32.f32 %v1564
          %v1629 = vcvt.s32.f32 %v1565
          %v1630 = vcvt.s32.f32 %v1566
          %v1631 = vcvt.s32.f32 %v1567
          %v1632 = vcvt.s32.f32 %v1568
          %v1633 = vcvt.s32.f32 %v1569
          %v1634 = vcvt.s32.f32 %v1570
          %v1635 = vcvt.s32.f32 %v1571
          %v1636 = vcvt.s32.f32 %v1572
          %v1637 = vcvt.s32.f32 %v1573
          %v1638 = vcvt.s32.f32 %v1574
          %v1639 = vcvt.s32.f32 %v1575
          %v1640 = vcvt.s32.f32 %v1576
          %v1641 = vcvt.s32.f32 %v1577
          %v1642 = vcvt.s32.f32 %v1578
          %v1643 = vcvt.s32.f32 %v1579
          %v1644 = vcvt.s32.f32 %v1580
          %v1645 = vcvt.s32.f32 %v1581
          %v1646 = vcvt.s32.f32 %v1582
          %v1647 = vcvt.s32.f32 %v1583
          %v1648 = vcvt.s32.f32 %v1584
          %v1649 = vcvt.s32.f32 %v1585
          %v1650 = vcvt.s32.f32 %v1586
          %v1651 = vcvt.s32.f32 %v1587
          %v1652 = vcvt.s32.f32 %v1588
          %v1653 = vcvt.s32.f32 %v1589
          %v1654 = vcvt.s32.f32 %v1590
          %v1655 = vcvt.s32.f32 %v1591
          %v1656 = vcvt.s32.f32 %v1592
          %v1657 = vcvt.s32.f32 %v1593
          %v1658 = vcvt.s32.f32 %v1594
          %v1659 = vcvt.s32.f32 %v1595
          %v1660 = vcvt.s32.f32 %v1596
          %v1661 = vcvt.s32.f32 %v1597
          %v1662 = vcvt.s32.f32 %v1598
          %v1663 = vcvt.s32.f32 %v1599
          %1664 = vmatprep.subr.mxu0 0.0
          %1665 = vmatpush1.msra.mxu0 %v972
          %1666 = vmatprep.subr.mxu0 0.0
          %1667 = vmatpush1.msra.mxu0 %v973
          %1668 = vmatprep.subr.mxu0 0.0
          %1669 = vmatpush1.msra.mxu0 %v974
          %1670 = vmatprep.subr.mxu0 0.0
          %1671 = vmatpush1.msra.mxu0 %v975
          %1672 = vmatprep.subr.mxu0 0.0
          %1673 = vmatpush1.msra.mxu0 %v976
          %1674 = vmatprep.subr.mxu0 0.0
          %1675 = vmatpush1.msra.mxu0 %v977
          %1676 = vmatprep.subr.mxu0 0.0
          %1677 = vmatpush1.msra.mxu0 %v978
          %1678 = vmatprep.subr.mxu0 0.0
          %1679 = vmatpush1.msra.mxu0 %v979
          %1680 = vmatprep.subr.mxu0 0.0
          %1681 = vmatpush1.msra.mxu0 %v980
          %1682 = vmatprep.subr.mxu0 0.0
          %1683 = vmatpush1.msra.mxu0 %v981
          %1684 = vmatprep.subr.mxu0 0.0
          %1685 = vmatpush1.msra.mxu0 %v982
          %1686 = vmatprep.subr.mxu0 0.0
          %1687 = vmatpush1.msra.mxu0 %v983
          %1688 = vmatprep.subr.mxu0 0.0
          %1689 = vmatpush1.msra.mxu0 %v984
          %1690 = vmatprep.subr.mxu0 0.0
          %1691 = vmatpush1.msra.mxu0 %v985
          %1692 = vmatprep.subr.mxu0 0.0
          %1693 = vmatpush1.msra.mxu0 %v986
          %1694 = vmatprep.subr.mxu0 0.0
          %1695 = vmatpush1.msra.mxu0 %v987
          %1696 = vmatprep.subr.mxu0 0.0
          %1697 = vmatpush1.msra.mxu0 0.0
          %1698 = vmatprep.subr.mxu0 0.0
          %1699 = vmatpush1.msra.mxu0 0.0
          %1700 = vmatprep.subr.mxu0 0.0
          %1701 = vmatpush1.msra.mxu0 0.0
          %1702 = vmatprep.subr.mxu0 0.0
          %1703 = vmatpush1.msra.mxu0 0.0
          %1704 = vmatprep.subr.mxu0 0.0
          %1705 = vmatpush1.msra.mxu0 0.0
          %1706 = vmatprep.subr.mxu0 0.0
          %1707 = vmatpush1.msra.mxu0 0.0
          %1708 = vmatprep.subr.mxu0 0.0
          %1709 = vmatpush1.msra.mxu0 0.0
          %1710 = vmatprep.subr.mxu0 0.0
          %1711 = vmatpush1.msra.mxu0 0.0
          %1712 = vmatprep.subr.mxu0 0.0
          %1713 = vmatpush1.msra.mxu0 0.0
          %1714 = vmatprep.subr.mxu0 0.0
          %1715 = vmatpush1.msra.mxu0 0.0
          %1716 = vmatprep.subr.mxu0 0.0
          %1717 = vmatpush1.msra.mxu0 0.0
          %1718 = vmatprep.subr.mxu0 0.0
          %1719 = vmatpush1.msra.mxu0 0.0
          %1720 = vmatprep.subr.mxu0 0.0
          %1721 = vmatpush1.msra.mxu0 0.0
          %1722 = vmatprep.subr.mxu0 0.0
          %1723 = vmatpush1.msra.mxu0 0.0
          %1724 = vmatprep.subr.mxu0 0.0
          %1725 = vmatpush1.msra.mxu0 0.0
          %1726 = vmatprep.subr.mxu0 0.0
          %1727 = vmatpush1.msra.mxu0 0.0
          %1728 = vmatprep.mubr.f32.mxu0 0.0
          %1729 = vmatmul.mubr.f32.gmra.mrb[0].mxu0 %v1600
          %v1730 = vpop.f32.mrb[0].mxu0
          %v1731 = vadd.f32 0.0, %v1730
          %v1732 = vpop.f32.mrb[0].mxu0
          %1733 = vmatprep.mubr.f32.mxu0 0.0
          %1734 = vmatmul.mubr.f32.gmra.mrb[0].mxu0 %v1601
          %v1735 = vpop.f32.mrb[0].mxu0
          %v1736 = vadd.f32 0.0, %v1735
          %v1737 = vpop.f32.mrb[0].mxu0
          %1738 = vmatprep.mubr.f32.mxu0 0.0
          %1739 = vmatmul.mubr.f32.gmra.mrb[0].mxu0 %v1602
          %v1740 = vpop.f32.mrb[0].mxu0
          %v1741 = vadd.f32 0.0, %v1740
          %v1742 = vpop.f32.mrb[0].mxu0
          %1743 = vmatprep.mubr.f32.mxu0 0.0
          %1744 = vmatmul.mubr.f32.gmra.mrb[0].mxu0 %v1603
          %v1745 = vpop.f32.mrb[0].mxu0
          %v1746 = vadd.f32 0.0, %v1745
          %v1747 = vpop.f32.mrb[0].mxu0
          %1748 = vmatprep.mubr.f32.mxu0 0.0
          %1749 = vmatmul.mubr.f32.gmra.mrb[0].mxu0 %v1604
          %v1750 = vpop.f32.mrb[0].mxu0
          %v1751 = vadd.f32 0.0, %v1750
          %v1752 = vpop.f32.mrb[0].mxu0
          %1753 = vmatprep.mubr.f32.mxu0 0.0
          %1754 = vmatmul.mubr.f32.gmra.mrb[0].mxu0 %v1605
          %v1755 = vpop.f32.mrb[0].mxu0
          %v1756 = vadd.f32 0.0, %v1755
          %v1757 = vpop.f32.mrb[0].mxu0
          %1758 = vmatprep.mubr.f32.mxu0 0.0
          %1759 = vmatmul.mubr.f32.gmra.mrb[0].mxu0 %v1606
          %v1760 = vpop.f32.mrb[0].mxu0
          %v1761 = vadd.f32 0.0, %v1760
          %v1762 = vpop.f32.mrb[0].mxu0
          %1763 = vmatprep.mubr.f32.mxu0 0.0
          %1764 = vmatmul.mubr.f32.gmra.mrb[0].mxu0 %v1607
          %v1765 = vpop.f32.mrb[0].mxu0
          %v1766 = vadd.f32 0.0, %v1765
          %v1767 = vpop.f32.mrb[0].mxu0
          %1768 = vmatprep.mubr.f32.mxu0 0.0
          %1769 = vmatmul.mubr.f32.gmra.mrb[0].mxu0 %v1608
          %v1770 = vpop.f32.mrb[0].mxu0
          %v1771 = vadd.f32 0.0, %v1770
          %v1772 = vpop.f32.mrb[0].mxu0
          %1773 = vmatprep.mubr.f32.mxu0 0.0
          %1774 = vmatmul.mubr.f32.gmra.mrb[0].mxu0 %v1609
          %v1775 = vpop.f32.mrb[0].mxu0
          %v1776 = vadd.f32 0.0, %v1775
          %v1777 = vpop.f32.mrb[0].mxu0
          %1778 = vmatprep.mubr.f32.mxu0 0.0
          %1779 = vmatmul.mubr.f32.gmra.mrb[0].mxu0 %v1610
          %v1780 = vpop.f32.mrb[0].mxu0
          %v1781 = vadd.f32 0.0, %v1780
          %v1782 = vpop.f32.mrb[0].mxu0
          %1783 = vmatprep.mubr.f32.mxu0 0.0
          %1784 = vmatmul.mubr.f32.gmra.mrb[0].mxu0 %v1611
          %v1785 = vpop.f32.mrb[0].mxu0
          %v1786 = vadd.f32 0.0, %v1785
          %v1787 = vpop.f32.mrb[0].mxu0
          %1788 = vmatprep.mubr.f32.mxu0 0.0
          %1789 = vmatmul.mubr.f32.gmra.mrb[0].mxu0 %v1612
          %v1790 = vpop.f32.mrb[0].mxu0
          %v1791 = vadd.f32 0.0, %v1790
          %v1792 = vpop.f32.mrb[0].mxu0
          %1793 = vmatprep.mubr.f32.mxu0 0.0
          %1794 = vmatmul.mubr.f32.gmra.mrb[0].mxu0 %v1613
          %v1795 = vpop.f32.mrb[0].mxu0
          %v1796 = vadd.f32 0.0, %v1795
          %v1797 = vpop.f32.mrb[0].mxu0
          %1798 = vmatprep.mubr.f32.mxu0 0.0
          %1799 = vmatmul.mubr.f32.gmra.mrb[0].mxu0 %v1614
          %v1800 = vpop.f32.mrb[0].mxu0
          %v1801 = vadd.f32 0.0, %v1800
          %v1802 = vpop.f32.mrb[0].mxu0
          %1803 = vmatprep.mubr.f32.mxu0 0.0
          %1804 = vmatmul.mubr.f32.gmra.mrb[0].mxu0 %v1615
          %v1805 = vpop.f32.mrb[0].mxu0
          %v1806 = vadd.f32 0.0, %v1805
          %v1807 = vpop.f32.mrb[0].mxu0
          %1808 = vmatprep.mubr.f32.mxu0 0.0
          %1809 = vmatmul.mubr.f32.gmra.mrb[0].mxu0 %v1616
          %v1810 = vpop.f32.mrb[0].mxu0
          %v1811 = vadd.f32 0.0, %v1810
          %v1812 = vpop.f32.mrb[0].mxu0
          %1813 = vmatprep.mubr.f32.mxu0 0.0
          %1814 = vmatmul.mubr.f32.gmra.mrb[0].mxu0 %v1617
          %v1815 = vpop.f32.mrb[0].mxu0
          %v1816 = vadd.f32 0.0, %v1815
          %v1817 = vpop.f32.mrb[0].mxu0
          %1818 = vmatprep.mubr.f32.mxu0 0.0
          %1819 = vmatmul.mubr.f32.gmra.mrb[0].mxu0 %v1618
          %v1820 = vpop.f32.mrb[0].mxu0
          %v1821 = vadd.f32 0.0, %v1820
          %v1822 = vpop.f32.mrb[0].mxu0
          %1823 = vmatprep.mubr.f32.mxu0 0.0
          %1824 = vmatmul.mubr.f32.gmra.mrb[0].mxu0 %v1619
          %v1825 = vpop.f32.mrb[0].mxu0
          %v1826 = vadd.f32 0.0, %v1825
          %v1827 = vpop.f32.mrb[0].mxu0
          %1828 = vmatprep.mubr.f32.mxu0 0.0
          %1829 = vmatmul.mubr.f32.gmra.mrb[0].mxu0 %v1620
          %v1830 = vpop.f32.mrb[0].mxu0
          %v1831 = vadd.f32 0.0, %v1830
          %v1832 = vpop.f32.mrb[0].mxu0
          %1833 = vmatprep.mubr.f32.mxu0 0.0
          %1834 = vmatmul.mubr.f32.gmra.mrb[0].mxu0 %v1621
          %v1835 = vpop.f32.mrb[0].mxu0
          %v1836 = vadd.f32 0.0, %v1835
          %v1837 = vpop.f32.mrb[0].mxu0
          %1838 = vmatprep.mubr.f32.mxu0 0.0
          %1839 = vmatmul.mubr.f32.gmra.mrb[0].mxu0 %v1622
          %v1840 = vpop.f32.mrb[0].mxu0
          %v1841 = vadd.f32 0.0, %v1840
          %v1842 = vpop.f32.mrb[0].mxu0
          %1843 = vmatprep.mubr.f32.mxu0 0.0
          %1844 = vmatmul.mubr.f32.gmra.mrb[0].mxu0 %v1623
          %v1845 = vpop.f32.mrb[0].mxu0
          %v1846 = vadd.f32 0.0, %v1845
          %v1847 = vpop.f32.mrb[0].mxu0
          %1848 = vmatprep.mubr.f32.mxu0 0.0
          %1849 = vmatmul.mubr.f32.gmra.mrb[0].mxu0 %v1624
          %v1850 = vpop.f32.mrb[0].mxu0
          %v1851 = vadd.f32 0.0, %v1850
          %v1852 = vpop.f32.mrb[0].mxu0
          %1853 = vmatprep.mubr.f32.mxu0 0.0
          %1854 = vmatmul.mubr.f32.gmra.mrb[0].mxu0 %v1625
          %v1855 = vpop.f32.mrb[0].mxu0
          %v1856 = vadd.f32 0.0, %v1855
          %v1857 = vpop.f32.mrb[0].mxu0
          %1858 = vmatprep.mubr.f32.mxu0 0.0
          %1859 = vmatmul.mubr.f32.gmra.mrb[0].mxu0 %v1626
          %v1860 = vpop.f32.mrb[0].mxu0
          %v1861 = vadd.f32 0.0, %v1860
          %v1862 = vpop.f32.mrb[0].mxu0
          %1863 = vmatprep.mubr.f32.mxu0 0.0
          %1864 = vmatmul.mubr.f32.gmra.mrb[0].mxu0 %v1627
          %v1865 = vpop.f32.mrb[0].mxu0
          %v1866 = vadd.f32 0.0, %v1865
          %v1867 = vpop.f32.mrb[0].mxu0
          %1868 = vmatprep.mubr.f32.mxu0 0.0
          %1869 = vmatmul.mubr.f32.gmra.mrb[0].mxu0 %v1628
          %v1870 = vpop.f32.mrb[0].mxu0
          %v1871 = vadd.f32 0.0, %v1870
          %v1872 = vpop.f32.mrb[0].mxu0
          %1873 = vmatprep.mubr.f32.mxu0 0.0
          %1874 = vmatmul.mubr.f32.gmra.mrb[0].mxu0 %v1629
          %v1875 = vpop.f32.mrb[0].mxu0
          %v1876 = vadd.f32 0.0, %v1875
          %v1877 = vpop.f32.mrb[0].mxu0
          %1878 = vmatprep.mubr.f32.mxu0 0.0
          %1879 = vmatmul.mubr.f32.gmra.mrb[0].mxu0 %v1630
          %v1880 = vpop.f32.mrb[0].mxu0
          %v1881 = vadd.f32 0.0, %v1880
          %v1882 = vpop.f32.mrb[0].mxu0
          %1883 = vmatprep.mubr.f32.mxu0 0.0
          %1884 = vmatmul.mubr.f32.gmra.mrb[0].mxu0 %v1631
          %v1885 = vpop.f32.mrb[0].mxu0
          %v1886 = vadd.f32 0.0, %v1885
          %v1887 = vpop.f32.mrb[0].mxu0
          %1888 = vmatprep.mubr.f32.mxu0 0.0
          %1889 = vmatmul.mubr.f32.gmra.mrb[0].mxu0 %v1632
          %v1890 = vpop.f32.mrb[0].mxu0
          %v1891 = vadd.f32 0.0, %v1890
          %v1892 = vpop.f32.mrb[0].mxu0
          %1893 = vmatprep.mubr.f32.mxu0 0.0
          %1894 = vmatmul.mubr.f32.gmra.mrb[0].mxu0 %v1633
          %v1895 = vpop.f32.mrb[0].mxu0
          %v1896 = vadd.f32 0.0, %v1895
          %v1897 = vpop.f32.mrb[0].mxu0
          %1898 = vmatprep.mubr.f32.mxu0 0.0
          %1899 = vmatmul.mubr.f32.gmra.mrb[0].mxu0 %v1634
          %v1900 = vpop.f32.mrb[0].mxu0
          %v1901 = vadd.f32 0.0, %v1900
          %v1902 = vpop.f32.mrb[0].mxu0
          %1903 = vmatprep.mubr.f32.mxu0 0.0
          %1904 = vmatmul.mubr.f32.gmra.mrb[0].mxu0 %v1635
          %v1905 = vpop.f32.mrb[0].mxu0
          %v1906 = vadd.f32 0.0, %v1905
          %v1907 = vpop.f32.mrb[0].mxu0
          %1908 = vmatprep.mubr.f32.mxu0 0.0
          %1909 = vmatmul.mubr.f32.gmra.mrb[0].mxu0 %v1636
          %v1910 = vpop.f32.mrb[0].mxu0
          %v1911 = vadd.f32 0.0, %v1910
          %v1912 = vpop.f32.mrb[0].mxu0
          %1913 = vmatprep.mubr.f32.mxu0 0.0
          %1914 = vmatmul.mubr.f32.gmra.mrb[0].mxu0 %v1637
          %v1915 = vpop.f32.mrb[0].mxu0
          %v1916 = vadd.f32 0.0, %v1915
          %v1917 = vpop.f32.mrb[0].mxu0
          %1918 = vmatprep.mubr.f32.mxu0 0.0
          %1919 = vmatmul.mubr.f32.gmra.mrb[0].mxu0 %v1638
          %v1920 = vpop.f32.mrb[0].mxu0
          %v1921 = vadd.f32 0.0, %v1920
          %v1922 = vpop.f32.mrb[0].mxu0
          %1923 = vmatprep.mubr.f32.mxu0 0.0
          %1924 = vmatmul.mubr.f32.gmra.mrb[0].mxu0 %v1639
          %v1925 = vpop.f32.mrb[0].mxu0
          %v1926 = vadd.f32 0.0, %v1925
          %v1927 = vpop.f32.mrb[0].mxu0
          %1928 = vmatprep.mubr.f32.mxu0 0.0
          %1929 = vmatmul.mubr.f32.gmra.mrb[0].mxu0 %v1640
          %v1930 = vpop.f32.mrb[0].mxu0
          %v1931 = vadd.f32 0.0, %v1930
          %v1932 = vpop.f32.mrb[0].mxu0
          %1933 = vmatprep.mubr.f32.mxu0 0.0
          %1934 = vmatmul.mubr.f32.gmra.mrb[0].mxu0 %v1641
          %v1935 = vpop.f32.mrb[0].mxu0
          %v1936 = vadd.f32 0.0, %v1935
          %v1937 = vpop.f32.mrb[0].mxu0
          %1938 = vmatprep.mubr.f32.mxu0 0.0
          %1939 = vmatmul.mubr.f32.gmra.mrb[0].mxu0 %v1642
          %v1940 = vpop.f32.mrb[0].mxu0
          %v1941 = vadd.f32 0.0, %v1940
          %v1942 = vpop.f32.mrb[0].mxu0
          %1943 = vmatprep.mubr.f32.mxu0 0.0
          %1944 = vmatmul.mubr.f32.gmra.mrb[0].mxu0 %v1643
          %v1945 = vpop.f32.mrb[0].mxu0
          %v1946 = vadd.f32 0.0, %v1945
          %v1947 = vpop.f32.mrb[0].mxu0
          %1948 = vmatprep.mubr.f32.mxu0 0.0
          %1949 = vmatmul.mubr.f32.gmra.mrb[0].mxu0 %v1644
          %v1950 = vpop.f32.mrb[0].mxu0
          %v1951 = vadd.f32 0.0, %v1950
          %v1952 = vpop.f32.mrb[0].mxu0
          %1953 = vmatprep.mubr.f32.mxu0 0.0
          %1954 = vmatmul.mubr.f32.gmra.mrb[0].mxu0 %v1645
          %v1955 = vpop.f32.mrb[0].mxu0
          %v1956 = vadd.f32 0.0, %v1955
          %v1957 = vpop.f32.mrb[0].mxu0
          %1958 = vmatprep.mubr.f32.mxu0 0.0
          %1959 = vmatmul.mubr.f32.gmra.mrb[0].mxu0 %v1646
          %v1960 = vpop.f32.mrb[0].mxu0
          %v1961 = vadd.f32 0.0, %v1960
          %v1962 = vpop.f32.mrb[0].mxu0
          %1963 = vmatprep.mubr.f32.mxu0 0.0
          %1964 = vmatmul.mubr.f32.gmra.mrb[0].mxu0 %v1647
          %v1965 = vpop.f32.mrb[0].mxu0
          %v1966 = vadd.f32 0.0, %v1965
          %v1967 = vpop.f32.mrb[0].mxu0
          %1968 = vmatprep.mubr.f32.mxu0 0.0
          %1969 = vmatmul.mubr.f32.gmra.mrb[0].mxu0 %v1648
          %v1970 = vpop.f32.mrb[0].mxu0
          %v1971 = vadd.f32 0.0, %v1970
          %v1972 = vpop.f32.mrb[0].mxu0
          %1973 = vmatprep.mubr.f32.mxu0 0.0
          %1974 = vmatmul.mubr.f32.gmra.mrb[0].mxu0 %v1649
          %v1975 = vpop.f32.mrb[0].mxu0
          %v1976 = vadd.f32 0.0, %v1975
          %v1977 = vpop.f32.mrb[0].mxu0
          %1978 = vmatprep.mubr.f32.mxu0 0.0
          %1979 = vmatmul.mubr.f32.gmra.mrb[0].mxu0 %v1650
          %v1980 = vpop.f32.mrb[0].mxu0
          %v1981 = vadd.f32 0.0, %v1980
          %v1982 = vpop.f32.mrb[0].mxu0
          %1983 = vmatprep.mubr.f32.mxu0 0.0
          %1984 = vmatmul.mubr.f32.gmra.mrb[0].mxu0 %v1651
          %v1985 = vpop.f32.mrb[0].mxu0
          %v1986 = vadd.f32 0.0, %v1985
          %v1987 = vpop.f32.mrb[0].mxu0
          %1988 = vmatprep.mubr.f32.mxu0 0.0
          %1989 = vmatmul.mubr.f32.gmra.mrb[0].mxu0 %v1652
          %v1990 = vpop.f32.mrb[0].mxu0
          %v1991 = vadd.f32 0.0, %v1990
          %v1992 = vpop.f32.mrb[0].mxu0
          %1993 = vmatprep.mubr.f32.mxu0 0.0
          %1994 = vmatmul.mubr.f32.gmra.mrb[0].mxu0 %v1653
          %v1995 = vpop.f32.mrb[0].mxu0
          %v1996 = vadd.f32 0.0, %v1995
          %v1997 = vpop.f32.mrb[0].mxu0
          %1998 = vmatprep.mubr.f32.mxu0 0.0
          %1999 = vmatmul.mubr.f32.gmra.mrb[0].mxu0 %v1654
          %v2000 = vpop.f32.mrb[0].mxu0
          %v2001 = vadd.f32 0.0, %v2000
          %v2002 = vpop.f32.mrb[0].mxu0
          %2003 = vmatprep.mubr.f32.mxu0 0.0
          %2004 = vmatmul.mubr.f32.gmra.mrb[0].mxu0 %v1655
          %v2005 = vpop.f32.mrb[0].mxu0
          %v2006 = vadd.f32 0.0, %v2005
          %v2007 = vpop.f32.mrb[0].mxu0
          %2008 = vmatprep.mubr.f32.mxu0 0.0
          %2009 = vmatmul.mubr.f32.gmra.mrb[0].mxu0 %v1656
          %v2010 = vpop.f32.mrb[0].mxu0
          %v2011 = vadd.f32 0.0, %v2010
          %v2012 = vpop.f32.mrb[0].mxu0
          %2013 = vmatprep.mubr.f32.mxu0 0.0
          %2014 = vmatmul.mubr.f32.gmra.mrb[0].mxu0 %v1657
          %v2015 = vpop.f32.mrb[0].mxu0
          %v2016 = vadd.f32 0.0, %v2015
          %v2017 = vpop.f32.mrb[0].mxu0
          %2018 = vmatprep.mubr.f32.mxu0 0.0
          %2019 = vmatmul.mubr.f32.gmra.mrb[0].mxu0 %v1658
          %v2020 = vpop.f32.mrb[0].mxu0
          %v2021 = vadd.f32 0.0, %v2020
          %v2022 = vpop.f32.mrb[0].mxu0
          %2023 = vmatprep.mubr.f32.mxu0 0.0
          %2024 = vmatmul.mubr.f32.gmra.mrb[0].mxu0 %v1659
          %v2025 = vpop.f32.mrb[0].mxu0
          %v2026 = vadd.f32 0.0, %v2025
          %v2027 = vpop.f32.mrb[0].mxu0
          %2028 = vmatprep.mubr.f32.mxu0 0.0
          %2029 = vmatmul.mubr.f32.gmra.mrb[0].mxu0 %v1660
          %v2030 = vpop.f32.mrb[0].mxu0
          %v2031 = vadd.f32 0.0, %v2030
          %v2032 = vpop.f32.mrb[0].mxu0
          %2033 = vmatprep.mubr.f32.mxu0 0.0
          %2034 = vmatmul.mubr.f32.gmra.mrb[0].mxu0 %v1661
          %v2035 = vpop.f32.mrb[0].mxu0
          %v2036 = vadd.f32 0.0, %v2035
          %v2037 = vpop.f32.mrb[0].mxu0
          %2038 = vmatprep.mubr.f32.mxu0 0.0
          %2039 = vmatmul.mubr.f32.gmra.mrb[0].mxu0 %v1662
          %v2040 = vpop.f32.mrb[0].mxu0
          %v2041 = vadd.f32 0.0, %v2040
          %v2042 = vpop.f32.mrb[0].mxu0
          %2043 = vmatprep.mubr.f32.mxu0 0.0
          %2044 = vmatmul.mubr.f32.gmra.mrb[0].mxu0 %v1663
          %v2045 = vpop.f32.mrb[0].mxu0
          %v2046 = vadd.f32 0.0, %v2045
          %v2047 = vpop.f32.mrb[0].mxu0
          %2048 = vdwg.mxu0
          %v2049 = vsub.f32 %v908, %v1731
          %v2050 = vsub.f32 %v909, %v1736
          %v2051 = vsub.f32 %v910, %v1741
          %v2052 = vsub.f32 %v911, %v1746
          %v2053 = vsub.f32 %v912, %v1751
          %v2054 = vsub.f32 %v913, %v1756
          %v2055 = vsub.f32 %v914, %v1761
          %v2056 = vsub.f32 %v915, %v1766
          %v2057 = vsub.f32 %v916, %v1771
          %v2058 = vsub.f32 %v917, %v1776
          %v2059 = vsub.f32 %v918, %v1781
          %v2060 = vsub.f32 %v919, %v1786
          %v2061 = vsub.f32 %v920, %v1791
          %v2062 = vsub.f32 %v921, %v1796
          %v2063 = vsub.f32 %v922, %v1801
          %v2064 = vsub.f32 %v923, %v1806
          %v2065 = vsub.f32 %v924, %v1811
          %v2066 = vsub.f32 %v925, %v1816
          %v2067 = vsub.f32 %v926, %v1821
          %v2068 = vsub.f32 %v927, %v1826
          %v2069 = vsub.f32 %v928, %v1831
          %v2070 = vsub.f32 %v929, %v1836
          %v2071 = vsub.f32 %v930, %v1841
          %v2072 = vsub.f32 %v931, %v1846
          %v2073 = vsub.f32 %v932, %v1851
          %v2074 = vsub.f32 %v933, %v1856
          %v2075 = vsub.f32 %v934, %v1861
          %v2076 = vsub.f32 %v935, %v1866
          %v2077 = vsub.f32 %v936, %v1871
          %v2078 = vsub.f32 %v937, %v1876
          %v2079 = vsub.f32 %v938, %v1881
          %v2080 = vsub.f32 %v939, %v1886
          %v2081 = vsub.f32 %v940, %v1891
          %v2082 = vsub.f32 %v941, %v1896
          %v2083 = vsub.f32 %v942, %v1901
          %v2084 = vsub.f32 %v943, %v1906
          %v2085 = vsub.f32 %v944, %v1911
          %v2086 = vsub.f32 %v945, %v1916
          %v2087 = vsub.f32 %v946, %v1921
          %v2088 = vsub.f32 %v947, %v1926
          %v2089 = vsub.f32 %v948, %v1931
          %v2090 = vsub.f32 %v949, %v1936
          %v2091 = vsub.f32 %v950, %v1941
          %v2092 = vsub.f32 %v951, %v1946
          %v2093 = vsub.f32 %v952, %v1951
          %v2094 = vsub.f32 %v953, %v1956
          %v2095 = vsub.f32 %v954, %v1961
          %v2096 = vsub.f32 %v955, %v1966
          %v2097 = vsub.f32 %v956, %v1971
          %v2098 = vsub.f32 %v957, %v1976
          %v2099 = vsub.f32 %v958, %v1981
          %v2100 = vsub.f32 %v959, %v1986
          %v2101 = vsub.f32 %v960, %v1991
          %v2102 = vsub.f32 %v961, %v1996
          %v2103 = vsub.f32 %v962, %v2001
          %v2104 = vsub.f32 %v963, %v2006
          %v2105 = vsub.f32 %v964, %v2011
          %v2106 = vsub.f32 %v965, %v2016
          %v2107 = vsub.f32 %v966, %v2021
          %v2108 = vsub.f32 %v967, %v2026
          %v2109 = vsub.f32 %v968, %v2031
          %v2110 = vsub.f32 %v969, %v2036
          %v2111 = vsub.f32 %v970, %v2041
          %v2112 = vsub.f32 %v971, %v2046
          %v2113 = vpack.c.bf16 %v2050, %v2049
          %v2114 = vpack.c.bf16 %v2052, %v2051
          %v2115 = vpack.c.bf16 %v2054, %v2053
          %v2116 = vpack.c.bf16 %v2056, %v2055
          %v2117 = vpack.c.bf16 %v2058, %v2057
          %v2118 = vpack.c.bf16 %v2060, %v2059
          %v2119 = vpack.c.bf16 %v2062, %v2061
          %v2120 = vpack.c.bf16 %v2064, %v2063
          %v2121 = vpack.c.bf16 %v2066, %v2065
          %v2122 = vpack.c.bf16 %v2068, %v2067
          %v2123 = vpack.c.bf16 %v2070, %v2069
          %v2124 = vpack.c.bf16 %v2072, %v2071
          %v2125 = vpack.c.bf16 %v2074, %v2073
          %v2126 = vpack.c.bf16 %v2076, %v2075
          %v2127 = vpack.c.bf16 %v2078, %v2077
          %v2128 = vpack.c.bf16 %v2080, %v2079
          %v2129 = vpack.c.bf16 %v2082, %v2081
          %v2130 = vpack.c.bf16 %v2084, %v2083
          %v2131 = vpack.c.bf16 %v2086, %v2085
          %v2132 = vpack.c.bf16 %v2088, %v2087
          %v2133 = vpack.c.bf16 %v2090, %v2089
          %v2134 = vpack.c.bf16 %v2092, %v2091
          %v2135 = vpack.c.bf16 %v2094, %v2093
          %v2136 = vpack.c.bf16 %v2096, %v2095
          %v2137 = vpack.c.bf16 %v2098, %v2097
          %v2138 = vpack.c.bf16 %v2100, %v2099
          %v2139 = vpack.c.bf16 %v2102, %v2101
          %v2140 = vpack.c.bf16 %v2104, %v2103
          %v2141 = vpack.c.bf16 %v2106, %v2105
          %v2142 = vpack.c.bf16 %v2108, %v2107
          %v2143 = vpack.c.bf16 %v2110, %v2109
          %v2144 = vpack.c.bf16 %v2112, %v2111
          %v2145 = vld [vmem:[#allocation13] sm:$0xff]
          %v2146 = vld [vmem:[#allocation13 + $0x8] sm:$0xff]
          %v2147 = vld [vmem:[#allocation13 + $0x10] sm:$0xff]
          %v2148 = vld [vmem:[#allocation13 + $0x18] sm:$0xff]
          %v2149 = vld [vmem:[#allocation13 + $0x20] sm:$0xff]
          %v2150 = vld [vmem:[#allocation13 + $0x28] sm:$0xff]
          %v2151 = vld [vmem:[#allocation13 + $0x30] sm:$0xff]
          %v2152 = vld [vmem:[#allocation13 + $0x38] sm:$0xff]
          %v2153 = vld [vmem:[#allocation13 + $0x40] sm:$0xff]
          %v2154 = vld [vmem:[#allocation13 + $0x48] sm:$0xff]
          %v2155 = vld [vmem:[#allocation13 + $0x50] sm:$0xff]
          %v2156 = vld [vmem:[#allocation13 + $0x58] sm:$0xff]
          %v2157 = vld [vmem:[#allocation13 + $0x60] sm:$0xff]
          %v2158 = vld [vmem:[#allocation13 + $0x68] sm:$0xff]
          %v2159 = vld [vmem:[#allocation13 + $0x70] sm:$0xff]
          %v2160 = vld [vmem:[#allocation13 + $0x78] sm:$0xff]
          %v2161 = vld [vmem:[%s11] sm:$0x3]
          %v2163 = vlaneseq
          %v2164 = vshrl.u32 %v2163, 7
          %v2165 = vsub.s32 0, %v2164
          %v2166 = vrot.slane %v2161, %v2165
          %v2167 = vlaneseq
          %v2168 = vshrl.u32 %v2167, 7
          %v2169 = vsub.s32 1, %v2168
          %v2170 = vrot.slane %v2161, %v2169
          %v2189 = vunpack.c.l.b16 %v2145
          %v2190 = vunpack.c.h.b16 %v2145
          %v2191 = vunpack.c.l.b16 %v2146
          %v2192 = vunpack.c.h.b16 %v2146
          %v2193 = vunpack.c.l.b16 %v2147
          %v2194 = vunpack.c.h.b16 %v2147
          %v2195 = vunpack.c.l.b16 %v2148
          %v2196 = vunpack.c.h.b16 %v2148
          %v2197 = vunpack.c.l.b16 %v2149
          %v2198 = vunpack.c.h.b16 %v2149
          %v2199 = vunpack.c.l.b16 %v2150
          %v2200 = vunpack.c.h.b16 %v2150
          %v2201 = vunpack.c.l.b16 %v2151
          %v2202 = vunpack.c.h.b16 %v2151
          %v2203 = vunpack.c.l.b16 %v2152
          %v2204 = vunpack.c.h.b16 %v2152
          %v2205 = vunpack.c.l.b16 %v2153
          %v2206 = vunpack.c.h.b16 %v2153
          %v2207 = vunpack.c.l.b16 %v2154
          %v2208 = vunpack.c.h.b16 %v2154
          %v2209 = vunpack.c.l.b16 %v2155
          %v2210 = vunpack.c.h.b16 %v2155
          %v2211 = vunpack.c.l.b16 %v2156
          %v2212 = vunpack.c.h.b16 %v2156
          %v2213 = vunpack.c.l.b16 %v2157
          %v2214 = vunpack.c.h.b16 %v2157
          %v2215 = vunpack.c.l.b16 %v2158
          %v2216 = vunpack.c.h.b16 %v2158
          %v2217 = vunpack.c.l.b16 %v2159
          %v2218 = vunpack.c.h.b16 %v2159
          %v2219 = vunpack.c.l.b16 %v2160
          %v2220 = vunpack.c.h.b16 %v2160
          %v2221 = vpack.c.b16 %v2191, %v2189
          %v2222 = vpack.c.b16 %v2192, %v2190
          %v2223 = vpack.c.b16 %v2195, %v2193
          %v2224 = vpack.c.b16 %v2196, %v2194
          %v2225 = vpack.c.b16 %v2199, %v2197
          %v2226 = vpack.c.b16 %v2200, %v2198
          %v2227 = vpack.c.b16 %v2203, %v2201
          %v2228 = vpack.c.b16 %v2204, %v2202
          %v2229 = vpack.c.b16 %v2207, %v2205
          %v2230 = vpack.c.b16 %v2208, %v2206
          %v2231 = vpack.c.b16 %v2211, %v2209
          %v2232 = vpack.c.b16 %v2212, %v2210
          %v2233 = vpack.c.b16 %v2215, %v2213
          %v2234 = vpack.c.b16 %v2216, %v2214
          %v2235 = vpack.c.b16 %v2219, %v2217
          %v2236 = vpack.c.b16 %v2220, %v2218
          %2253 = vmatprep.subr.bf16.mxu0 %v2222
          %2254 = vmatpush1.bf16.msra.mxu0 %v2221
          %2255 = vmatprep.subr.bf16.mxu0 %v2224
          %2256 = vmatpush1.bf16.msra.mxu0 %v2223
          %2257 = vmatprep.subr.bf16.mxu0 %v2226
          %2258 = vmatpush1.bf16.msra.mxu0 %v2225
          %2259 = vmatprep.subr.bf16.mxu0 %v2228
          %2260 = vmatpush1.bf16.msra.mxu0 %v2227
          %2261 = vmatprep.subr.bf16.mxu0 %v2230
          %2262 = vmatpush1.bf16.msra.mxu0 %v2229
          %2263 = vmatprep.subr.bf16.mxu0 %v2232
          %2264 = vmatpush1.bf16.msra.mxu0 %v2231
          %2265 = vmatprep.subr.bf16.mxu0 %v2234
          %2266 = vmatpush1.bf16.msra.mxu0 %v2233
          %2267 = vmatprep.subr.bf16.mxu0 %v2236
          %2268 = vmatpush1.bf16.msra.mxu0 %v2235
          %2269 = vmatprep.subr.bf16.mxu0 0
          %2270 = vmatpush1.bf16.msra.mxu0 0
          %2271 = vmatprep.subr.bf16.mxu0 0
          %2272 = vmatpush1.bf16.msra.mxu0 0
          %2273 = vmatprep.subr.bf16.mxu0 0
          %2274 = vmatpush1.bf16.msra.mxu0 0
          %2275 = vmatprep.subr.bf16.mxu0 0
          %2276 = vmatpush1.bf16.msra.mxu0 0
          %2277 = vmatprep.subr.bf16.mxu0 0
          %2278 = vmatpush1.bf16.msra.mxu0 0
          %2279 = vmatprep.subr.bf16.mxu0 0
          %2280 = vmatpush1.bf16.msra.mxu0 0
          %2281 = vmatprep.subr.bf16.mxu0 0
          %2282 = vmatpush1.bf16.msra.mxu0 0
          %2283 = vmatprep.subr.bf16.mxu0 0
          %2284 = vmatpush1.bf16.msra.mxu0 0
          %2285 = vmatprep.mubr.bf16.mxu0 0
          %2286 = vmatmul.mubr.bf16.gmra.mrb[0].mxu0 %v2113
          %v2287 = vpop.f32.mrb[0].mxu0
          %v2288 = vadd.f32 %v2166, %v2287
          %v2289 = vpop.f32.mrb[0].mxu0
          %v2290 = vadd.f32 %v2170, %v2289
          %v2291 = vpop.f32.mrb[0].mxu0
          %v2292 = vadd.f32 %v2166, %v2291
          %v2293 = vpop.f32.mrb[0].mxu0
          %v2294 = vadd.f32 %v2170, %v2293
          %2295 = vmatprep.mubr.bf16.mxu0 0
          %2296 = vmatmul.mubr.bf16.gmra.mrb[0].mxu0 %v2114
          %v2297 = vpop.f32.mrb[0].mxu0
          %v2298 = vadd.f32 %v2166, %v2297
          %v2299 = vpop.f32.mrb[0].mxu0
          %v2300 = vadd.f32 %v2170, %v2299
          %v2301 = vpop.f32.mrb[0].mxu0
          %v2302 = vadd.f32 %v2166, %v2301
          %v2303 = vpop.f32.mrb[0].mxu0
          %v2304 = vadd.f32 %v2170, %v2303
          %2305 = vmatprep.mubr.bf16.mxu0 0
          %2306 = vmatmul.mubr.bf16.gmra.mrb[0].mxu0 %v2115
          %v2307 = vpop.f32.mrb[0].mxu0
          %v2308 = vadd.f32 %v2166, %v2307
          %v2309 = vpop.f32.mrb[0].mxu0
          %v2310 = vadd.f32 %v2170, %v2309
          %v2311 = vpop.f32.mrb[0].mxu0
          %v2312 = vadd.f32 %v2166, %v2311
          %v2313 = vpop.f32.mrb[0].mxu0
          %v2314 = vadd.f32 %v2170, %v2313
          %2315 = vmatprep.mubr.bf16.mxu0 0
          %2316 = vmatmul.mubr.bf16.gmra.mrb[0].mxu0 %v2116
          %v2317 = vpop.f32.mrb[0].mxu0
          %v2318 = vadd.f32 %v2166, %v2317
          %v2319 = vpop.f32.mrb[0].mxu0
          %v2320 = vadd.f32 %v2170, %v2319
          %v2321 = vpop.f32.mrb[0].mxu0
          %v2322 = vadd.f32 %v2166, %v2321
          %v2323 = vpop.f32.mrb[0].mxu0
          %v2324 = vadd.f32 %v2170, %v2323
          %2325 = vmatprep.mubr.bf16.mxu0 0
          %2326 = vmatmul.mubr.bf16.gmra.mrb[0].mxu0 %v2117
          %v2327 = vpop.f32.mrb[0].mxu0
          %v2328 = vadd.f32 %v2166, %v2327
          %v2329 = vpop.f32.mrb[0].mxu0
          %v2330 = vadd.f32 %v2170, %v2329
          %v2331 = vpop.f32.mrb[0].mxu0
          %v2332 = vadd.f32 %v2166, %v2331
          %v2333 = vpop.f32.mrb[0].mxu0
          %v2334 = vadd.f32 %v2170, %v2333
          %2335 = vmatprep.mubr.bf16.mxu0 0
          %2336 = vmatmul.mubr.bf16.gmra.mrb[0].mxu0 %v2118
          %v2337 = vpop.f32.mrb[0].mxu0
          %v2338 = vadd.f32 %v2166, %v2337
          %v2339 = vpop.f32.mrb[0].mxu0
          %v2340 = vadd.f32 %v2170, %v2339
          %v2341 = vpop.f32.mrb[0].mxu0
          %v2342 = vadd.f32 %v2166, %v2341
          %v2343 = vpop.f32.mrb[0].mxu0
          %v2344 = vadd.f32 %v2170, %v2343
          %2345 = vmatprep.mubr.bf16.mxu0 0
          %2346 = vmatmul.mubr.bf16.gmra.mrb[0].mxu0 %v2119
          %v2347 = vpop.f32.mrb[0].mxu0
          %v2348 = vadd.f32 %v2166, %v2347
          %v2349 = vpop.f32.mrb[0].mxu0
          %v2350 = vadd.f32 %v2170, %v2349
          %v2351 = vpop.f32.mrb[0].mxu0
          %v2352 = vadd.f32 %v2166, %v2351
          %v2353 = vpop.f32.mrb[0].mxu0
          %v2354 = vadd.f32 %v2170, %v2353
          %2355 = vmatprep.mubr.bf16.mxu0 0
          %2356 = vmatmul.mubr.bf16.gmra.mrb[0].mxu0 %v2120
          %v2357 = vpop.f32.mrb[0].mxu0
          %v2358 = vadd.f32 %v2166, %v2357
          %v2359 = vpop.f32.mrb[0].mxu0
          %v2360 = vadd.f32 %v2170, %v2359
          %v2361 = vpop.f32.mrb[0].mxu0
          %v2362 = vadd.f32 %v2166, %v2361
          %v2363 = vpop.f32.mrb[0].mxu0
          %v2364 = vadd.f32 %v2170, %v2363
          %2365 = vmatprep.mubr.bf16.mxu0 0
          %2366 = vmatmul.mubr.bf16.gmra.mrb[0].mxu0 %v2121
          %v2367 = vpop.f32.mrb[0].mxu0
          %v2368 = vadd.f32 %v2166, %v2367
          %v2369 = vpop.f32.mrb[0].mxu0
          %v2370 = vadd.f32 %v2170, %v2369
          %v2371 = vpop.f32.mrb[0].mxu0
          %v2372 = vadd.f32 %v2166, %v2371
          %v2373 = vpop.f32.mrb[0].mxu0
          %v2374 = vadd.f32 %v2170, %v2373
          %2375 = vmatprep.mubr.bf16.mxu0 0
          %2376 = vmatmul.mubr.bf16.gmra.mrb[0].mxu0 %v2122
          %v2377 = vpop.f32.mrb[0].mxu0
          %v2378 = vadd.f32 %v2166, %v2377
          %v2379 = vpop.f32.mrb[0].mxu0
          %v2380 = vadd.f32 %v2170, %v2379
          %v2381 = vpop.f32.mrb[0].mxu0
          %v2382 = vadd.f32 %v2166, %v2381
          %v2383 = vpop.f32.mrb[0].mxu0
          %v2384 = vadd.f32 %v2170, %v2383
          %2385 = vmatprep.mubr.bf16.mxu0 0
          %2386 = vmatmul.mubr.bf16.gmra.mrb[0].mxu0 %v2123
          %v2387 = vpop.f32.mrb[0].mxu0
          %v2388 = vadd.f32 %v2166, %v2387
          %v2389 = vpop.f32.mrb[0].mxu0
          %v2390 = vadd.f32 %v2170, %v2389
          %v2391 = vpop.f32.mrb[0].mxu0
          %v2392 = vadd.f32 %v2166, %v2391
          %v2393 = vpop.f32.mrb[0].mxu0
          %v2394 = vadd.f32 %v2170, %v2393
          %2395 = vmatprep.mubr.bf16.mxu0 0
          %2396 = vmatmul.mubr.bf16.gmra.mrb[0].mxu0 %v2124
          %v2397 = vpop.f32.mrb[0].mxu0
          %v2398 = vadd.f32 %v2166, %v2397
          %v2399 = vpop.f32.mrb[0].mxu0
          %v2400 = vadd.f32 %v2170, %v2399
          %v2401 = vpop.f32.mrb[0].mxu0
          %v2402 = vadd.f32 %v2166, %v2401
          %v2403 = vpop.f32.mrb[0].mxu0
          %v2404 = vadd.f32 %v2170, %v2403
          %2405 = vmatprep.mubr.bf16.mxu0 0
          %2406 = vmatmul.mubr.bf16.gmra.mrb[0].mxu0 %v2125
          %v2407 = vpop.f32.mrb[0].mxu0
          %v2408 = vadd.f32 %v2166, %v2407
          %v2409 = vpop.f32.mrb[0].mxu0
          %v2410 = vadd.f32 %v2170, %v2409
          %v2411 = vpop.f32.mrb[0].mxu0
          %v2412 = vadd.f32 %v2166, %v2411
          %v2413 = vpop.f32.mrb[0].mxu0
          %v2414 = vadd.f32 %v2170, %v2413
          %2415 = vmatprep.mubr.bf16.mxu0 0
          %2416 = vmatmul.mubr.bf16.gmra.mrb[0].mxu0 %v2126
          %v2417 = vpop.f32.mrb[0].mxu0
          %v2418 = vadd.f32 %v2166, %v2417
          %v2419 = vpop.f32.mrb[0].mxu0
          %v2420 = vadd.f32 %v2170, %v2419
          %v2421 = vpop.f32.mrb[0].mxu0
          %v2422 = vadd.f32 %v2166, %v2421
          %v2423 = vpop.f32.mrb[0].mxu0
          %v2424 = vadd.f32 %v2170, %v2423
          %2425 = vmatprep.mubr.bf16.mxu0 0
          %2426 = vmatmul.mubr.bf16.gmra.mrb[0].mxu0 %v2127
          %v2427 = vpop.f32.mrb[0].mxu0
          %v2428 = vadd.f32 %v2166, %v2427
          %v2429 = vpop.f32.mrb[0].mxu0
          %v2430 = vadd.f32 %v2170, %v2429
          %v2431 = vpop.f32.mrb[0].mxu0
          %v2432 = vadd.f32 %v2166, %v2431
          %v2433 = vpop.f32.mrb[0].mxu0
          %v2434 = vadd.f32 %v2170, %v2433
          %2435 = vmatprep.mubr.bf16.mxu0 0
          %2436 = vmatmul.mubr.bf16.gmra.mrb[0].mxu0 %v2128
          %v2437 = vpop.f32.mrb[0].mxu0
          %v2438 = vadd.f32 %v2166, %v2437
          %v2439 = vpop.f32.mrb[0].mxu0
          %v2440 = vadd.f32 %v2170, %v2439
          %v2441 = vpop.f32.mrb[0].mxu0
          %v2442 = vadd.f32 %v2166, %v2441
          %v2443 = vpop.f32.mrb[0].mxu0
          %v2444 = vadd.f32 %v2170, %v2443
          %2445 = vmatprep.mubr.bf16.mxu0 0
          %2446 = vmatmul.mubr.bf16.gmra.mrb[0].mxu0 %v2129
          %v2447 = vpop.f32.mrb[0].mxu0
          %v2448 = vadd.f32 %v2166, %v2447
          %v2449 = vpop.f32.mrb[0].mxu0
          %v2450 = vadd.f32 %v2170, %v2449
          %v2451 = vpop.f32.mrb[0].mxu0
          %v2452 = vadd.f32 %v2166, %v2451
          %v2453 = vpop.f32.mrb[0].mxu0
          %v2454 = vadd.f32 %v2170, %v2453
          %2455 = vmatprep.mubr.bf16.mxu0 0
          %2456 = vmatmul.mubr.bf16.gmra.mrb[0].mxu0 %v2130
          %v2457 = vpop.f32.mrb[0].mxu0
          %v2458 = vadd.f32 %v2166, %v2457
          %v2459 = vpop.f32.mrb[0].mxu0
          %v2460 = vadd.f32 %v2170, %v2459
          %v2461 = vpop.f32.mrb[0].mxu0
          %v2462 = vadd.f32 %v2166, %v2461
          %v2463 = vpop.f32.mrb[0].mxu0
          %v2464 = vadd.f32 %v2170, %v2463
          %2465 = vmatprep.mubr.bf16.mxu0 0
          %2466 = vmatmul.mubr.bf16.gmra.mrb[0].mxu0 %v2131
          %v2467 = vpop.f32.mrb[0].mxu0
          %v2468 = vadd.f32 %v2166, %v2467
          %v2469 = vpop.f32.mrb[0].mxu0
          %v2470 = vadd.f32 %v2170, %v2469
          %v2471 = vpop.f32.mrb[0].mxu0
          %v2472 = vadd.f32 %v2166, %v2471
          %v2473 = vpop.f32.mrb[0].mxu0
          %v2474 = vadd.f32 %v2170, %v2473
          %2475 = vmatprep.mubr.bf16.mxu0 0
          %2476 = vmatmul.mubr.bf16.gmra.mrb[0].mxu0 %v2132
          %v2477 = vpop.f32.mrb[0].mxu0
          %v2478 = vadd.f32 %v2166, %v2477
          %v2479 = vpop.f32.mrb[0].mxu0
          %v2480 = vadd.f32 %v2170, %v2479
          %v2481 = vpop.f32.mrb[0].mxu0
          %v2482 = vadd.f32 %v2166, %v2481
          %v2483 = vpop.f32.mrb[0].mxu0
          %v2484 = vadd.f32 %v2170, %v2483
          %2485 = vmatprep.mubr.bf16.mxu0 0
          %2486 = vmatmul.mubr.bf16.gmra.mrb[0].mxu0 %v2133
          %v2487 = vpop.f32.mrb[0].mxu0
          %v2488 = vadd.f32 %v2166, %v2487
          %v2489 = vpop.f32.mrb[0].mxu0
          %v2490 = vadd.f32 %v2170, %v2489
          %v2491 = vpop.f32.mrb[0].mxu0
          %v2492 = vadd.f32 %v2166, %v2491
          %v2493 = vpop.f32.mrb[0].mxu0
          %v2494 = vadd.f32 %v2170, %v2493
          %2495 = vmatprep.mubr.bf16.mxu0 0
          %2496 = vmatmul.mubr.bf16.gmra.mrb[0].mxu0 %v2134
          %v2497 = vpop.f32.mrb[0].mxu0
          %v2498 = vadd.f32 %v2166, %v2497
          %v2499 = vpop.f32.mrb[0].mxu0
          %v2500 = vadd.f32 %v2170, %v2499
          %v2501 = vpop.f32.mrb[0].mxu0
          %v2502 = vadd.f32 %v2166, %v2501
          %v2503 = vpop.f32.mrb[0].mxu0
          %v2504 = vadd.f32 %v2170, %v2503
          %2505 = vmatprep.mubr.bf16.mxu0 0
          %2506 = vmatmul.mubr.bf16.gmra.mrb[0].mxu0 %v2135
          %v2507 = vpop.f32.mrb[0].mxu0
          %v2508 = vadd.f32 %v2166, %v2507
          %v2509 = vpop.f32.mrb[0].mxu0
          %v2510 = vadd.f32 %v2170, %v2509
          %v2511 = vpop.f32.mrb[0].mxu0
          %v2512 = vadd.f32 %v2166, %v2511
          %v2513 = vpop.f32.mrb[0].mxu0
          %v2514 = vadd.f32 %v2170, %v2513
          %2515 = vmatprep.mubr.bf16.mxu0 0
          %2516 = vmatmul.mubr.bf16.gmra.mrb[0].mxu0 %v2136
          %v2517 = vpop.f32.mrb[0].mxu0
          %v2518 = vadd.f32 %v2166, %v2517
          %v2519 = vpop.f32.mrb[0].mxu0
          %v2520 = vadd.f32 %v2170, %v2519
          %v2521 = vpop.f32.mrb[0].mxu0
          %v2522 = vadd.f32 %v2166, %v2521
          %v2523 = vpop.f32.mrb[0].mxu0
          %v2524 = vadd.f32 %v2170, %v2523
          %2525 = vmatprep.mubr.bf16.mxu0 0
          %2526 = vmatmul.mubr.bf16.gmra.mrb[0].mxu0 %v2137
          %v2527 = vpop.f32.mrb[0].mxu0
          %v2528 = vadd.f32 %v2166, %v2527
          %v2529 = vpop.f32.mrb[0].mxu0
          %v2530 = vadd.f32 %v2170, %v2529
          %v2531 = vpop.f32.mrb[0].mxu0
          %v2532 = vadd.f32 %v2166, %v2531
          %v2533 = vpop.f32.mrb[0].mxu0
          %v2534 = vadd.f32 %v2170, %v2533
          %2535 = vmatprep.mubr.bf16.mxu0 0
          %2536 = vmatmul.mubr.bf16.gmra.mrb[0].mxu0 %v2138
          %v2537 = vpop.f32.mrb[0].mxu0
          %v2538 = vadd.f32 %v2166, %v2537
          %v2539 = vpop.f32.mrb[0].mxu0
          %v2540 = vadd.f32 %v2170, %v2539
          %v2541 = vpop.f32.mrb[0].mxu0
          %v2542 = vadd.f32 %v2166, %v2541
          %v2543 = vpop.f32.mrb[0].mxu0
          %v2544 = vadd.f32 %v2170, %v2543
          %2545 = vmatprep.mubr.bf16.mxu0 0
          %2546 = vmatmul.mubr.bf16.gmra.mrb[0].mxu0 %v2139
          %v2547 = vpop.f32.mrb[0].mxu0
          %v2548 = vadd.f32 %v2166, %v2547
          %v2549 = vpop.f32.mrb[0].mxu0
          %v2550 = vadd.f32 %v2170, %v2549
          %v2551 = vpop.f32.mrb[0].mxu0
          %v2552 = vadd.f32 %v2166, %v2551
          %v2553 = vpop.f32.mrb[0].mxu0
          %v2554 = vadd.f32 %v2170, %v2553
          %2555 = vmatprep.mubr.bf16.mxu0 0
          %2556 = vmatmul.mubr.bf16.gmra.mrb[0].mxu0 %v2140
          %v2557 = vpop.f32.mrb[0].mxu0
          %v2558 = vadd.f32 %v2166, %v2557
          %v2559 = vpop.f32.mrb[0].mxu0
          %v2560 = vadd.f32 %v2170, %v2559
          %v2561 = vpop.f32.mrb[0].mxu0
          %v2562 = vadd.f32 %v2166, %v2561
          %v2563 = vpop.f32.mrb[0].mxu0
          %v2564 = vadd.f32 %v2170, %v2563
          %2565 = vmatprep.mubr.bf16.mxu0 0
          %2566 = vmatmul.mubr.bf16.gmra.mrb[0].mxu0 %v2141
          %v2567 = vpop.f32.mrb[0].mxu0
          %v2568 = vadd.f32 %v2166, %v2567
          %v2569 = vpop.f32.mrb[0].mxu0
          %v2570 = vadd.f32 %v2170, %v2569
          %v2571 = vpop.f32.mrb[0].mxu0
          %v2572 = vadd.f32 %v2166, %v2571
          %v2573 = vpop.f32.mrb[0].mxu0
          %v2574 = vadd.f32 %v2170, %v2573
          %2575 = vmatprep.mubr.bf16.mxu0 0
          %2576 = vmatmul.mubr.bf16.gmra.mrb[0].mxu0 %v2142
          %v2577 = vpop.f32.mrb[0].mxu0
          %v2578 = vadd.f32 %v2166, %v2577
          %v2579 = vpop.f32.mrb[0].mxu0
          %v2580 = vadd.f32 %v2170, %v2579
          %v2581 = vpop.f32.mrb[0].mxu0
          %v2582 = vadd.f32 %v2166, %v2581
          %v2583 = vpop.f32.mrb[0].mxu0
          %v2584 = vadd.f32 %v2170, %v2583
          %2585 = vmatprep.mubr.bf16.mxu0 0
          %2586 = vmatmul.mubr.bf16.gmra.mrb[0].mxu0 %v2143
          %v2587 = vpop.f32.mrb[0].mxu0
          %v2588 = vadd.f32 %v2166, %v2587
          %v2589 = vpop.f32.mrb[0].mxu0
          %v2590 = vadd.f32 %v2170, %v2589
          %v2591 = vpop.f32.mrb[0].mxu0
          %v2592 = vadd.f32 %v2166, %v2591
          %v2593 = vpop.f32.mrb[0].mxu0
          %v2594 = vadd.f32 %v2170, %v2593
          %2595 = vmatprep.mubr.bf16.mxu0 0
          %2596 = vmatmul.mubr.bf16.gmra.mrb[0].mxu0 %v2144
          %v2597 = vpop.f32.mrb[0].mxu0
          %v2598 = vadd.f32 %v2166, %v2597
          %v2599 = vpop.f32.mrb[0].mxu0
          %v2600 = vadd.f32 %v2170, %v2599
          %v2601 = vpop.f32.mrb[0].mxu0
          %v2602 = vadd.f32 %v2166, %v2601
          %v2603 = vpop.f32.mrb[0].mxu0
          %v2604 = vadd.f32 %v2170, %v2603
          %2605 = vdwg.mxu0
          %vm2606 = vcmp.gt.f32.partialorder %v2288, 0.0
          %vm2607 = vcmp.gt.f32.partialorder %v2290, 0.0
          %vm2608 = vcmp.gt.f32.partialorder %v2292, 0.0
          %vm2609 = vcmp.gt.f32.partialorder %v2294, 0.0
          %vm2610 = vcmp.gt.f32.partialorder %v2298, 0.0
          %vm2611 = vcmp.gt.f32.partialorder %v2300, 0.0
          %vm2612 = vcmp.gt.f32.partialorder %v2302, 0.0
          %vm2613 = vcmp.gt.f32.partialorder %v2304, 0.0
          %vm2614 = vcmp.gt.f32.partialorder %v2308, 0.0
          %vm2615 = vcmp.gt.f32.partialorder %v2310, 0.0
          %vm2616 = vcmp.gt.f32.partialorder %v2312, 0.0
          %vm2617 = vcmp.gt.f32.partialorder %v2314, 0.0
          %vm2618 = vcmp.gt.f32.partialorder %v2318, 0.0
          %vm2619 = vcmp.gt.f32.partialorder %v2320, 0.0
          %vm2620 = vcmp.gt.f32.partialorder %v2322, 0.0
          %vm2621 = vcmp.gt.f32.partialorder %v2324, 0.0
          %vm2622 = vcmp.gt.f32.partialorder %v2328, 0.0
          %vm2623 = vcmp.gt.f32.partialorder %v2330, 0.0
          %vm2624 = vcmp.gt.f32.partialorder %v2332, 0.0
          %vm2625 = vcmp.gt.f32.partialorder %v2334, 0.0
          %vm2626 = vcmp.gt.f32.partialorder %v2338, 0.0
          %vm2627 = vcmp.gt.f32.partialorder %v2340, 0.0
          %vm2628 = vcmp.gt.f32.partialorder %v2342, 0.0
          %vm2629 = vcmp.gt.f32.partialorder %v2344, 0.0
          %vm2630 = vcmp.gt.f32.partialorder %v2348, 0.0
          %vm2631 = vcmp.gt.f32.partialorder %v2350, 0.0
          %vm2632 = vcmp.gt.f32.partialorder %v2352, 0.0
          %vm2633 = vcmp.gt.f32.partialorder %v2354, 0.0
          %vm2634 = vcmp.gt.f32.partialorder %v2358, 0.0
          %vm2635 = vcmp.gt.f32.partialorder %v2360, 0.0
          %vm2636 = vcmp.gt.f32.partialorder %v2362, 0.0
          %vm2637 = vcmp.gt.f32.partialorder %v2364, 0.0
          %vm2638 = vcmp.gt.f32.partialorder %v2368, 0.0
          %vm2639 = vcmp.gt.f32.partialorder %v2370, 0.0
          %vm2640 = vcmp.gt.f32.partialorder %v2372, 0.0
          %vm2641 = vcmp.gt.f32.partialorder %v2374, 0.0
          %vm2642 = vcmp.gt.f32.partialorder %v2378, 0.0
          %vm2643 = vcmp.gt.f32.partialorder %v2380, 0.0
          %vm2644 = vcmp.gt.f32.partialorder %v2382, 0.0
          %vm2645 = vcmp.gt.f32.partialorder %v2384, 0.0
          %vm2646 = vcmp.gt.f32.partialorder %v2388, 0.0
          %vm2647 = vcmp.gt.f32.partialorder %v2390, 0.0
          %vm2648 = vcmp.gt.f32.partialorder %v2392, 0.0
          %vm2649 = vcmp.gt.f32.partialorder %v2394, 0.0
          %vm2650 = vcmp.gt.f32.partialorder %v2398, 0.0
          %vm2651 = vcmp.gt.f32.partialorder %v2400, 0.0
          %vm2652 = vcmp.gt.f32.partialorder %v2402, 0.0
          %vm2653 = vcmp.gt.f32.partialorder %v2404, 0.0
          %vm2654 = vcmp.gt.f32.partialorder %v2408, 0.0
          %vm2655 = vcmp.gt.f32.partialorder %v2410, 0.0
          %vm2656 = vcmp.gt.f32.partialorder %v2412, 0.0
          %vm2657 = vcmp.gt.f32.partialorder %v2414, 0.0
          %vm2658 = vcmp.gt.f32.partialorder %v2418, 0.0
          %vm2659 = vcmp.gt.f32.partialorder %v2420, 0.0
          %vm2660 = vcmp.gt.f32.partialorder %v2422, 0.0
          %vm2661 = vcmp.gt.f32.partialorder %v2424, 0.0
          %vm2662 = vcmp.gt.f32.partialorder %v2428, 0.0
          %vm2663 = vcmp.gt.f32.partialorder %v2430, 0.0
          %vm2664 = vcmp.gt.f32.partialorder %v2432, 0.0
          %vm2665 = vcmp.gt.f32.partialorder %v2434, 0.0
          %vm2666 = vcmp.gt.f32.partialorder %v2438, 0.0
          %vm2667 = vcmp.gt.f32.partialorder %v2440, 0.0
          %vm2668 = vcmp.gt.f32.partialorder %v2442, 0.0
          %vm2669 = vcmp.gt.f32.partialorder %v2444, 0.0
          %vm2670 = vcmp.gt.f32.partialorder %v2448, 0.0
          %vm2671 = vcmp.gt.f32.partialorder %v2450, 0.0
          %vm2672 = vcmp.gt.f32.partialorder %v2452, 0.0
          %vm2673 = vcmp.gt.f32.partialorder %v2454, 0.0
          %vm2674 = vcmp.gt.f32.partialorder %v2458, 0.0
          %vm2675 = vcmp.gt.f32.partialorder %v2460, 0.0
          %vm2676 = vcmp.gt.f32.partialorder %v2462, 0.0
          %vm2677 = vcmp.gt.f32.partialorder %v2464, 0.0
          %vm2678 = vcmp.gt.f32.partialorder %v2468, 0.0
          %vm2679 = vcmp.gt.f32.partialorder %v2470, 0.0
          %vm2680 = vcmp.gt.f32.partialorder %v2472, 0.0
          %vm2681 = vcmp.gt.f32.partialorder %v2474, 0.0
          %vm2682 = vcmp.gt.f32.partialorder %v2478, 0.0
          %vm2683 = vcmp.gt.f32.partialorder %v2480, 0.0
          %vm2684 = vcmp.gt.f32.partialorder %v2482, 0.0
          %vm2685 = vcmp.gt.f32.partialorder %v2484, 0.0
          %vm2686 = vcmp.gt.f32.partialorder %v2488, 0.0
          %vm2687 = vcmp.gt.f32.partialorder %v2490, 0.0
          %vm2688 = vcmp.gt.f32.partialorder %v2492, 0.0
          %vm2689 = vcmp.gt.f32.partialorder %v2494, 0.0
          %vm2690 = vcmp.gt.f32.partialorder %v2498, 0.0
          %vm2691 = vcmp.gt.f32.partialorder %v2500, 0.0
          %vm2692 = vcmp.gt.f32.partialorder %v2502, 0.0
          %vm2693 = vcmp.gt.f32.partialorder %v2504, 0.0
          %vm2694 = vcmp.gt.f32.partialorder %v2508, 0.0
          %vm2695 = vcmp.gt.f32.partialorder %v2510, 0.0
          %vm2696 = vcmp.gt.f32.partialorder %v2512, 0.0
          %vm2697 = vcmp.gt.f32.partialorder %v2514, 0.0
          %vm2698 = vcmp.gt.f32.partialorder %v2518, 0.0
          %vm2699 = vcmp.gt.f32.partialorder %v2520, 0.0
          %vm2700 = vcmp.gt.f32.partialorder %v2522, 0.0
          %vm2701 = vcmp.gt.f32.partialorder %v2524, 0.0
          %vm2702 = vcmp.gt.f32.partialorder %v2528, 0.0
          %vm2703 = vcmp.gt.f32.partialorder %v2530, 0.0
          %vm2704 = vcmp.gt.f32.partialorder %v2532, 0.0
          %vm2705 = vcmp.gt.f32.partialorder %v2534, 0.0
          %vm2706 = vcmp.gt.f32.partialorder %v2538, 0.0
          %vm2707 = vcmp.gt.f32.partialorder %v2540, 0.0
          %vm2708 = vcmp.gt.f32.partialorder %v2542, 0.0
          %vm2709 = vcmp.gt.f32.partialorder %v2544, 0.0
          %vm2710 = vcmp.gt.f32.partialorder %v2548, 0.0
          %vm2711 = vcmp.gt.f32.partialorder %v2550, 0.0
          %vm2712 = vcmp.gt.f32.partialorder %v2552, 0.0
          %vm2713 = vcmp.gt.f32.partialorder %v2554, 0.0
          %vm2714 = vcmp.gt.f32.partialorder %v2558, 0.0
          %vm2715 = vcmp.gt.f32.partialorder %v2560, 0.0
          %vm2716 = vcmp.gt.f32.partialorder %v2562, 0.0
          %vm2717 = vcmp.gt.f32.partialorder %v2564, 0.0
          %vm2718 = vcmp.gt.f32.partialorder %v2568, 0.0
          %vm2719 = vcmp.gt.f32.partialorder %v2570, 0.0
          %vm2720 = vcmp.gt.f32.partialorder %v2572, 0.0
          %vm2721 = vcmp.gt.f32.partialorder %v2574, 0.0
          %vm2722 = vcmp.gt.f32.partialorder %v2578, 0.0
          %vm2723 = vcmp.gt.f32.partialorder %v2580, 0.0
          %vm2724 = vcmp.gt.f32.partialorder %v2582, 0.0
          %vm2725 = vcmp.gt.f32.partialorder %v2584, 0.0
          %vm2726 = vcmp.gt.f32.partialorder %v2588, 0.0
          %vm2727 = vcmp.gt.f32.partialorder %v2590, 0.0
          %vm2728 = vcmp.gt.f32.partialorder %v2592, 0.0
          %vm2729 = vcmp.gt.f32.partialorder %v2594, 0.0
          %vm2730 = vcmp.gt.f32.partialorder %v2598, 0.0
          %vm2731 = vcmp.gt.f32.partialorder %v2600, 0.0
          %vm2732 = vcmp.gt.f32.partialorder %v2602, 0.0
          %vm2733 = vcmp.gt.f32.partialorder %v2604, 0.0
          %v2734 = vmul.f32 %v2288, 0.01
          %v2735 = vmul.f32 %v2290, 0.01
          %v2736 = vmul.f32 %v2292, 0.01
          %v2737 = vmul.f32 %v2294, 0.01
          %v2738 = vmul.f32 %v2298, 0.01
          %v2739 = vmul.f32 %v2300, 0.01
          %v2740 = vmul.f32 %v2302, 0.01
          %v2741 = vmul.f32 %v2304, 0.01
          %v2742 = vmul.f32 %v2308, 0.01
          %v2743 = vmul.f32 %v2310, 0.01
          %v2744 = vmul.f32 %v2312, 0.01
          %v2745 = vmul.f32 %v2314, 0.01
          %v2746 = vmul.f32 %v2318, 0.01
          %v2747 = vmul.f32 %v2320, 0.01
          %v2748 = vmul.f32 %v2322, 0.01
          %v2749 = vmul.f32 %v2324, 0.01
          %v2750 = vmul.f32 %v2328, 0.01
          %v2751 = vmul.f32 %v2330, 0.01
          %v2752 = vmul.f32 %v2332, 0.01
          %v2753 = vmul.f32 %v2334, 0.01
          %v2754 = vmul.f32 %v2338, 0.01
          %v2755 = vmul.f32 %v2340, 0.01
          %v2756 = vmul.f32 %v2342, 0.01
          %v2757 = vmul.f32 %v2344, 0.01
          %v2758 = vmul.f32 %v2348, 0.01
          %v2759 = vmul.f32 %v2350, 0.01
          %v2760 = vmul.f32 %v2352, 0.01
          %v2761 = vmul.f32 %v2354, 0.01
          %v2762 = vmul.f32 %v2358, 0.01
          %v2763 = vmul.f32 %v2360, 0.01
          %v2764 = vmul.f32 %v2362, 0.01
          %v2765 = vmul.f32 %v2364, 0.01
          %v2766 = vmul.f32 %v2368, 0.01
          %v2767 = vmul.f32 %v2370, 0.01
          %v2768 = vmul.f32 %v2372, 0.01
          %v2769 = vmul.f32 %v2374, 0.01
          %v2770 = vmul.f32 %v2378, 0.01
          %v2771 = vmul.f32 %v2380, 0.01
          %v2772 = vmul.f32 %v2382, 0.01
          %v2773 = vmul.f32 %v2384, 0.01
          %v2774 = vmul.f32 %v2388, 0.01
          %v2775 = vmul.f32 %v2390, 0.01
          %v2776 = vmul.f32 %v2392, 0.01
          %v2777 = vmul.f32 %v2394, 0.01
          %v2778 = vmul.f32 %v2398, 0.01
          %v2779 = vmul.f32 %v2400, 0.01
          %v2780 = vmul.f32 %v2402, 0.01
          %v2781 = vmul.f32 %v2404, 0.01
          %v2782 = vmul.f32 %v2408, 0.01
          %v2783 = vmul.f32 %v2410, 0.01
          %v2784 = vmul.f32 %v2412, 0.01
          %v2785 = vmul.f32 %v2414, 0.01
          %v2786 = vmul.f32 %v2418, 0.01
          %v2787 = vmul.f32 %v2420, 0.01
          %v2788 = vmul.f32 %v2422, 0.01
          %v2789 = vmul.f32 %v2424, 0.01
          %v2790 = vmul.f32 %v2428, 0.01
          %v2791 = vmul.f32 %v2430, 0.01
          %v2792 = vmul.f32 %v2432, 0.01
          %v2793 = vmul.f32 %v2434, 0.01
          %v2794 = vmul.f32 %v2438, 0.01
          %v2795 = vmul.f32 %v2440, 0.01
          %v2796 = vmul.f32 %v2442, 0.01
          %v2797 = vmul.f32 %v2444, 0.01
          %v2798 = vmul.f32 %v2448, 0.01
          %v2799 = vmul.f32 %v2450, 0.01
          %v2800 = vmul.f32 %v2452, 0.01
          %v2801 = vmul.f32 %v2454, 0.01
          %v2802 = vmul.f32 %v2458, 0.01
          %v2803 = vmul.f32 %v2460, 0.01
          %v2804 = vmul.f32 %v2462, 0.01
          %v2805 = vmul.f32 %v2464, 0.01
          %v2806 = vmul.f32 %v2468, 0.01
          %v2807 = vmul.f32 %v2470, 0.01
          %v2808 = vmul.f32 %v2472, 0.01
          %v2809 = vmul.f32 %v2474, 0.01
          %v2810 = vmul.f32 %v2478, 0.01
          %v2811 = vmul.f32 %v2480, 0.01
          %v2812 = vmul.f32 %v2482, 0.01
          %v2813 = vmul.f32 %v2484, 0.01
          %v2814 = vmul.f32 %v2488, 0.01
          %v2815 = vmul.f32 %v2490, 0.01
          %v2816 = vmul.f32 %v2492, 0.01
          %v2817 = vmul.f32 %v2494, 0.01
          %v2818 = vmul.f32 %v2498, 0.01
          %v2819 = vmul.f32 %v2500, 0.01
          %v2820 = vmul.f32 %v2502, 0.01
          %v2821 = vmul.f32 %v2504, 0.01
          %v2822 = vmul.f32 %v2508, 0.01
          %v2823 = vmul.f32 %v2510, 0.01
          %v2824 = vmul.f32 %v2512, 0.01
          %v2825 = vmul.f32 %v2514, 0.01
          %v2826 = vmul.f32 %v2518, 0.01
          %v2827 = vmul.f32 %v2520, 0.01
          %v2828 = vmul.f32 %v2522, 0.01
          %v2829 = vmul.f32 %v2524, 0.01
          %v2830 = vmul.f32 %v2528, 0.01
          %v2831 = vmul.f32 %v2530, 0.01
          %v2832 = vmul.f32 %v2532, 0.01
          %v2833 = vmul.f32 %v2534, 0.01
          %v2834 = vmul.f32 %v2538, 0.01
          %v2835 = vmul.f32 %v2540, 0.01
          %v2836 = vmul.f32 %v2542, 0.01
          %v2837 = vmul.f32 %v2544, 0.01
          %v2838 = vmul.f32 %v2548, 0.01
          %v2839 = vmul.f32 %v2550, 0.01
          %v2840 = vmul.f32 %v2552, 0.01
          %v2841 = vmul.f32 %v2554, 0.01
          %v2842 = vmul.f32 %v2558, 0.01
          %v2843 = vmul.f32 %v2560, 0.01
          %v2844 = vmul.f32 %v2562, 0.01
          %v2845 = vmul.f32 %v2564, 0.01
          %v2846 = vmul.f32 %v2568, 0.01
          %v2847 = vmul.f32 %v2570, 0.01
          %v2848 = vmul.f32 %v2572, 0.01
          %v2849 = vmul.f32 %v2574, 0.01
          %v2850 = vmul.f32 %v2578, 0.01
          %v2851 = vmul.f32 %v2580, 0.01
          %v2852 = vmul.f32 %v2582, 0.01
          %v2853 = vmul.f32 %v2584, 0.01
          %v2854 = vmul.f32 %v2588, 0.01
          %v2855 = vmul.f32 %v2590, 0.01
          %v2856 = vmul.f32 %v2592, 0.01
          %v2857 = vmul.f32 %v2594, 0.01
          %v2858 = vmul.f32 %v2598, 0.01
          %v2859 = vmul.f32 %v2600, 0.01
          %v2860 = vmul.f32 %v2602, 0.01
          %v2861 = vmul.f32 %v2604, 0.01
          %v2862 = vsel %vm2606, %v2288, %v2734
          %v2863 = vsel %vm2607, %v2290, %v2735
          %v2864 = vsel %vm2608, %v2292, %v2736
          %v2865 = vsel %vm2609, %v2294, %v2737
          %v2866 = vsel %vm2610, %v2298, %v2738
          %v2867 = vsel %vm2611, %v2300, %v2739
          %v2868 = vsel %vm2612, %v2302, %v2740
          %v2869 = vsel %vm2613, %v2304, %v2741
          %v2870 = vsel %vm2614, %v2308, %v2742
          %v2871 = vsel %vm2615, %v2310, %v2743
          %v2872 = vsel %vm2616, %v2312, %v2744
          %v2873 = vsel %vm2617, %v2314, %v2745
          %v2874 = vsel %vm2618, %v2318, %v2746
          %v2875 = vsel %vm2619, %v2320, %v2747
          %v2876 = vsel %vm2620, %v2322, %v2748
          %v2877 = vsel %vm2621, %v2324, %v2749
          %v2878 = vsel %vm2622, %v2328, %v2750
          %v2879 = vsel %vm2623, %v2330, %v2751
          %v2880 = vsel %vm2624, %v2332, %v2752
          %v2881 = vsel %vm2625, %v2334, %v2753
          %v2882 = vsel %vm2626, %v2338, %v2754
          %v2883 = vsel %vm2627, %v2340, %v2755
          %v2884 = vsel %vm2628, %v2342, %v2756
          %v2885 = vsel %vm2629, %v2344, %v2757
          %v2886 = vsel %vm2630, %v2348, %v2758
          %v2887 = vsel %vm2631, %v2350, %v2759
          %v2888 = vsel %vm2632, %v2352, %v2760
          %v2889 = vsel %vm2633, %v2354, %v2761
          %v2890 = vsel %vm2634, %v2358, %v2762
          %v2891 = vsel %vm2635, %v2360, %v2763
          %v2892 = vsel %vm2636, %v2362, %v2764
          %v2893 = vsel %vm2637, %v2364, %v2765
          %v2894 = vsel %vm2638, %v2368, %v2766
          %v2895 = vsel %vm2639, %v2370, %v2767
          %v2896 = vsel %vm2640, %v2372, %v2768
          %v2897 = vsel %vm2641, %v2374, %v2769
          %v2898 = vsel %vm2642, %v2378, %v2770
          %v2899 = vsel %vm2643, %v2380, %v2771
          %v2900 = vsel %vm2644, %v2382, %v2772
          %v2901 = vsel %vm2645, %v2384, %v2773
          %v2902 = vsel %vm2646, %v2388, %v2774
          %v2903 = vsel %vm2647, %v2390, %v2775
          %v2904 = vsel %vm2648, %v2392, %v2776
          %v2905 = vsel %vm2649, %v2394, %v2777
          %v2906 = vsel %vm2650, %v2398, %v2778
          %v2907 = vsel %vm2651, %v2400, %v2779
          %v2908 = vsel %vm2652, %v2402, %v2780
          %v2909 = vsel %vm2653, %v2404, %v2781
          %v2910 = vsel %vm2654, %v2408, %v2782
          %v2911 = vsel %vm2655, %v2410, %v2783
          %v2912 = vsel %vm2656, %v2412, %v2784
          %v2913 = vsel %vm2657, %v2414, %v2785
          %v2914 = vsel %vm2658, %v2418, %v2786
          %v2915 = vsel %vm2659, %v2420, %v2787
          %v2916 = vsel %vm2660, %v2422, %v2788
          %v2917 = vsel %vm2661, %v2424, %v2789
          %v2918 = vsel %vm2662, %v2428, %v2790
          %v2919 = vsel %vm2663, %v2430, %v2791
          %v2920 = vsel %vm2664, %v2432, %v2792
          %v2921 = vsel %vm2665, %v2434, %v2793
          %v2922 = vsel %vm2666, %v2438, %v2794
          %v2923 = vsel %vm2667, %v2440, %v2795
          %v2924 = vsel %vm2668, %v2442, %v2796
          %v2925 = vsel %vm2669, %v2444, %v2797
          %v2926 = vsel %vm2670, %v2448, %v2798
          %v2927 = vsel %vm2671, %v2450, %v2799
          %v2928 = vsel %vm2672, %v2452, %v2800
          %v2929 = vsel %vm2673, %v2454, %v2801
          %v2930 = vsel %vm2674, %v2458, %v2802
          %v2931 = vsel %vm2675, %v2460, %v2803
          %v2932 = vsel %vm2676, %v2462, %v2804
          %v2933 = vsel %vm2677, %v2464, %v2805
          %v2934 = vsel %vm2678, %v2468, %v2806
          %v2935 = vsel %vm2679, %v2470, %v2807
          %v2936 = vsel %vm2680, %v2472, %v2808
          %v2937 = vsel %vm2681, %v2474, %v2809
          %v2938 = vsel %vm2682, %v2478, %v2810
          %v2939 = vsel %vm2683, %v2480, %v2811
          %v2940 = vsel %vm2684, %v2482, %v2812
          %v2941 = vsel %vm2685, %v2484, %v2813
          %v2942 = vsel %vm2686, %v2488, %v2814
          %v2943 = vsel %vm2687, %v2490, %v2815
          %v2944 = vsel %vm2688, %v2492, %v2816
          %v2945 = vsel %vm2689, %v2494, %v2817
          %v2946 = vsel %vm2690, %v2498, %v2818
          %v2947 = vsel %vm2691, %v2500, %v2819
          %v2948 = vsel %vm2692, %v2502, %v2820
          %v2949 = vsel %vm2693, %v2504, %v2821
          %v2950 = vsel %vm2694, %v2508, %v2822
          %v2951 = vsel %vm2695, %v2510, %v2823
          %v2952 = vsel %vm2696, %v2512, %v2824
          %v2953 = vsel %vm2697, %v2514, %v2825
          %v2954 = vsel %vm2698, %v2518, %v2826
          %v2955 = vsel %vm2699, %v2520, %v2827
          %v2956 = vsel %vm2700, %v2522, %v2828
          %v2957 = vsel %vm2701, %v2524, %v2829
          %v2958 = vsel %vm2702, %v2528, %v2830
          %v2959 = vsel %vm2703, %v2530, %v2831
          %v2960 = vsel %vm2704, %v2532, %v2832
          %v2961 = vsel %vm2705, %v2534, %v2833
          %v2962 = vsel %vm2706, %v2538, %v2834
          %v2963 = vsel %vm2707, %v2540, %v2835
          %v2964 = vsel %vm2708, %v2542, %v2836
          %v2965 = vsel %vm2709, %v2544, %v2837
          %v2966 = vsel %vm2710, %v2548, %v2838
          %v2967 = vsel %vm2711, %v2550, %v2839
          %v2968 = vsel %vm2712, %v2552, %v2840
          %v2969 = vsel %vm2713, %v2554, %v2841
          %v2970 = vsel %vm2714, %v2558, %v2842
          %v2971 = vsel %vm2715, %v2560, %v2843
          %v2972 = vsel %vm2716, %v2562, %v2844
          %v2973 = vsel %vm2717, %v2564, %v2845
          %v2974 = vsel %vm2718, %v2568, %v2846
          %v2975 = vsel %vm2719, %v2570, %v2847
          %v2976 = vsel %vm2720, %v2572, %v2848
          %v2977 = vsel %vm2721, %v2574, %v2849
          %v2978 = vsel %vm2722, %v2578, %v2850
          %v2979 = vsel %vm2723, %v2580, %v2851
          %v2980 = vsel %vm2724, %v2582, %v2852
          %v2981 = vsel %vm2725, %v2584, %v2853
          %v2982 = vsel %vm2726, %v2588, %v2854
          %v2983 = vsel %vm2727, %v2590, %v2855
          %v2984 = vsel %vm2728, %v2592, %v2856
          %v2985 = vsel %vm2729, %v2594, %v2857
          %v2986 = vsel %vm2730, %v2598, %v2858
          %v2987 = vsel %vm2731, %v2600, %v2859
          %v2988 = vsel %vm2732, %v2602, %v2860
          %v2989 = vsel %vm2733, %v2604, %v2861
          %v2990 = vpack.c.bf16 %v2864, %v2862
          %v2991 = vpack.c.bf16 %v2865, %v2863
          %v2992 = vpack.c.bf16 %v2868, %v2866
          %v2993 = vpack.c.bf16 %v2869, %v2867
          %v2994 = vpack.c.bf16 %v2872, %v2870
          %v2995 = vpack.c.bf16 %v2873, %v2871
          %v2996 = vpack.c.bf16 %v2876, %v2874
          %v2997 = vpack.c.bf16 %v2877, %v2875
          %v2998 = vpack.c.bf16 %v2880, %v2878
          %v2999 = vpack.c.bf16 %v2881, %v2879
          %v3000 = vpack.c.bf16 %v2884, %v2882
          %v3001 = vpack.c.bf16 %v2885, %v2883
          %v3002 = vpack.c.bf16 %v2888, %v2886
          %v3003 = vpack.c.bf16 %v2889, %v2887
          %v3004 = vpack.c.bf16 %v2892, %v2890
          %v3005 = vpack.c.bf16 %v2893, %v2891
          %v3006 = vpack.c.bf16 %v2896, %v2894
          %v3007 = vpack.c.bf16 %v2897, %v2895
          %v3008 = vpack.c.bf16 %v2900, %v2898
          %v3009 = vpack.c.bf16 %v2901, %v2899
          %v3010 = vpack.c.bf16 %v2904, %v2902
          %v3011 = vpack.c.bf16 %v2905, %v2903
          %v3012 = vpack.c.bf16 %v2908, %v2906
          %v3013 = vpack.c.bf16 %v2909, %v2907
          %v3014 = vpack.c.bf16 %v2912, %v2910
          %v3015 = vpack.c.bf16 %v2913, %v2911
          %v3016 = vpack.c.bf16 %v2916, %v2914
          %v3017 = vpack.c.bf16 %v2917, %v2915
          %v3018 = vpack.c.bf16 %v2920, %v2918
          %v3019 = vpack.c.bf16 %v2921, %v2919
          %v3020 = vpack.c.bf16 %v2924, %v2922
          %v3021 = vpack.c.bf16 %v2925, %v2923
          %v3022 = vpack.c.bf16 %v2928, %v2926
          %v3023 = vpack.c.bf16 %v2929, %v2927
          %v3024 = vpack.c.bf16 %v2932, %v2930
          %v3025 = vpack.c.bf16 %v2933, %v2931
          %v3026 = vpack.c.bf16 %v2936, %v2934
          %v3027 = vpack.c.bf16 %v2937, %v2935
          %v3028 = vpack.c.bf16 %v2940, %v2938
          %v3029 = vpack.c.bf16 %v2941, %v2939
          %v3030 = vpack.c.bf16 %v2944, %v2942
          %v3031 = vpack.c.bf16 %v2945, %v2943
          %v3032 = vpack.c.bf16 %v2948, %v2946
          %v3033 = vpack.c.bf16 %v2949, %v2947
          %v3034 = vpack.c.bf16 %v2952, %v2950
          %v3035 = vpack.c.bf16 %v2953, %v2951
          %v3036 = vpack.c.bf16 %v2956, %v2954
          %v3037 = vpack.c.bf16 %v2957, %v2955
          %v3038 = vpack.c.bf16 %v2960, %v2958
          %v3039 = vpack.c.bf16 %v2961, %v2959
          %v3040 = vpack.c.bf16 %v2964, %v2962
          %v3041 = vpack.c.bf16 %v2965, %v2963
          %v3042 = vpack.c.bf16 %v2968, %v2966
          %v3043 = vpack.c.bf16 %v2969, %v2967
          %v3044 = vpack.c.bf16 %v2972, %v2970
          %v3045 = vpack.c.bf16 %v2973, %v2971
          %v3046 = vpack.c.bf16 %v2976, %v2974
          %v3047 = vpack.c.bf16 %v2977, %v2975
          %v3048 = vpack.c.bf16 %v2980, %v2978
          %v3049 = vpack.c.bf16 %v2981, %v2979
          %v3050 = vpack.c.bf16 %v2984, %v2982
          %v3051 = vpack.c.bf16 %v2985, %v2983
          %v3052 = vpack.c.bf16 %v2988, %v2986
          %v3053 = vpack.c.bf16 %v2989, %v2987
          %v3054 = vld [vmem:[#allocation15] sm:$0xf]
          %v3055 = vld [vmem:[#allocation15 + $0x4] sm:$0xf]
          %v3056 = vld [vmem:[#allocation15 + $0x8] sm:$0xf]
          %v3057 = vld [vmem:[#allocation15 + $0xc] sm:$0xf]
          %v3058 = vld [vmem:[#allocation15 + $0x10] sm:$0xf]
          %v3059 = vld [vmem:[#allocation15 + $0x14] sm:$0xf]
          %v3060 = vld [vmem:[#allocation15 + $0x18] sm:$0xf]
          %v3061 = vld [vmem:[#allocation15 + $0x1c] sm:$0xf]
          %v3062 = vld [vmem:[#allocation15 + $0x20] sm:$0xf]
          %v3063 = vld [vmem:[#allocation15 + $0x24] sm:$0xf]
          %v3064 = vld [vmem:[#allocation15 + $0x28] sm:$0xf]
          %v3065 = vld [vmem:[#allocation15 + $0x2c] sm:$0xf]
          %v3066 = vld [vmem:[#allocation15 + $0x30] sm:$0xf]
          %v3067 = vld [vmem:[#allocation15 + $0x34] sm:$0xf]
          %v3068 = vld [vmem:[#allocation15 + $0x38] sm:$0xf]
          %v3069 = vld [vmem:[#allocation15 + $0x3c] sm:$0xf]
          %v3070 = vld [vmem:[#allocation15 + $0x40] sm:$0xf]
          %v3071 = vld [vmem:[#allocation15 + $0x44] sm:$0xf]
          %v3072 = vld [vmem:[#allocation15 + $0x48] sm:$0xf]
          %v3073 = vld [vmem:[#allocation15 + $0x4c] sm:$0xf]
          %v3074 = vld [vmem:[#allocation15 + $0x50] sm:$0xf]
          %v3075 = vld [vmem:[#allocation15 + $0x54] sm:$0xf]
          %v3076 = vld [vmem:[#allocation15 + $0x58] sm:$0xf]
          %v3077 = vld [vmem:[#allocation15 + $0x5c] sm:$0xf]
          %v3078 = vld [vmem:[#allocation15 + $0x60] sm:$0xf]
          %v3079 = vld [vmem:[#allocation15 + $0x64] sm:$0xf]
          %v3080 = vld [vmem:[#allocation15 + $0x68] sm:$0xf]
          %v3081 = vld [vmem:[#allocation15 + $0x6c] sm:$0xf]
          %v3082 = vld [vmem:[#allocation15 + $0x70] sm:$0xf]
          %v3083 = vld [vmem:[#allocation15 + $0x74] sm:$0xf]
          %v3084 = vld [vmem:[#allocation15 + $0x78] sm:$0xf]
          %v3085 = vld [vmem:[#allocation15 + $0x7c] sm:$0xf]
          %v3086 = vld [vmem:[%s13] sm:$0x1]
          %v3088 = vlaneseq
          %v3089 = vshrl.u32 %v3088, 7
          %v3090 = vsub.s32 0, %v3089
          %v3091 = vrot.slane %v3086, %v3090
          %v3125 = vunpack.c.l.b16 %v3054
          %v3126 = vunpack.c.l.b16 %v3055
          %v3127 = vunpack.c.l.b16 %v3056
          %v3128 = vunpack.c.l.b16 %v3057
          %v3129 = vunpack.c.l.b16 %v3058
          %v3130 = vunpack.c.l.b16 %v3059
          %v3131 = vunpack.c.l.b16 %v3060
          %v3132 = vunpack.c.l.b16 %v3061
          %v3133 = vunpack.c.l.b16 %v3062
          %v3134 = vunpack.c.l.b16 %v3063
          %v3135 = vunpack.c.l.b16 %v3064
          %v3136 = vunpack.c.l.b16 %v3065
          %v3137 = vunpack.c.l.b16 %v3066
          %v3138 = vunpack.c.l.b16 %v3067
          %v3139 = vunpack.c.l.b16 %v3068
          %v3140 = vunpack.c.l.b16 %v3069
          %v3141 = vunpack.c.l.b16 %v3070
          %v3142 = vunpack.c.l.b16 %v3071
          %v3143 = vunpack.c.l.b16 %v3072
          %v3144 = vunpack.c.l.b16 %v3073
          %v3145 = vunpack.c.l.b16 %v3074
          %v3146 = vunpack.c.l.b16 %v3075
          %v3147 = vunpack.c.l.b16 %v3076
          %v3148 = vunpack.c.l.b16 %v3077
          %v3149 = vunpack.c.l.b16 %v3078
          %v3150 = vunpack.c.l.b16 %v3079
          %v3151 = vunpack.c.l.b16 %v3080
          %v3152 = vunpack.c.l.b16 %v3081
          %v3153 = vunpack.c.l.b16 %v3082
          %v3154 = vunpack.c.l.b16 %v3083
          %v3155 = vunpack.c.l.b16 %v3084
          %v3156 = vunpack.c.l.b16 %v3085
          %v3157 = vpack.c.b16 %v3126, %v3125
          %v3158 = vpack.c.b16 %v3128, %v3127
          %v3159 = vpack.c.b16 %v3130, %v3129
          %v3160 = vpack.c.b16 %v3132, %v3131
          %v3161 = vpack.c.b16 %v3134, %v3133
          %v3162 = vpack.c.b16 %v3136, %v3135
          %v3163 = vpack.c.b16 %v3138, %v3137
          %v3164 = vpack.c.b16 %v3140, %v3139
          %v3165 = vpack.c.b16 %v3142, %v3141
          %v3166 = vpack.c.b16 %v3144, %v3143
          %v3167 = vpack.c.b16 %v3146, %v3145
          %v3168 = vpack.c.b16 %v3148, %v3147
          %v3169 = vpack.c.b16 %v3150, %v3149
          %v3170 = vpack.c.b16 %v3152, %v3151
          %v3171 = vpack.c.b16 %v3154, %v3153
          %v3172 = vpack.c.b16 %v3156, %v3155
          %3189 = vmatprep.subr.bf16.mxu0 0
          %3190 = vmatpush1.bf16.msra.mxu0 %v3157
          %3191 = vmatprep.subr.bf16.mxu0 0
          %3192 = vmatpush1.bf16.msra.mxu0 %v3158
          %3193 = vmatprep.subr.bf16.mxu0 0
          %3194 = vmatpush1.bf16.msra.mxu0 %v3159
          %3195 = vmatprep.subr.bf16.mxu0 0
          %3196 = vmatpush1.bf16.msra.mxu0 %v3160
          %3197 = vmatprep.subr.bf16.mxu0 0
          %3198 = vmatpush1.bf16.msra.mxu0 %v3161
          %3199 = vmatprep.subr.bf16.mxu0 0
          %3200 = vmatpush1.bf16.msra.mxu0 %v3162
          %3201 = vmatprep.subr.bf16.mxu0 0
          %3202 = vmatpush1.bf16.msra.mxu0 %v3163
          %3203 = vmatprep.subr.bf16.mxu0 0
          %3204 = vmatpush1.bf16.msra.mxu0 %v3164
          %3205 = vmatprep.subr.bf16.mxu0 0
          %3206 = vmatpush1.bf16.msra.mxu0 %v3165
          %3207 = vmatprep.subr.bf16.mxu0 0
          %3208 = vmatpush1.bf16.msra.mxu0 %v3166
          %3209 = vmatprep.subr.bf16.mxu0 0
          %3210 = vmatpush1.bf16.msra.mxu0 %v3167
          %3211 = vmatprep.subr.bf16.mxu0 0
          %3212 = vmatpush1.bf16.msra.mxu0 %v3168
          %3213 = vmatprep.subr.bf16.mxu0 0
          %3214 = vmatpush1.bf16.msra.mxu0 %v3169
          %3215 = vmatprep.subr.bf16.mxu0 0
          %3216 = vmatpush1.bf16.msra.mxu0 %v3170
          %3217 = vmatprep.subr.bf16.mxu0 0
          %3218 = vmatpush1.bf16.msra.mxu0 %v3171
          %3219 = vmatprep.subr.bf16.mxu0 0
          %3220 = vmatpush1.bf16.msra.mxu0 %v3172
          %3221 = vmatprep.mubr.bf16.mxu0 %v2991
          %3222 = vmatmul.mubr.bf16.gmra.mrb[0].mxu0 %v2990
          %v3223 = vpop.f32.mrb[0].mxu0
          %v3224 = vadd.f32 %v3091, %v3223
          %v3225 = vpop.f32.mrb[0].mxu0
          %v3226 = vpop.f32.mrb[0].mxu0
          %v3227 = vadd.f32 %v3091, %v3226
          %v3228 = vpop.f32.mrb[0].mxu0
          %3229 = vmatprep.mubr.bf16.mxu0 %v2993
          %3230 = vmatmul.mubr.bf16.gmra.mrb[0].mxu0 %v2992
          %v3231 = vpop.f32.mrb[0].mxu0
          %v3232 = vadd.f32 %v3091, %v3231
          %v3233 = vpop.f32.mrb[0].mxu0
          %v3234 = vpop.f32.mrb[0].mxu0
          %v3235 = vadd.f32 %v3091, %v3234
          %v3236 = vpop.f32.mrb[0].mxu0
          %3237 = vmatprep.mubr.bf16.mxu0 %v2995
          %3238 = vmatmul.mubr.bf16.gmra.mrb[0].mxu0 %v2994
          %v3239 = vpop.f32.mrb[0].mxu0
          %v3240 = vadd.f32 %v3091, %v3239
          %v3241 = vpop.f32.mrb[0].mxu0
          %v3242 = vpop.f32.mrb[0].mxu0
          %v3243 = vadd.f32 %v3091, %v3242
          %v3244 = vpop.f32.mrb[0].mxu0
          %3245 = vmatprep.mubr.bf16.mxu0 %v2997
          %3246 = vmatmul.mubr.bf16.gmra.mrb[0].mxu0 %v2996
          %v3247 = vpop.f32.mrb[0].mxu0
          %v3248 = vadd.f32 %v3091, %v3247
          %v3249 = vpop.f32.mrb[0].mxu0
          %v3250 = vpop.f32.mrb[0].mxu0
          %v3251 = vadd.f32 %v3091, %v3250
          %v3252 = vpop.f32.mrb[0].mxu0
          %3253 = vmatprep.mubr.bf16.mxu0 %v2999
          %3254 = vmatmul.mubr.bf16.gmra.mrb[0].mxu0 %v2998
          %v3255 = vpop.f32.mrb[0].mxu0
          %v3256 = vadd.f32 %v3091, %v3255
          %v3257 = vpop.f32.mrb[0].mxu0
          %v3258 = vpop.f32.mrb[0].mxu0
          %v3259 = vadd.f32 %v3091, %v3258
          %v3260 = vpop.f32.mrb[0].mxu0
          %3261 = vmatprep.mubr.bf16.mxu0 %v3001
          %3262 = vmatmul.mubr.bf16.gmra.mrb[0].mxu0 %v3000
          %v3263 = vpop.f32.mrb[0].mxu0
          %v3264 = vadd.f32 %v3091, %v3263
          %v3265 = vpop.f32.mrb[0].mxu0
          %v3266 = vpop.f32.mrb[0].mxu0
          %v3267 = vadd.f32 %v3091, %v3266
          %v3268 = vpop.f32.mrb[0].mxu0
          %3269 = vmatprep.mubr.bf16.mxu0 %v3003
          %3270 = vmatmul.mubr.bf16.gmra.mrb[0].mxu0 %v3002
          %v3271 = vpop.f32.mrb[0].mxu0
          %v3272 = vadd.f32 %v3091, %v3271
          %v3273 = vpop.f32.mrb[0].mxu0
          %v3274 = vpop.f32.mrb[0].mxu0
          %v3275 = vadd.f32 %v3091, %v3274
          %v3276 = vpop.f32.mrb[0].mxu0
          %3277 = vmatprep.mubr.bf16.mxu0 %v3005
          %3278 = vmatmul.mubr.bf16.gmra.mrb[0].mxu0 %v3004
          %v3279 = vpop.f32.mrb[0].mxu0
          %v3280 = vadd.f32 %v3091, %v3279
          %v3281 = vpop.f32.mrb[0].mxu0
          %v3282 = vpop.f32.mrb[0].mxu0
          %v3283 = vadd.f32 %v3091, %v3282
          %v3284 = vpop.f32.mrb[0].mxu0
          %3285 = vmatprep.mubr.bf16.mxu0 %v3007
          %3286 = vmatmul.mubr.bf16.gmra.mrb[0].mxu0 %v3006
          %v3287 = vpop.f32.mrb[0].mxu0
          %v3288 = vadd.f32 %v3091, %v3287
          %v3289 = vpop.f32.mrb[0].mxu0
          %v3290 = vpop.f32.mrb[0].mxu0
          %v3291 = vadd.f32 %v3091, %v3290
          %v3292 = vpop.f32.mrb[0].mxu0
          %3293 = vmatprep.mubr.bf16.mxu0 %v3009
          %3294 = vmatmul.mubr.bf16.gmra.mrb[0].mxu0 %v3008
          %v3295 = vpop.f32.mrb[0].mxu0
          %v3296 = vadd.f32 %v3091, %v3295
          %v3297 = vpop.f32.mrb[0].mxu0
          %v3298 = vpop.f32.mrb[0].mxu0
          %v3299 = vadd.f32 %v3091, %v3298
          %v3300 = vpop.f32.mrb[0].mxu0
          %3301 = vmatprep.mubr.bf16.mxu0 %v3011
          %3302 = vmatmul.mubr.bf16.gmra.mrb[0].mxu0 %v3010
          %v3303 = vpop.f32.mrb[0].mxu0
          %v3304 = vadd.f32 %v3091, %v3303
          %v3305 = vpop.f32.mrb[0].mxu0
          %v3306 = vpop.f32.mrb[0].mxu0
          %v3307 = vadd.f32 %v3091, %v3306
          %v3308 = vpop.f32.mrb[0].mxu0
          %3309 = vmatprep.mubr.bf16.mxu0 %v3013
          %3310 = vmatmul.mubr.bf16.gmra.mrb[0].mxu0 %v3012
          %v3311 = vpop.f32.mrb[0].mxu0
          %v3312 = vadd.f32 %v3091, %v3311
          %v3313 = vpop.f32.mrb[0].mxu0
          %v3314 = vpop.f32.mrb[0].mxu0
          %v3315 = vadd.f32 %v3091, %v3314
          %v3316 = vpop.f32.mrb[0].mxu0
          %3317 = vmatprep.mubr.bf16.mxu0 %v3015
          %3318 = vmatmul.mubr.bf16.gmra.mrb[0].mxu0 %v3014
          %v3319 = vpop.f32.mrb[0].mxu0
          %v3320 = vadd.f32 %v3091, %v3319
          %v3321 = vpop.f32.mrb[0].mxu0
          %v3322 = vpop.f32.mrb[0].mxu0
          %v3323 = vadd.f32 %v3091, %v3322
          %v3324 = vpop.f32.mrb[0].mxu0
          %3325 = vmatprep.mubr.bf16.mxu0 %v3017
          %3326 = vmatmul.mubr.bf16.gmra.mrb[0].mxu0 %v3016
          %v3327 = vpop.f32.mrb[0].mxu0
          %v3328 = vadd.f32 %v3091, %v3327
          %v3329 = vpop.f32.mrb[0].mxu0
          %v3330 = vpop.f32.mrb[0].mxu0
          %v3331 = vadd.f32 %v3091, %v3330
          %v3332 = vpop.f32.mrb[0].mxu0
          %3333 = vmatprep.mubr.bf16.mxu0 %v3019
          %3334 = vmatmul.mubr.bf16.gmra.mrb[0].mxu0 %v3018
          %v3335 = vpop.f32.mrb[0].mxu0
          %v3336 = vadd.f32 %v3091, %v3335
          %v3337 = vpop.f32.mrb[0].mxu0
          %v3338 = vpop.f32.mrb[0].mxu0
          %v3339 = vadd.f32 %v3091, %v3338
          %v3340 = vpop.f32.mrb[0].mxu0
          %3341 = vmatprep.mubr.bf16.mxu0 %v3021
          %3342 = vmatmul.mubr.bf16.gmra.mrb[0].mxu0 %v3020
          %v3343 = vpop.f32.mrb[0].mxu0
          %v3344 = vadd.f32 %v3091, %v3343
          %v3345 = vpop.f32.mrb[0].mxu0
          %v3346 = vpop.f32.mrb[0].mxu0
          %v3347 = vadd.f32 %v3091, %v3346
          %v3348 = vpop.f32.mrb[0].mxu0
          %3349 = vmatprep.mubr.bf16.mxu0 %v3023
          %3350 = vmatmul.mubr.bf16.gmra.mrb[0].mxu0 %v3022
          %v3351 = vpop.f32.mrb[0].mxu0
          %v3352 = vadd.f32 %v3091, %v3351
          %v3353 = vpop.f32.mrb[0].mxu0
          %v3354 = vpop.f32.mrb[0].mxu0
          %v3355 = vadd.f32 %v3091, %v3354
          %v3356 = vpop.f32.mrb[0].mxu0
          %3357 = vmatprep.mubr.bf16.mxu0 %v3025
          %3358 = vmatmul.mubr.bf16.gmra.mrb[0].mxu0 %v3024
          %v3359 = vpop.f32.mrb[0].mxu0
          %v3360 = vadd.f32 %v3091, %v3359
          %v3361 = vpop.f32.mrb[0].mxu0
          %v3362 = vpop.f32.mrb[0].mxu0
          %v3363 = vadd.f32 %v3091, %v3362
          %v3364 = vpop.f32.mrb[0].mxu0
          %3365 = vmatprep.mubr.bf16.mxu0 %v3027
          %3366 = vmatmul.mubr.bf16.gmra.mrb[0].mxu0 %v3026
          %v3367 = vpop.f32.mrb[0].mxu0
          %v3368 = vadd.f32 %v3091, %v3367
          %v3369 = vpop.f32.mrb[0].mxu0
          %v3370 = vpop.f32.mrb[0].mxu0
          %v3371 = vadd.f32 %v3091, %v3370
          %v3372 = vpop.f32.mrb[0].mxu0
          %3373 = vmatprep.mubr.bf16.mxu0 %v3029
          %3374 = vmatmul.mubr.bf16.gmra.mrb[0].mxu0 %v3028
          %v3375 = vpop.f32.mrb[0].mxu0
          %v3376 = vadd.f32 %v3091, %v3375
          %v3377 = vpop.f32.mrb[0].mxu0
          %v3378 = vpop.f32.mrb[0].mxu0
          %v3379 = vadd.f32 %v3091, %v3378
          %v3380 = vpop.f32.mrb[0].mxu0
          %3381 = vmatprep.mubr.bf16.mxu0 %v3031
          %3382 = vmatmul.mubr.bf16.gmra.mrb[0].mxu0 %v3030
          %v3383 = vpop.f32.mrb[0].mxu0
          %v3384 = vadd.f32 %v3091, %v3383
          %v3385 = vpop.f32.mrb[0].mxu0
          %v3386 = vpop.f32.mrb[0].mxu0
          %v3387 = vadd.f32 %v3091, %v3386
          %v3388 = vpop.f32.mrb[0].mxu0
          %3389 = vmatprep.mubr.bf16.mxu0 %v3033
          %3390 = vmatmul.mubr.bf16.gmra.mrb[0].mxu0 %v3032
          %v3391 = vpop.f32.mrb[0].mxu0
          %v3392 = vadd.f32 %v3091, %v3391
          %v3393 = vpop.f32.mrb[0].mxu0
          %v3394 = vpop.f32.mrb[0].mxu0
          %v3395 = vadd.f32 %v3091, %v3394
          %v3396 = vpop.f32.mrb[0].mxu0
          %3397 = vmatprep.mubr.bf16.mxu0 %v3035
          %3398 = vmatmul.mubr.bf16.gmra.mrb[0].mxu0 %v3034
          %v3399 = vpop.f32.mrb[0].mxu0
          %v3400 = vadd.f32 %v3091, %v3399
          %v3401 = vpop.f32.mrb[0].mxu0
          %v3402 = vpop.f32.mrb[0].mxu0
          %v3403 = vadd.f32 %v3091, %v3402
          %v3404 = vpop.f32.mrb[0].mxu0
          %3405 = vmatprep.mubr.bf16.mxu0 %v3037
          %3406 = vmatmul.mubr.bf16.gmra.mrb[0].mxu0 %v3036
          %v3407 = vpop.f32.mrb[0].mxu0
          %v3408 = vadd.f32 %v3091, %v3407
          %v3409 = vpop.f32.mrb[0].mxu0
          %v3410 = vpop.f32.mrb[0].mxu0
          %v3411 = vadd.f32 %v3091, %v3410
          %v3412 = vpop.f32.mrb[0].mxu0
          %3413 = vmatprep.mubr.bf16.mxu0 %v3039
          %3414 = vmatmul.mubr.bf16.gmra.mrb[0].mxu0 %v3038
          %v3415 = vpop.f32.mrb[0].mxu0
          %v3416 = vadd.f32 %v3091, %v3415
          %v3417 = vpop.f32.mrb[0].mxu0
          %v3418 = vpop.f32.mrb[0].mxu0
          %v3419 = vadd.f32 %v3091, %v3418
          %v3420 = vpop.f32.mrb[0].mxu0
          %3421 = vmatprep.mubr.bf16.mxu0 %v3041
          %3422 = vmatmul.mubr.bf16.gmra.mrb[0].mxu0 %v3040
          %v3423 = vpop.f32.mrb[0].mxu0
          %v3424 = vadd.f32 %v3091, %v3423
          %v3425 = vpop.f32.mrb[0].mxu0
          %v3426 = vpop.f32.mrb[0].mxu0
          %v3427 = vadd.f32 %v3091, %v3426
          %v3428 = vpop.f32.mrb[0].mxu0
          %3429 = vmatprep.mubr.bf16.mxu0 %v3043
          %3430 = vmatmul.mubr.bf16.gmra.mrb[0].mxu0 %v3042
          %v3431 = vpop.f32.mrb[0].mxu0
          %v3432 = vadd.f32 %v3091, %v3431
          %v3433 = vpop.f32.mrb[0].mxu0
          %v3434 = vpop.f32.mrb[0].mxu0
          %v3435 = vadd.f32 %v3091, %v3434
          %v3436 = vpop.f32.mrb[0].mxu0
          %3437 = vmatprep.mubr.bf16.mxu0 %v3045
          %3438 = vmatmul.mubr.bf16.gmra.mrb[0].mxu0 %v3044
          %v3439 = vpop.f32.mrb[0].mxu0
          %v3440 = vadd.f32 %v3091, %v3439
          %v3441 = vpop.f32.mrb[0].mxu0
          %v3442 = vpop.f32.mrb[0].mxu0
          %v3443 = vadd.f32 %v3091, %v3442
          %v3444 = vpop.f32.mrb[0].mxu0
          %3445 = vmatprep.mubr.bf16.mxu0 %v3047
          %3446 = vmatmul.mubr.bf16.gmra.mrb[0].mxu0 %v3046
          %v3447 = vpop.f32.mrb[0].mxu0
          %v3448 = vadd.f32 %v3091, %v3447
          %v3449 = vpop.f32.mrb[0].mxu0
          %v3450 = vpop.f32.mrb[0].mxu0
          %v3451 = vadd.f32 %v3091, %v3450
          %v3452 = vpop.f32.mrb[0].mxu0
          %3453 = vmatprep.mubr.bf16.mxu0 %v3049
          %3454 = vmatmul.mubr.bf16.gmra.mrb[0].mxu0 %v3048
          %v3455 = vpop.f32.mrb[0].mxu0
          %v3456 = vadd.f32 %v3091, %v3455
          %v3457 = vpop.f32.mrb[0].mxu0
          %v3458 = vpop.f32.mrb[0].mxu0
          %v3459 = vadd.f32 %v3091, %v3458
          %v3460 = vpop.f32.mrb[0].mxu0
          %3461 = vmatprep.mubr.bf16.mxu0 %v3051
          %3462 = vmatmul.mubr.bf16.gmra.mrb[0].mxu0 %v3050
          %v3463 = vpop.f32.mrb[0].mxu0
          %v3464 = vadd.f32 %v3091, %v3463
          %v3465 = vpop.f32.mrb[0].mxu0
          %v3466 = vpop.f32.mrb[0].mxu0
          %v3467 = vadd.f32 %v3091, %v3466
          %v3468 = vpop.f32.mrb[0].mxu0
          %3469 = vmatprep.mubr.bf16.mxu0 %v3053
          %3470 = vmatmul.mubr.bf16.gmra.mrb[0].mxu0 %v3052
          %v3471 = vpop.f32.mrb[0].mxu0
          %v3472 = vadd.f32 %v3091, %v3471
          %v3473 = vpop.f32.mrb[0].mxu0
          %v3474 = vpop.f32.mrb[0].mxu0
          %v3475 = vadd.f32 %v3091, %v3474
          %v3476 = vpop.f32.mrb[0].mxu0
          %3477 = vdwg.mxu0
          %vm3478 = vcmp.gt.f32.partialorder %v3224, 0.0
          %vm3479 = vcmp.gt.f32.partialorder %v3227, 0.0
          %vm3480 = vcmp.gt.f32.partialorder %v3232, 0.0
          %vm3481 = vcmp.gt.f32.partialorder %v3235, 0.0
          %vm3482 = vcmp.gt.f32.partialorder %v3240, 0.0
          %vm3483 = vcmp.gt.f32.partialorder %v3243, 0.0
          %vm3484 = vcmp.gt.f32.partialorder %v3248, 0.0
          %vm3485 = vcmp.gt.f32.partialorder %v3251, 0.0
          %vm3486 = vcmp.gt.f32.partialorder %v3256, 0.0
          %vm3487 = vcmp.gt.f32.partialorder %v3259, 0.0
          %vm3488 = vcmp.gt.f32.partialorder %v3264, 0.0
          %vm3489 = vcmp.gt.f32.partialorder %v3267, 0.0
          %vm3490 = vcmp.gt.f32.partialorder %v3272, 0.0
          %vm3491 = vcmp.gt.f32.partialorder %v3275, 0.0
          %vm3492 = vcmp.gt.f32.partialorder %v3280, 0.0
          %vm3493 = vcmp.gt.f32.partialorder %v3283, 0.0
          %vm3494 = vcmp.gt.f32.partialorder %v3288, 0.0
          %vm3495 = vcmp.gt.f32.partialorder %v3291, 0.0
          %vm3496 = vcmp.gt.f32.partialorder %v3296, 0.0
          %vm3497 = vcmp.gt.f32.partialorder %v3299, 0.0
          %vm3498 = vcmp.gt.f32.partialorder %v3304, 0.0
          %vm3499 = vcmp.gt.f32.partialorder %v3307, 0.0
          %vm3500 = vcmp.gt.f32.partialorder %v3312, 0.0
          %vm3501 = vcmp.gt.f32.partialorder %v3315, 0.0
          %vm3502 = vcmp.gt.f32.partialorder %v3320, 0.0
          %vm3503 = vcmp.gt.f32.partialorder %v3323, 0.0
          %vm3504 = vcmp.gt.f32.partialorder %v3328, 0.0
          %vm3505 = vcmp.gt.f32.partialorder %v3331, 0.0
          %vm3506 = vcmp.gt.f32.partialorder %v3336, 0.0
          %vm3507 = vcmp.gt.f32.partialorder %v3339, 0.0
          %vm3508 = vcmp.gt.f32.partialorder %v3344, 0.0
          %vm3509 = vcmp.gt.f32.partialorder %v3347, 0.0
          %vm3510 = vcmp.gt.f32.partialorder %v3352, 0.0
          %vm3511 = vcmp.gt.f32.partialorder %v3355, 0.0
          %vm3512 = vcmp.gt.f32.partialorder %v3360, 0.0
          %vm3513 = vcmp.gt.f32.partialorder %v3363, 0.0
          %vm3514 = vcmp.gt.f32.partialorder %v3368, 0.0
          %vm3515 = vcmp.gt.f32.partialorder %v3371, 0.0
          %vm3516 = vcmp.gt.f32.partialorder %v3376, 0.0
          %vm3517 = vcmp.gt.f32.partialorder %v3379, 0.0
          %vm3518 = vcmp.gt.f32.partialorder %v3384, 0.0
          %vm3519 = vcmp.gt.f32.partialorder %v3387, 0.0
          %vm3520 = vcmp.gt.f32.partialorder %v3392, 0.0
          %vm3521 = vcmp.gt.f32.partialorder %v3395, 0.0
          %vm3522 = vcmp.gt.f32.partialorder %v3400, 0.0
          %vm3523 = vcmp.gt.f32.partialorder %v3403, 0.0
          %vm3524 = vcmp.gt.f32.partialorder %v3408, 0.0
          %vm3525 = vcmp.gt.f32.partialorder %v3411, 0.0
          %vm3526 = vcmp.gt.f32.partialorder %v3416, 0.0
          %vm3527 = vcmp.gt.f32.partialorder %v3419, 0.0
          %vm3528 = vcmp.gt.f32.partialorder %v3424, 0.0
          %vm3529 = vcmp.gt.f32.partialorder %v3427, 0.0
          %vm3530 = vcmp.gt.f32.partialorder %v3432, 0.0
          %vm3531 = vcmp.gt.f32.partialorder %v3435, 0.0
          %vm3532 = vcmp.gt.f32.partialorder %v3440, 0.0
          %vm3533 = vcmp.gt.f32.partialorder %v3443, 0.0
          %vm3534 = vcmp.gt.f32.partialorder %v3448, 0.0
          %vm3535 = vcmp.gt.f32.partialorder %v3451, 0.0
          %vm3536 = vcmp.gt.f32.partialorder %v3456, 0.0
          %vm3537 = vcmp.gt.f32.partialorder %v3459, 0.0
          %vm3538 = vcmp.gt.f32.partialorder %v3464, 0.0
          %vm3539 = vcmp.gt.f32.partialorder %v3467, 0.0
          %vm3540 = vcmp.gt.f32.partialorder %v3472, 0.0
          %vm3541 = vcmp.gt.f32.partialorder %v3475, 0.0
          %v3542 = vmul.f32 %v3224, 0.01
          %v3543 = vmul.f32 %v3227, 0.01
          %v3544 = vmul.f32 %v3232, 0.01
          %v3545 = vmul.f32 %v3235, 0.01
          %v3546 = vmul.f32 %v3240, 0.01
          %v3547 = vmul.f32 %v3243, 0.01
          %v3548 = vmul.f32 %v3248, 0.01
          %v3549 = vmul.f32 %v3251, 0.01
          %v3550 = vmul.f32 %v3256, 0.01
          %v3551 = vmul.f32 %v3259, 0.01
          %v3552 = vmul.f32 %v3264, 0.01
          %v3553 = vmul.f32 %v3267, 0.01
          %v3554 = vmul.f32 %v3272, 0.01
          %v3555 = vmul.f32 %v3275, 0.01
          %v3556 = vmul.f32 %v3280, 0.01
          %v3557 = vmul.f32 %v3283, 0.01
          %v3558 = vmul.f32 %v3288, 0.01
          %v3559 = vmul.f32 %v3291, 0.01
          %v3560 = vmul.f32 %v3296, 0.01
          %v3561 = vmul.f32 %v3299, 0.01
          %v3562 = vmul.f32 %v3304, 0.01
          %v3563 = vmul.f32 %v3307, 0.01
          %v3564 = vmul.f32 %v3312, 0.01
          %v3565 = vmul.f32 %v3315, 0.01
          %v3566 = vmul.f32 %v3320, 0.01
          %v3567 = vmul.f32 %v3323, 0.01
          %v3568 = vmul.f32 %v3328, 0.01
          %v3569 = vmul.f32 %v3331, 0.01
          %v3570 = vmul.f32 %v3336, 0.01
          %v3571 = vmul.f32 %v3339, 0.01
          %v3572 = vmul.f32 %v3344, 0.01
          %v3573 = vmul.f32 %v3347, 0.01
          %v3574 = vmul.f32 %v3352, 0.01
          %v3575 = vmul.f32 %v3355, 0.01
          %v3576 = vmul.f32 %v3360, 0.01
          %v3577 = vmul.f32 %v3363, 0.01
          %v3578 = vmul.f32 %v3368, 0.01
          %v3579 = vmul.f32 %v3371, 0.01
          %v3580 = vmul.f32 %v3376, 0.01
          %v3581 = vmul.f32 %v3379, 0.01
          %v3582 = vmul.f32 %v3384, 0.01
          %v3583 = vmul.f32 %v3387, 0.01
          %v3584 = vmul.f32 %v3392, 0.01
          %v3585 = vmul.f32 %v3395, 0.01
          %v3586 = vmul.f32 %v3400, 0.01
          %v3587 = vmul.f32 %v3403, 0.01
          %v3588 = vmul.f32 %v3408, 0.01
          %v3589 = vmul.f32 %v3411, 0.01
          %v3590 = vmul.f32 %v3416, 0.01
          %v3591 = vmul.f32 %v3419, 0.01
          %v3592 = vmul.f32 %v3424, 0.01
          %v3593 = vmul.f32 %v3427, 0.01
          %v3594 = vmul.f32 %v3432, 0.01
          %v3595 = vmul.f32 %v3435, 0.01
          %v3596 = vmul.f32 %v3440, 0.01
          %v3597 = vmul.f32 %v3443, 0.01
          %v3598 = vmul.f32 %v3448, 0.01
          %v3599 = vmul.f32 %v3451, 0.01
          %v3600 = vmul.f32 %v3456, 0.01
          %v3601 = vmul.f32 %v3459, 0.01
          %v3602 = vmul.f32 %v3464, 0.01
          %v3603 = vmul.f32 %v3467, 0.01
          %v3604 = vmul.f32 %v3472, 0.01
          %v3605 = vmul.f32 %v3475, 0.01
          %v3606 = vsel %vm3478, %v3224, %v3542
          %v3607 = vsel %vm3479, %v3227, %v3543
          %v3608 = vsel %vm3480, %v3232, %v3544
          %v3609 = vsel %vm3481, %v3235, %v3545
          %v3610 = vsel %vm3482, %v3240, %v3546
          %v3611 = vsel %vm3483, %v3243, %v3547
          %v3612 = vsel %vm3484, %v3248, %v3548
          %v3613 = vsel %vm3485, %v3251, %v3549
          %v3614 = vsel %vm3486, %v3256, %v3550
          %v3615 = vsel %vm3487, %v3259, %v3551
          %v3616 = vsel %vm3488, %v3264, %v3552
          %v3617 = vsel %vm3489, %v3267, %v3553
          %v3618 = vsel %vm3490, %v3272, %v3554
          %v3619 = vsel %vm3491, %v3275, %v3555
          %v3620 = vsel %vm3492, %v3280, %v3556
          %v3621 = vsel %vm3493, %v3283, %v3557
          %v3622 = vsel %vm3494, %v3288, %v3558
          %v3623 = vsel %vm3495, %v3291, %v3559
          %v3624 = vsel %vm3496, %v3296, %v3560
          %v3625 = vsel %vm3497, %v3299, %v3561
          %v3626 = vsel %vm3498, %v3304, %v3562
          %v3627 = vsel %vm3499, %v3307, %v3563
          %v3628 = vsel %vm3500, %v3312, %v3564
          %v3629 = vsel %vm3501, %v3315, %v3565
          %v3630 = vsel %vm3502, %v3320, %v3566
          %v3631 = vsel %vm3503, %v3323, %v3567
          %v3632 = vsel %vm3504, %v3328, %v3568
          %v3633 = vsel %vm3505, %v3331, %v3569
          %v3634 = vsel %vm3506, %v3336, %v3570
          %v3635 = vsel %vm3507, %v3339, %v3571
          %v3636 = vsel %vm3508, %v3344, %v3572
          %v3637 = vsel %vm3509, %v3347, %v3573
          %v3638 = vsel %vm3510, %v3352, %v3574
          %v3639 = vsel %vm3511, %v3355, %v3575
          %v3640 = vsel %vm3512, %v3360, %v3576
          %v3641 = vsel %vm3513, %v3363, %v3577
          %v3642 = vsel %vm3514, %v3368, %v3578
          %v3643 = vsel %vm3515, %v3371, %v3579
          %v3644 = vsel %vm3516, %v3376, %v3580
          %v3645 = vsel %vm3517, %v3379, %v3581
          %v3646 = vsel %vm3518, %v3384, %v3582
          %v3647 = vsel %vm3519, %v3387, %v3583
          %v3648 = vsel %vm3520, %v3392, %v3584
          %v3649 = vsel %vm3521, %v3395, %v3585
          %v3650 = vsel %vm3522, %v3400, %v3586
          %v3651 = vsel %vm3523, %v3403, %v3587
          %v3652 = vsel %vm3524, %v3408, %v3588
          %v3653 = vsel %vm3525, %v3411, %v3589
          %v3654 = vsel %vm3526, %v3416, %v3590
          %v3655 = vsel %vm3527, %v3419, %v3591
          %v3656 = vsel %vm3528, %v3424, %v3592
          %v3657 = vsel %vm3529, %v3427, %v3593
          %v3658 = vsel %vm3530, %v3432, %v3594
          %v3659 = vsel %vm3531, %v3435, %v3595
          %v3660 = vsel %vm3532, %v3440, %v3596
          %v3661 = vsel %vm3533, %v3443, %v3597
          %v3662 = vsel %vm3534, %v3448, %v3598
          %v3663 = vsel %vm3535, %v3451, %v3599
          %v3664 = vsel %vm3536, %v3456, %v3600
          %v3665 = vsel %vm3537, %v3459, %v3601
          %v3666 = vsel %vm3538, %v3464, %v3602
          %v3667 = vsel %vm3539, %v3467, %v3603
          %v3668 = vsel %vm3540, %v3472, %v3604
          %v3669 = vsel %vm3541, %v3475, %v3605
          %v3670 = vpack.c.bf16 %v3607, %v3606
          %v3671 = vpack.c.bf16 %v3609, %v3608
          %v3672 = vpack.c.bf16 %v3611, %v3610
          %v3673 = vpack.c.bf16 %v3613, %v3612
          %v3674 = vpack.c.bf16 %v3615, %v3614
          %v3675 = vpack.c.bf16 %v3617, %v3616
          %v3676 = vpack.c.bf16 %v3619, %v3618
          %v3677 = vpack.c.bf16 %v3621, %v3620
          %v3678 = vpack.c.bf16 %v3623, %v3622
          %v3679 = vpack.c.bf16 %v3625, %v3624
          %v3680 = vpack.c.bf16 %v3627, %v3626
          %v3681 = vpack.c.bf16 %v3629, %v3628
          %v3682 = vpack.c.bf16 %v3631, %v3630
          %v3683 = vpack.c.bf16 %v3633, %v3632
          %v3684 = vpack.c.bf16 %v3635, %v3634
          %v3685 = vpack.c.bf16 %v3637, %v3636
          %v3686 = vpack.c.bf16 %v3639, %v3638
          %v3687 = vpack.c.bf16 %v3641, %v3640
          %v3688 = vpack.c.bf16 %v3643, %v3642
          %v3689 = vpack.c.bf16 %v3645, %v3644
          %v3690 = vpack.c.bf16 %v3647, %v3646
          %v3691 = vpack.c.bf16 %v3649, %v3648
          %v3692 = vpack.c.bf16 %v3651, %v3650
          %v3693 = vpack.c.bf16 %v3653, %v3652
          %v3694 = vpack.c.bf16 %v3655, %v3654
          %v3695 = vpack.c.bf16 %v3657, %v3656
          %v3696 = vpack.c.bf16 %v3659, %v3658
          %v3697 = vpack.c.bf16 %v3661, %v3660
          %v3698 = vpack.c.bf16 %v3663, %v3662
          %v3699 = vpack.c.bf16 %v3665, %v3664
          %v3700 = vpack.c.bf16 %v3667, %v3666
          %v3701 = vpack.c.bf16 %v3669, %v3668
          %v3702 = vld [vmem:[%s14] sm:$0xf]
          %v3703 = vld [vmem:[%s14 + $0x4] sm:$0xf]
          %v3704 = vld [vmem:[%s14 + $0x8] sm:$0xf]
          %v3705 = vld [vmem:[%s14 + $0xc] sm:$0xf]
          %v3706 = vld [vmem:[%s14 + $0x10] sm:$0xf]
          %v3707 = vld [vmem:[%s14 + $0x14] sm:$0xf]
          %v3708 = vld [vmem:[%s14 + $0x18] sm:$0xf]
          %v3709 = vld [vmem:[%s14 + $0x1c] sm:$0xf]
          %v3710 = vld [vmem:[%s14 + $0x20] sm:$0xf]
          %v3711 = vld [vmem:[%s14 + $0x24] sm:$0xf]
          %v3712 = vld [vmem:[%s14 + $0x28] sm:$0xf]
          %v3713 = vld [vmem:[%s14 + $0x2c] sm:$0xf]
          %v3714 = vld [vmem:[%s14 + $0x30] sm:$0xf]
          %v3715 = vld [vmem:[%s14 + $0x34] sm:$0xf]
          %v3716 = vld [vmem:[%s14 + $0x38] sm:$0xf]
          %v3717 = vld [vmem:[%s14 + $0x3c] sm:$0xf]
          %v3718 = vld [vmem:[%s15] sm:$0x1]
          %v3720 = vlaneseq
          %v3721 = vshrl.u32 %v3720, 7
          %v3722 = vsub.s32 0, %v3721
          %v3723 = vrot.slane %v3718, %v3722
          %v3741 = vunpack.c.l.b16 %v3702
          %v3742 = vunpack.c.l.b16 %v3703
          %v3743 = vunpack.c.l.b16 %v3704
          %v3744 = vunpack.c.l.b16 %v3705
          %v3745 = vunpack.c.l.b16 %v3706
          %v3746 = vunpack.c.l.b16 %v3707
          %v3747 = vunpack.c.l.b16 %v3708
          %v3748 = vunpack.c.l.b16 %v3709
          %v3749 = vunpack.c.l.b16 %v3710
          %v3750 = vunpack.c.l.b16 %v3711
          %v3751 = vunpack.c.l.b16 %v3712
          %v3752 = vunpack.c.l.b16 %v3713
          %v3753 = vunpack.c.l.b16 %v3714
          %v3754 = vunpack.c.l.b16 %v3715
          %v3755 = vunpack.c.l.b16 %v3716
          %v3756 = vunpack.c.l.b16 %v3717
          %v3757 = vpack.c.b16 %v3742, %v3741
          %v3758 = vpack.c.b16 %v3744, %v3743
          %v3759 = vpack.c.b16 %v3746, %v3745
          %v3760 = vpack.c.b16 %v3748, %v3747
          %v3761 = vpack.c.b16 %v3750, %v3749
          %v3762 = vpack.c.b16 %v3752, %v3751
          %v3763 = vpack.c.b16 %v3754, %v3753
          %v3764 = vpack.c.b16 %v3756, %v3755
          %3773 = vmatprep.subr.bf16.mxu0 0
          %3774 = vmatpush1.bf16.msra.mxu0 %v3757
          %3775 = vmatprep.subr.bf16.mxu0 0
          %3776 = vmatpush1.bf16.msra.mxu0 %v3758
          %3777 = vmatprep.subr.bf16.mxu0 0
          %3778 = vmatpush1.bf16.msra.mxu0 %v3759
          %3779 = vmatprep.subr.bf16.mxu0 0
          %3780 = vmatpush1.bf16.msra.mxu0 %v3760
          %3781 = vmatprep.subr.bf16.mxu0 0
          %3782 = vmatpush1.bf16.msra.mxu0 %v3761
          %3783 = vmatprep.subr.bf16.mxu0 0
          %3784 = vmatpush1.bf16.msra.mxu0 %v3762
          %3785 = vmatprep.subr.bf16.mxu0 0
          %3786 = vmatpush1.bf16.msra.mxu0 %v3763
          %3787 = vmatprep.subr.bf16.mxu0 0
          %3788 = vmatpush1.bf16.msra.mxu0 %v3764
          %3789 = vmatprep.subr.bf16.mxu0 0
          %3790 = vmatpush1.bf16.msra.mxu0 0
          %3791 = vmatprep.subr.bf16.mxu0 0
          %3792 = vmatpush1.bf16.msra.mxu0 0
          %3793 = vmatprep.subr.bf16.mxu0 0
          %3794 = vmatpush1.bf16.msra.mxu0 0
          %3795 = vmatprep.subr.bf16.mxu0 0
          %3796 = vmatpush1.bf16.msra.mxu0 0
          %3797 = vmatprep.subr.bf16.mxu0 0
          %3798 = vmatpush1.bf16.msra.mxu0 0
          %3799 = vmatprep.subr.bf16.mxu0 0
          %3800 = vmatpush1.bf16.msra.mxu0 0
          %3801 = vmatprep.subr.bf16.mxu0 0
          %3802 = vmatpush1.bf16.msra.mxu0 0
          %3803 = vmatprep.subr.bf16.mxu0 0
          %3804 = vmatpush1.bf16.msra.mxu0 0
          %3805 = vmatprep.mubr.bf16.mxu0 0
          %3806 = vmatmul.mubr.bf16.gmra.mrb[0].mxu0 %v3670
          %v3807 = vpop.f32.mrb[0].mxu0
          %v3808 = vadd.f32 %v3723, %v3807
          %v3809 = vpop.f32.mrb[0].mxu0
          %v3810 = vpop.f32.mrb[0].mxu0
          %v3811 = vadd.f32 %v3723, %v3810
          %v3812 = vpop.f32.mrb[0].mxu0
          %3813 = vmatprep.mubr.bf16.mxu0 0
          %3814 = vmatmul.mubr.bf16.gmra.mrb[0].mxu0 %v3671
          %v3815 = vpop.f32.mrb[0].mxu0
          %v3816 = vadd.f32 %v3723, %v3815
          %v3817 = vpop.f32.mrb[0].mxu0
          %v3818 = vpop.f32.mrb[0].mxu0
          %v3819 = vadd.f32 %v3723, %v3818
          %v3820 = vpop.f32.mrb[0].mxu0
          %3821 = vmatprep.mubr.bf16.mxu0 0
          %3822 = vmatmul.mubr.bf16.gmra.mrb[0].mxu0 %v3672
          %v3823 = vpop.f32.mrb[0].mxu0
          %v3824 = vadd.f32 %v3723, %v3823
          %v3825 = vpop.f32.mrb[0].mxu0
          %v3826 = vpop.f32.mrb[0].mxu0
          %v3827 = vadd.f32 %v3723, %v3826
          %v3828 = vpop.f32.mrb[0].mxu0
          %3829 = vmatprep.mubr.bf16.mxu0 0
          %3830 = vmatmul.mubr.bf16.gmra.mrb[0].mxu0 %v3673
          %v3831 = vpop.f32.mrb[0].mxu0
          %v3832 = vadd.f32 %v3723, %v3831
          %v3833 = vpop.f32.mrb[0].mxu0
          %v3834 = vpop.f32.mrb[0].mxu0
          %v3835 = vadd.f32 %v3723, %v3834
          %v3836 = vpop.f32.mrb[0].mxu0
          %3837 = vmatprep.mubr.bf16.mxu0 0
          %3838 = vmatmul.mubr.bf16.gmra.mrb[0].mxu0 %v3674
          %v3839 = vpop.f32.mrb[0].mxu0
          %v3840 = vadd.f32 %v3723, %v3839
          %v3841 = vpop.f32.mrb[0].mxu0
          %v3842 = vpop.f32.mrb[0].mxu0
          %v3843 = vadd.f32 %v3723, %v3842
          %v3844 = vpop.f32.mrb[0].mxu0
          %3845 = vmatprep.mubr.bf16.mxu0 0
          %3846 = vmatmul.mubr.bf16.gmra.mrb[0].mxu0 %v3675
          %v3847 = vpop.f32.mrb[0].mxu0
          %v3848 = vadd.f32 %v3723, %v3847
          %v3849 = vpop.f32.mrb[0].mxu0
          %v3850 = vpop.f32.mrb[0].mxu0
          %v3851 = vadd.f32 %v3723, %v3850
          %v3852 = vpop.f32.mrb[0].mxu0
          %3853 = vmatprep.mubr.bf16.mxu0 0
          %3854 = vmatmul.mubr.bf16.gmra.mrb[0].mxu0 %v3676
          %v3855 = vpop.f32.mrb[0].mxu0
          %v3856 = vadd.f32 %v3723, %v3855
          %v3857 = vpop.f32.mrb[0].mxu0
          %v3858 = vpop.f32.mrb[0].mxu0
          %v3859 = vadd.f32 %v3723, %v3858
          %v3860 = vpop.f32.mrb[0].mxu0
          %3861 = vmatprep.mubr.bf16.mxu0 0
          %3862 = vmatmul.mubr.bf16.gmra.mrb[0].mxu0 %v3677
          %v3863 = vpop.f32.mrb[0].mxu0
          %v3864 = vadd.f32 %v3723, %v3863
          %v3865 = vpop.f32.mrb[0].mxu0
          %v3866 = vpop.f32.mrb[0].mxu0
          %v3867 = vadd.f32 %v3723, %v3866
          %v3868 = vpop.f32.mrb[0].mxu0
          %3869 = vmatprep.mubr.bf16.mxu0 0
          %3870 = vmatmul.mubr.bf16.gmra.mrb[0].mxu0 %v3678
          %v3871 = vpop.f32.mrb[0].mxu0
          %v3872 = vadd.f32 %v3723, %v3871
          %v3873 = vpop.f32.mrb[0].mxu0
          %v3874 = vpop.f32.mrb[0].mxu0
          %v3875 = vadd.f32 %v3723, %v3874
          %v3876 = vpop.f32.mrb[0].mxu0
          %3877 = vmatprep.mubr.bf16.mxu0 0
          %3878 = vmatmul.mubr.bf16.gmra.mrb[0].mxu0 %v3679
          %v3879 = vpop.f32.mrb[0].mxu0
          %v3880 = vadd.f32 %v3723, %v3879
          %v3881 = vpop.f32.mrb[0].mxu0
          %v3882 = vpop.f32.mrb[0].mxu0
          %v3883 = vadd.f32 %v3723, %v3882
          %v3884 = vpop.f32.mrb[0].mxu0
          %3885 = vmatprep.mubr.bf16.mxu0 0
          %3886 = vmatmul.mubr.bf16.gmra.mrb[0].mxu0 %v3680
          %v3887 = vpop.f32.mrb[0].mxu0
          %v3888 = vadd.f32 %v3723, %v3887
          %v3889 = vpop.f32.mrb[0].mxu0
          %v3890 = vpop.f32.mrb[0].mxu0
          %v3891 = vadd.f32 %v3723, %v3890
          %v3892 = vpop.f32.mrb[0].mxu0
          %3893 = vmatprep.mubr.bf16.mxu0 0
          %3894 = vmatmul.mubr.bf16.gmra.mrb[0].mxu0 %v3681
          %v3895 = vpop.f32.mrb[0].mxu0
          %v3896 = vadd.f32 %v3723, %v3895
          %v3897 = vpop.f32.mrb[0].mxu0
          %v3898 = vpop.f32.mrb[0].mxu0
          %v3899 = vadd.f32 %v3723, %v3898
          %v3900 = vpop.f32.mrb[0].mxu0
          %3901 = vmatprep.mubr.bf16.mxu0 0
          %3902 = vmatmul.mubr.bf16.gmra.mrb[0].mxu0 %v3682
          %v3903 = vpop.f32.mrb[0].mxu0
          %v3904 = vadd.f32 %v3723, %v3903
          %v3905 = vpop.f32.mrb[0].mxu0
          %v3906 = vpop.f32.mrb[0].mxu0
          %v3907 = vadd.f32 %v3723, %v3906
          %v3908 = vpop.f32.mrb[0].mxu0
          %3909 = vmatprep.mubr.bf16.mxu0 0
          %3910 = vmatmul.mubr.bf16.gmra.mrb[0].mxu0 %v3683
          %v3911 = vpop.f32.mrb[0].mxu0
          %v3912 = vadd.f32 %v3723, %v3911
          %v3913 = vpop.f32.mrb[0].mxu0
          %v3914 = vpop.f32.mrb[0].mxu0
          %v3915 = vadd.f32 %v3723, %v3914
          %v3916 = vpop.f32.mrb[0].mxu0
          %3917 = vmatprep.mubr.bf16.mxu0 0
          %3918 = vmatmul.mubr.bf16.gmra.mrb[0].mxu0 %v3684
          %v3919 = vpop.f32.mrb[0].mxu0
          %v3920 = vadd.f32 %v3723, %v3919
          %v3921 = vpop.f32.mrb[0].mxu0
          %v3922 = vpop.f32.mrb[0].mxu0
          %v3923 = vadd.f32 %v3723, %v3922
          %v3924 = vpop.f32.mrb[0].mxu0
          %3925 = vmatprep.mubr.bf16.mxu0 0
          %3926 = vmatmul.mubr.bf16.gmra.mrb[0].mxu0 %v3685
          %v3927 = vpop.f32.mrb[0].mxu0
          %v3928 = vadd.f32 %v3723, %v3927
          %v3929 = vpop.f32.mrb[0].mxu0
          %v3930 = vpop.f32.mrb[0].mxu0
          %v3931 = vadd.f32 %v3723, %v3930
          %v3932 = vpop.f32.mrb[0].mxu0
          %3933 = vmatprep.mubr.bf16.mxu0 0
          %3934 = vmatmul.mubr.bf16.gmra.mrb[0].mxu0 %v3686
          %v3935 = vpop.f32.mrb[0].mxu0
          %v3936 = vadd.f32 %v3723, %v3935
          %v3937 = vpop.f32.mrb[0].mxu0
          %v3938 = vpop.f32.mrb[0].mxu0
          %v3939 = vadd.f32 %v3723, %v3938
          %v3940 = vpop.f32.mrb[0].mxu0
          %3941 = vmatprep.mubr.bf16.mxu0 0
          %3942 = vmatmul.mubr.bf16.gmra.mrb[0].mxu0 %v3687
          %v3943 = vpop.f32.mrb[0].mxu0
          %v3944 = vadd.f32 %v3723, %v3943
          %v3945 = vpop.f32.mrb[0].mxu0
          %v3946 = vpop.f32.mrb[0].mxu0
          %v3947 = vadd.f32 %v3723, %v3946
          %v3948 = vpop.f32.mrb[0].mxu0
          %3949 = vmatprep.mubr.bf16.mxu0 0
          %3950 = vmatmul.mubr.bf16.gmra.mrb[0].mxu0 %v3688
          %v3951 = vpop.f32.mrb[0].mxu0
          %v3952 = vadd.f32 %v3723, %v3951
          %v3953 = vpop.f32.mrb[0].mxu0
          %v3954 = vpop.f32.mrb[0].mxu0
          %v3955 = vadd.f32 %v3723, %v3954
          %v3956 = vpop.f32.mrb[0].mxu0
          %3957 = vmatprep.mubr.bf16.mxu0 0
          %3958 = vmatmul.mubr.bf16.gmra.mrb[0].mxu0 %v3689
          %v3959 = vpop.f32.mrb[0].mxu0
          %v3960 = vadd.f32 %v3723, %v3959
          %v3961 = vpop.f32.mrb[0].mxu0
          %v3962 = vpop.f32.mrb[0].mxu0
          %v3963 = vadd.f32 %v3723, %v3962
          %v3964 = vpop.f32.mrb[0].mxu0
          %3965 = vmatprep.mubr.bf16.mxu0 0
          %3966 = vmatmul.mubr.bf16.gmra.mrb[0].mxu0 %v3690
          %v3967 = vpop.f32.mrb[0].mxu0
          %v3968 = vadd.f32 %v3723, %v3967
          %v3969 = vpop.f32.mrb[0].mxu0
          %v3970 = vpop.f32.mrb[0].mxu0
          %v3971 = vadd.f32 %v3723, %v3970
          %v3972 = vpop.f32.mrb[0].mxu0
          %3973 = vmatprep.mubr.bf16.mxu0 0
          %3974 = vmatmul.mubr.bf16.gmra.mrb[0].mxu0 %v3691
          %v3975 = vpop.f32.mrb[0].mxu0
          %v3976 = vadd.f32 %v3723, %v3975
          %v3977 = vpop.f32.mrb[0].mxu0
          %v3978 = vpop.f32.mrb[0].mxu0
          %v3979 = vadd.f32 %v3723, %v3978
          %v3980 = vpop.f32.mrb[0].mxu0
          %3981 = vmatprep.mubr.bf16.mxu0 0
          %3982 = vmatmul.mubr.bf16.gmra.mrb[0].mxu0 %v3692
          %v3983 = vpop.f32.mrb[0].mxu0
          %v3984 = vadd.f32 %v3723, %v3983
          %v3985 = vpop.f32.mrb[0].mxu0
          %v3986 = vpop.f32.mrb[0].mxu0
          %v3987 = vadd.f32 %v3723, %v3986
          %v3988 = vpop.f32.mrb[0].mxu0
          %3989 = vmatprep.mubr.bf16.mxu0 0
          %3990 = vmatmul.mubr.bf16.gmra.mrb[0].mxu0 %v3693
          %v3991 = vpop.f32.mrb[0].mxu0
          %v3992 = vadd.f32 %v3723, %v3991
          %v3993 = vpop.f32.mrb[0].mxu0
          %v3994 = vpop.f32.mrb[0].mxu0
          %v3995 = vadd.f32 %v3723, %v3994
          %v3996 = vpop.f32.mrb[0].mxu0
          %3997 = vmatprep.mubr.bf16.mxu0 0
          %3998 = vmatmul.mubr.bf16.gmra.mrb[0].mxu0 %v3694
          %v3999 = vpop.f32.mrb[0].mxu0
          %v4000 = vadd.f32 %v3723, %v3999
          %v4001 = vpop.f32.mrb[0].mxu0
          %v4002 = vpop.f32.mrb[0].mxu0
          %v4003 = vadd.f32 %v3723, %v4002
          %v4004 = vpop.f32.mrb[0].mxu0
          %4005 = vmatprep.mubr.bf16.mxu0 0
          %4006 = vmatmul.mubr.bf16.gmra.mrb[0].mxu0 %v3695
          %v4007 = vpop.f32.mrb[0].mxu0
          %v4008 = vadd.f32 %v3723, %v4007
          %v4009 = vpop.f32.mrb[0].mxu0
          %v4010 = vpop.f32.mrb[0].mxu0
          %v4011 = vadd.f32 %v3723, %v4010
          %v4012 = vpop.f32.mrb[0].mxu0
          %4013 = vmatprep.mubr.bf16.mxu0 0
          %4014 = vmatmul.mubr.bf16.gmra.mrb[0].mxu0 %v3696
          %v4015 = vpop.f32.mrb[0].mxu0
          %v4016 = vadd.f32 %v3723, %v4015
          %v4017 = vpop.f32.mrb[0].mxu0
          %v4018 = vpop.f32.mrb[0].mxu0
          %v4019 = vadd.f32 %v3723, %v4018
          %v4020 = vpop.f32.mrb[0].mxu0
          %4021 = vmatprep.mubr.bf16.mxu0 0
          %4022 = vmatmul.mubr.bf16.gmra.mrb[0].mxu0 %v3697
          %v4023 = vpop.f32.mrb[0].mxu0
          %v4024 = vadd.f32 %v3723, %v4023
          %v4025 = vpop.f32.mrb[0].mxu0
          %v4026 = vpop.f32.mrb[0].mxu0
          %v4027 = vadd.f32 %v3723, %v4026
          %v4028 = vpop.f32.mrb[0].mxu0
          %4029 = vmatprep.mubr.bf16.mxu0 0
          %4030 = vmatmul.mubr.bf16.gmra.mrb[0].mxu0 %v3698
          %v4031 = vpop.f32.mrb[0].mxu0
          %v4032 = vadd.f32 %v3723, %v4031
          %v4033 = vpop.f32.mrb[0].mxu0
          %v4034 = vpop.f32.mrb[0].mxu0
          %v4035 = vadd.f32 %v3723, %v4034
          %v4036 = vpop.f32.mrb[0].mxu0
          %4037 = vmatprep.mubr.bf16.mxu0 0
          %4038 = vmatmul.mubr.bf16.gmra.mrb[0].mxu0 %v3699
          %v4039 = vpop.f32.mrb[0].mxu0
          %v4040 = vadd.f32 %v3723, %v4039
          %v4041 = vpop.f32.mrb[0].mxu0
          %v4042 = vpop.f32.mrb[0].mxu0
          %v4043 = vadd.f32 %v3723, %v4042
          %v4044 = vpop.f32.mrb[0].mxu0
          %4045 = vmatprep.mubr.bf16.mxu0 0
          %4046 = vmatmul.mubr.bf16.gmra.mrb[0].mxu0 %v3700
          %v4047 = vpop.f32.mrb[0].mxu0
          %v4048 = vadd.f32 %v3723, %v4047
          %v4049 = vpop.f32.mrb[0].mxu0
          %v4050 = vpop.f32.mrb[0].mxu0
          %v4051 = vadd.f32 %v3723, %v4050
          %v4052 = vpop.f32.mrb[0].mxu0
          %4053 = vmatprep.mubr.bf16.mxu0 0
          %4054 = vmatmul.mubr.bf16.gmra.mrb[0].mxu0 %v3701
          %v4055 = vpop.f32.mrb[0].mxu0
          %v4056 = vadd.f32 %v3723, %v4055
          %v4057 = vpop.f32.mrb[0].mxu0
          %v4058 = vpop.f32.mrb[0].mxu0
          %v4059 = vadd.f32 %v3723, %v4058
          %v4060 = vpop.f32.mrb[0].mxu0
          %4061 = vdwg.mxu0
          %vm4062 = vcmp.gt.f32.partialorder %v3808, 0.0
          %vm4063 = vcmp.gt.f32.partialorder %v3811, 0.0
          %vm4064 = vcmp.gt.f32.partialorder %v3816, 0.0
          %vm4065 = vcmp.gt.f32.partialorder %v3819, 0.0
          %vm4066 = vcmp.gt.f32.partialorder %v3824, 0.0
          %vm4067 = vcmp.gt.f32.partialorder %v3827, 0.0
          %vm4068 = vcmp.gt.f32.partialorder %v3832, 0.0
          %vm4069 = vcmp.gt.f32.partialorder %v3835, 0.0
          %vm4070 = vcmp.gt.f32.partialorder %v3840, 0.0
          %vm4071 = vcmp.gt.f32.partialorder %v3843, 0.0
          %vm4072 = vcmp.gt.f32.partialorder %v3848, 0.0
          %vm4073 = vcmp.gt.f32.partialorder %v3851, 0.0
          %vm4074 = vcmp.gt.f32.partialorder %v3856, 0.0
          %vm4075 = vcmp.gt.f32.partialorder %v3859, 0.0
          %vm4076 = vcmp.gt.f32.partialorder %v3864, 0.0
          %vm4077 = vcmp.gt.f32.partialorder %v3867, 0.0
          %vm4078 = vcmp.gt.f32.partialorder %v3872, 0.0
          %vm4079 = vcmp.gt.f32.partialorder %v3875, 0.0
          %vm4080 = vcmp.gt.f32.partialorder %v3880, 0.0
          %vm4081 = vcmp.gt.f32.partialorder %v3883, 0.0
          %vm4082 = vcmp.gt.f32.partialorder %v3888, 0.0
          %vm4083 = vcmp.gt.f32.partialorder %v3891, 0.0
          %vm4084 = vcmp.gt.f32.partialorder %v3896, 0.0
          %vm4085 = vcmp.gt.f32.partialorder %v3899, 0.0
          %vm4086 = vcmp.gt.f32.partialorder %v3904, 0.0
          %vm4087 = vcmp.gt.f32.partialorder %v3907, 0.0
          %vm4088 = vcmp.gt.f32.partialorder %v3912, 0.0
          %vm4089 = vcmp.gt.f32.partialorder %v3915, 0.0
          %vm4090 = vcmp.gt.f32.partialorder %v3920, 0.0
          %vm4091 = vcmp.gt.f32.partialorder %v3923, 0.0
          %vm4092 = vcmp.gt.f32.partialorder %v3928, 0.0
          %vm4093 = vcmp.gt.f32.partialorder %v3931, 0.0
          %vm4094 = vcmp.gt.f32.partialorder %v3936, 0.0
          %vm4095 = vcmp.gt.f32.partialorder %v3939, 0.0
          %vm4096 = vcmp.gt.f32.partialorder %v3944, 0.0
          %vm4097 = vcmp.gt.f32.partialorder %v3947, 0.0
          %vm4098 = vcmp.gt.f32.partialorder %v3952, 0.0
          %vm4099 = vcmp.gt.f32.partialorder %v3955, 0.0
          %vm4100 = vcmp.gt.f32.partialorder %v3960, 0.0
          %vm4101 = vcmp.gt.f32.partialorder %v3963, 0.0
          %vm4102 = vcmp.gt.f32.partialorder %v3968, 0.0
          %vm4103 = vcmp.gt.f32.partialorder %v3971, 0.0
          %vm4104 = vcmp.gt.f32.partialorder %v3976, 0.0
          %vm4105 = vcmp.gt.f32.partialorder %v3979, 0.0
          %vm4106 = vcmp.gt.f32.partialorder %v3984, 0.0
          %vm4107 = vcmp.gt.f32.partialorder %v3987, 0.0
          %vm4108 = vcmp.gt.f32.partialorder %v3992, 0.0
          %vm4109 = vcmp.gt.f32.partialorder %v3995, 0.0
          %vm4110 = vcmp.gt.f32.partialorder %v4000, 0.0
          %vm4111 = vcmp.gt.f32.partialorder %v4003, 0.0
          %vm4112 = vcmp.gt.f32.partialorder %v4008, 0.0
          %vm4113 = vcmp.gt.f32.partialorder %v4011, 0.0
          %vm4114 = vcmp.gt.f32.partialorder %v4016, 0.0
          %vm4115 = vcmp.gt.f32.partialorder %v4019, 0.0
          %vm4116 = vcmp.gt.f32.partialorder %v4024, 0.0
          %vm4117 = vcmp.gt.f32.partialorder %v4027, 0.0
          %vm4118 = vcmp.gt.f32.partialorder %v4032, 0.0
          %vm4119 = vcmp.gt.f32.partialorder %v4035, 0.0
          %vm4120 = vcmp.gt.f32.partialorder %v4040, 0.0
          %vm4121 = vcmp.gt.f32.partialorder %v4043, 0.0
          %vm4122 = vcmp.gt.f32.partialorder %v4048, 0.0
          %vm4123 = vcmp.gt.f32.partialorder %v4051, 0.0
          %vm4124 = vcmp.gt.f32.partialorder %v4056, 0.0
          %vm4125 = vcmp.gt.f32.partialorder %v4059, 0.0
          %v4126 = vmul.f32 %v3808, 0.01
          %v4127 = vmul.f32 %v3811, 0.01
          %v4128 = vmul.f32 %v3816, 0.01
          %v4129 = vmul.f32 %v3819, 0.01
          %v4130 = vmul.f32 %v3824, 0.01
          %v4131 = vmul.f32 %v3827, 0.01
          %v4132 = vmul.f32 %v3832, 0.01
          %v4133 = vmul.f32 %v3835, 0.01
          %v4134 = vmul.f32 %v3840, 0.01
          %v4135 = vmul.f32 %v3843, 0.01
          %v4136 = vmul.f32 %v3848, 0.01
          %v4137 = vmul.f32 %v3851, 0.01
          %v4138 = vmul.f32 %v3856, 0.01
          %v4139 = vmul.f32 %v3859, 0.01
          %v4140 = vmul.f32 %v3864, 0.01
          %v4141 = vmul.f32 %v3867, 0.01
          %v4142 = vmul.f32 %v3872, 0.01
          %v4143 = vmul.f32 %v3875, 0.01
          %v4144 = vmul.f32 %v3880, 0.01
          %v4145 = vmul.f32 %v3883, 0.01
          %v4146 = vmul.f32 %v3888, 0.01
          %v4147 = vmul.f32 %v3891, 0.01
          %v4148 = vmul.f32 %v3896, 0.01
          %v4149 = vmul.f32 %v3899, 0.01
          %v4150 = vmul.f32 %v3904, 0.01
          %v4151 = vmul.f32 %v3907, 0.01
          %v4152 = vmul.f32 %v3912, 0.01
          %v4153 = vmul.f32 %v3915, 0.01
          %v4154 = vmul.f32 %v3920, 0.01
          %v4155 = vmul.f32 %v3923, 0.01
          %v4156 = vmul.f32 %v3928, 0.01
          %v4157 = vmul.f32 %v3931, 0.01
          %v4158 = vmul.f32 %v3936, 0.01
          %v4159 = vmul.f32 %v3939, 0.01
          %v4160 = vmul.f32 %v3944, 0.01
          %v4161 = vmul.f32 %v3947, 0.01
          %v4162 = vmul.f32 %v3952, 0.01
          %v4163 = vmul.f32 %v3955, 0.01
          %v4164 = vmul.f32 %v3960, 0.01
          %v4165 = vmul.f32 %v3963, 0.01
          %v4166 = vmul.f32 %v3968, 0.01
          %v4167 = vmul.f32 %v3971, 0.01
          %v4168 = vmul.f32 %v3976, 0.01
          %v4169 = vmul.f32 %v3979, 0.01
          %v4170 = vmul.f32 %v3984, 0.01
          %v4171 = vmul.f32 %v3987, 0.01
          %v4172 = vmul.f32 %v3992, 0.01
          %v4173 = vmul.f32 %v3995, 0.01
          %v4174 = vmul.f32 %v4000, 0.01
          %v4175 = vmul.f32 %v4003, 0.01
          %v4176 = vmul.f32 %v4008, 0.01
          %v4177 = vmul.f32 %v4011, 0.01
          %v4178 = vmul.f32 %v4016, 0.01
          %v4179 = vmul.f32 %v4019, 0.01
          %v4180 = vmul.f32 %v4024, 0.01
          %v4181 = vmul.f32 %v4027, 0.01
          %v4182 = vmul.f32 %v4032, 0.01
          %v4183 = vmul.f32 %v4035, 0.01
          %v4184 = vmul.f32 %v4040, 0.01
          %v4185 = vmul.f32 %v4043, 0.01
          %v4186 = vmul.f32 %v4048, 0.01
          %v4187 = vmul.f32 %v4051, 0.01
          %v4188 = vmul.f32 %v4056, 0.01
          %v4189 = vmul.f32 %v4059, 0.01
          %v4190 = vsel %vm4062, %v3808, %v4126
          %v4191 = vsel %vm4063, %v3811, %v4127
          %v4192 = vsel %vm4064, %v3816, %v4128
          %v4193 = vsel %vm4065, %v3819, %v4129
          %v4194 = vsel %vm4066, %v3824, %v4130
          %v4195 = vsel %vm4067, %v3827, %v4131
          %v4196 = vsel %vm4068, %v3832, %v4132
          %v4197 = vsel %vm4069, %v3835, %v4133
          %v4198 = vsel %vm4070, %v3840, %v4134
          %v4199 = vsel %vm4071, %v3843, %v4135
          %v4200 = vsel %vm4072, %v3848, %v4136
          %v4201 = vsel %vm4073, %v3851, %v4137
          %v4202 = vsel %vm4074, %v3856, %v4138
          %v4203 = vsel %vm4075, %v3859, %v4139
          %v4204 = vsel %vm4076, %v3864, %v4140
          %v4205 = vsel %vm4077, %v3867, %v4141
          %v4206 = vsel %vm4078, %v3872, %v4142
          %v4207 = vsel %vm4079, %v3875, %v4143
          %v4208 = vsel %vm4080, %v3880, %v4144
          %v4209 = vsel %vm4081, %v3883, %v4145
          %v4210 = vsel %vm4082, %v3888, %v4146
          %v4211 = vsel %vm4083, %v3891, %v4147
          %v4212 = vsel %vm4084, %v3896, %v4148
          %v4213 = vsel %vm4085, %v3899, %v4149
          %v4214 = vsel %vm4086, %v3904, %v4150
          %v4215 = vsel %vm4087, %v3907, %v4151
          %v4216 = vsel %vm4088, %v3912, %v4152
          %v4217 = vsel %vm4089, %v3915, %v4153
          %v4218 = vsel %vm4090, %v3920, %v4154
          %v4219 = vsel %vm4091, %v3923, %v4155
          %v4220 = vsel %vm4092, %v3928, %v4156
          %v4221 = vsel %vm4093, %v3931, %v4157
          %v4222 = vsel %vm4094, %v3936, %v4158
          %v4223 = vsel %vm4095, %v3939, %v4159
          %v4224 = vsel %vm4096, %v3944, %v4160
          %v4225 = vsel %vm4097, %v3947, %v4161
          %v4226 = vsel %vm4098, %v3952, %v4162
          %v4227 = vsel %vm4099, %v3955, %v4163
          %v4228 = vsel %vm4100, %v3960, %v4164
          %v4229 = vsel %vm4101, %v3963, %v4165
          %v4230 = vsel %vm4102, %v3968, %v4166
          %v4231 = vsel %vm4103, %v3971, %v4167
          %v4232 = vsel %vm4104, %v3976, %v4168
          %v4233 = vsel %vm4105, %v3979, %v4169
          %v4234 = vsel %vm4106, %v3984, %v4170
          %v4235 = vsel %vm4107, %v3987, %v4171
          %v4236 = vsel %vm4108, %v3992, %v4172
          %v4237 = vsel %vm4109, %v3995, %v4173
          %v4238 = vsel %vm4110, %v4000, %v4174
          %v4239 = vsel %vm4111, %v4003, %v4175
          %v4240 = vsel %vm4112, %v4008, %v4176
          %v4241 = vsel %vm4113, %v4011, %v4177
          %v4242 = vsel %vm4114, %v4016, %v4178
          %v4243 = vsel %vm4115, %v4019, %v4179
          %v4244 = vsel %vm4116, %v4024, %v4180
          %v4245 = vsel %vm4117, %v4027, %v4181
          %v4246 = vsel %vm4118, %v4032, %v4182
          %v4247 = vsel %vm4119, %v4035, %v4183
          %v4248 = vsel %vm4120, %v4040, %v4184
          %v4249 = vsel %vm4121, %v4043, %v4185
          %v4250 = vsel %vm4122, %v4048, %v4186
          %v4251 = vsel %vm4123, %v4051, %v4187
          %v4252 = vsel %vm4124, %v4056, %v4188
          %v4253 = vsel %vm4125, %v4059, %v4189
          %v4254 = vld [vmem:[%s16] sm:$0xf]
          %v4255 = vpack.c.bf16 %v4191, %v4190
          %v4256 = vpack.c.bf16 %v4193, %v4192
          %v4257 = vpack.c.bf16 %v4195, %v4194
          %v4258 = vpack.c.bf16 %v4197, %v4196
          %v4259 = vpack.c.bf16 %v4199, %v4198
          %v4260 = vpack.c.bf16 %v4201, %v4200
          %v4261 = vpack.c.bf16 %v4203, %v4202
          %v4262 = vpack.c.bf16 %v4205, %v4204
          %v4263 = vpack.c.bf16 %v4207, %v4206
          %v4264 = vpack.c.bf16 %v4209, %v4208
          %v4265 = vpack.c.bf16 %v4211, %v4210
          %v4266 = vpack.c.bf16 %v4213, %v4212
          %v4267 = vpack.c.bf16 %v4215, %v4214
          %v4268 = vpack.c.bf16 %v4217, %v4216
          %v4269 = vpack.c.bf16 %v4219, %v4218
          %v4270 = vpack.c.bf16 %v4221, %v4220
          %v4271 = vpack.c.bf16 %v4223, %v4222
          %v4272 = vpack.c.bf16 %v4225, %v4224
          %v4273 = vpack.c.bf16 %v4227, %v4226
          %v4274 = vpack.c.bf16 %v4229, %v4228
          %v4275 = vpack.c.bf16 %v4231, %v4230
          %v4276 = vpack.c.bf16 %v4233, %v4232
          %v4277 = vpack.c.bf16 %v4235, %v4234
          %v4278 = vpack.c.bf16 %v4237, %v4236
          %v4279 = vpack.c.bf16 %v4239, %v4238
          %v4280 = vpack.c.bf16 %v4241, %v4240
          %v4281 = vpack.c.bf16 %v4243, %v4242
          %v4282 = vpack.c.bf16 %v4245, %v4244
          %v4283 = vpack.c.bf16 %v4247, %v4246
          %v4284 = vpack.c.bf16 %v4249, %v4248
          %v4285 = vpack.c.bf16 %v4251, %v4250
          %v4286 = vpack.c.bf16 %v4253, %v4252
          %4287 = vmatprep.subr.bf16.mxu0 0
          %4288 = vmatpush1.bf16.xpose.msra.mxu0 %v4255
          %4289 = vmatprep.subr.bf16.mxu0 0
          %4290 = vmatpush1.bf16.xpose.msra.mxu0 %v4256
          %4291 = vmatprep.subr.bf16.mxu0 0
          %4292 = vmatpush1.bf16.xpose.msra.mxu0 %v4257
          %4293 = vmatprep.subr.bf16.mxu0 0
          %4294 = vmatpush1.bf16.xpose.msra.mxu0 %v4258
          %4295 = vmatprep.subr.bf16.mxu0 0
          %4296 = vmatpush1.bf16.xpose.msra.mxu0 %v4259
          %4297 = vmatprep.subr.bf16.mxu0 0
          %4298 = vmatpush1.bf16.xpose.msra.mxu0 %v4260
          %4299 = vmatprep.subr.bf16.mxu0 0
          %4300 = vmatpush1.bf16.xpose.msra.mxu0 %v4261
          %4301 = vmatprep.subr.bf16.mxu0 0
          %4302 = vmatpush1.bf16.xpose.msra.mxu0 %v4262
          %4303 = vmatprep.subr.bf16.mxu0 0
          %4304 = vmatpush1.bf16.xpose.msra.mxu0 %v4263
          %4305 = vmatprep.subr.bf16.mxu0 0
          %4306 = vmatpush1.bf16.xpose.msra.mxu0 %v4264
          %4307 = vmatprep.subr.bf16.mxu0 0
          %4308 = vmatpush1.bf16.xpose.msra.mxu0 %v4265
          %4309 = vmatprep.subr.bf16.mxu0 0
          %4310 = vmatpush1.bf16.xpose.msra.mxu0 %v4266
          %4311 = vmatprep.subr.bf16.mxu0 0
          %4312 = vmatpush1.bf16.xpose.msra.mxu0 %v4267
          %4313 = vmatprep.subr.bf16.mxu0 0
          %4314 = vmatpush1.bf16.xpose.msra.mxu0 %v4268
          %4315 = vmatprep.subr.bf16.mxu0 0
          %4316 = vmatpush1.bf16.xpose.msra.mxu0 %v4269
          %4317 = vmatprep.subr.bf16.mxu0 0
          %4318 = vmatpush1.bf16.xpose.msra.mxu0 %v4270
          %4319 = vmatprep.mubr.bf16.mxu0 0
          %4320 = vmatmul.mubr.bf16.gmra.mrb[0].mxu0 %v4254
          %v4321 = vpop.f32.mrb[0].mxu0
          %v4322 = vadd.f32 0.0, %v4321
          %v4323 = vpop.f32.mrb[0].mxu0
          %v4324 = vadd.f32 0.0, %v4323
          %v4325 = vpop.f32.mrb[0].mxu0
          %v4326 = vpop.f32.mrb[0].mxu0
          %4327 = vdwg.mxu0
          %4328 = vmatprep.subr.bf16.mxu0 0
          %4329 = vmatpush1.bf16.xpose.msra.mxu0 %v4271
          %4330 = vmatprep.subr.bf16.mxu0 0
          %4331 = vmatpush1.bf16.xpose.msra.mxu0 %v4272
          %4332 = vmatprep.subr.bf16.mxu0 0
          %4333 = vmatpush1.bf16.xpose.msra.mxu0 %v4273
          %4334 = vmatprep.subr.bf16.mxu0 0
          %4335 = vmatpush1.bf16.xpose.msra.mxu0 %v4274
          %4336 = vmatprep.subr.bf16.mxu0 0
          %4337 = vmatpush1.bf16.xpose.msra.mxu0 %v4275
          %4338 = vmatprep.subr.bf16.mxu0 0
          %4339 = vmatpush1.bf16.xpose.msra.mxu0 %v4276
          %4340 = vmatprep.subr.bf16.mxu0 0
          %4341 = vmatpush1.bf16.xpose.msra.mxu0 %v4277
          %4342 = vmatprep.subr.bf16.mxu0 0
          %4343 = vmatpush1.bf16.xpose.msra.mxu0 %v4278
          %4344 = vmatprep.subr.bf16.mxu0 0
          %4345 = vmatpush1.bf16.xpose.msra.mxu0 %v4279
          %4346 = vmatprep.subr.bf16.mxu0 0
          %4347 = vmatpush1.bf16.xpose.msra.mxu0 %v4280
          %4348 = vmatprep.subr.bf16.mxu0 0
          %4349 = vmatpush1.bf16.xpose.msra.mxu0 %v4281
          %4350 = vmatprep.subr.bf16.mxu0 0
          %4351 = vmatpush1.bf16.xpose.msra.mxu0 %v4282
          %4352 = vmatprep.subr.bf16.mxu0 0
          %4353 = vmatpush1.bf16.xpose.msra.mxu0 %v4283
          %4354 = vmatprep.subr.bf16.mxu0 0
          %4355 = vmatpush1.bf16.xpose.msra.mxu0 %v4284
          %4356 = vmatprep.subr.bf16.mxu0 0
          %4357 = vmatpush1.bf16.xpose.msra.mxu0 %v4285
          %4358 = vmatprep.subr.bf16.mxu0 0
          %4359 = vmatpush1.bf16.xpose.msra.mxu0 %v4286
          %4360 = vmatprep.mubr.bf16.mxu0 0
          %4361 = vmatmul.mubr.bf16.gmra.mrb[0].mxu0 %v4254
          %v4362 = vpop.f32.mrb[0].mxu0
          %v4363 = vadd.f32 0.0, %v4362
          %v4364 = vpop.f32.mrb[0].mxu0
          %v4365 = vadd.f32 0.0, %v4364
          %v4366 = vpop.f32.mrb[0].mxu0
          %v4367 = vpop.f32.mrb[0].mxu0
          %4368 = vdwg.mxu0
          %v4369 = vld [vmem:[#allocation9] sm:$0x1]
          %4371 = vset.pattern.permute.xlu0 0
          %4372 = vperm.xlu0 %4371, %v4369
          %v4373 = vpop.permute.xlu0 %4372
          %v4375 = vlaneseq
          %v4376 = vshrl.u32 %v4375, 7
          %v4377 = vsub.s32 0, %v4376
          %v4378 = vrot.slane %v4373, %v4377
          %v4379 = vadd.f32 %v4322, %v4378
          %v4380 = vadd.f32 %v4324, %v4378
          %v4381 = vadd.f32 %v4363, %v4378
          %v4382 = vadd.f32 %v4365, %v4378
          %v4383 = vxor.u32 %v4379, 2147483648
          %v4384 = vxor.u32 %v4380, 2147483648
          %v4385 = vxor.u32 %v4381, 2147483648
          %v4386 = vxor.u32 %v4382, 2147483648
          %v4387 = vmul.f32 %v4383, 1.442695
          %v4388 = vpow.pop %v4387
          %v4389 = vmul.f32 %v4384, 1.442695
          %v4390 = vpow.pop %v4389
          %v4391 = vmul.f32 %v4385, 1.442695
          %v4392 = vpow.pop %v4391
          %v4393 = vmul.f32 %v4386, 1.442695
          %v4394 = vpow.pop %v4393
          %v4395 = vadd.f32 %v4388, 1.0
          %v4396 = vadd.f32 %v4390, 1.0
          %v4397 = vadd.f32 %v4392, 1.0
          %v4398 = vadd.f32 %v4394, 1.0
          %v4399 = vrcp.pop %v4395
          %v4400 = vmul.f32 1.0, %v4399
          %v4401 = vrcp.pop %v4396
          %v4402 = vmul.f32 1.0, %v4401
          %v4403 = vrcp.pop %v4397
          %v4404 = vmul.f32 1.0, %v4403
          %v4405 = vrcp.pop %v4398
          %v4406 = vmul.f32 1.0, %v4405
          %v4411 = vcombine.low %v4400, %v4402
          %v4412 = vcombine.low %v4404, %v4406
          %v4414 = vunpack.c.l.s4 1966171168
          %v4415 = vunpack.c.0.s8 %v4414
          %v4416 = vlaneseq
          %v4417 = vshrl.u32 %v4416, 7
          %v4418 = vsub.s32 %v4415, %v4417
          %v4419 = vrot.slane %v4411, %v4418
          %v4421 = vunpack.c.l.s4 1966171168
          %v4422 = vunpack.c.0.s8 %v4421
          %v4423 = vlaneseq
          %v4424 = vshrl.u32 %v4423, 7
          %v4425 = vsub.s32 %v4422, %v4424
          %v4426 = vrot.slane %v4412, %v4425
          %v4427 = vcombine.low %v4419, %v4426
          %v4429 = vunpack.c.l.s4 1966171168
          %v4430 = vunpack.c.0.s8 %v4429
          %v4431 = vlaneseq
          %v4432 = vshrl.u32 %v4431, 7
          %v4433 = vsub.s32 %v4430, %v4432
          %v4434 = vrot.slane %v4427, %v4433
          %v4436 = vlaneseq
          %vm4437 = vcmp.ge.s32.totalorder %v4436, 0
          %vm4438 = vcmp.lt.s32.totalorder %v4436, 512
          %vm4439 = vmand %vm4437, %vm4438
          %4440 = vst.msk [vmem:[%s819] sm:$0xf] %vm4439, %v4434
          %v4441 = vlaneseq
          %v4442 = vshrl.u32 %v4441, 7
          %v4443 = vsub.s32 0, %v4442
          %v4444 = vrot.slane %v4400, %v4443
          %v4445 = vlaneseq
          %v4446 = vshrl.u32 %v4445, 7
          %v4447 = vsub.s32 0, %v4446
          %v4448 = vrot.slane %v4402, %v4447
          %v4449 = vlaneseq
          %v4450 = vshrl.u32 %v4449, 7
          %v4451 = vsub.s32 0, %v4450
          %v4452 = vrot.slane %v4404, %v4451
          %v4453 = vlaneseq
          %v4454 = vshrl.u32 %v4453, 7
          %v4455 = vsub.s32 0, %v4454
          %v4456 = vrot.slane %v4406, %v4455
          %v4457 = vmul.f32 %v1216, %v4444
          %v4458 = vmul.f32 %v1217, %v4448
          %v4459 = vmul.f32 %v1218, %v4452
          %v4460 = vmul.f32 %v1219, %v4456
          %v4461 = vmul.f32 %v1220, %v4444
          %v4462 = vmul.f32 %v1221, %v4448
          %v4463 = vmul.f32 %v1222, %v4452
          %v4464 = vmul.f32 %v1223, %v4456
          %v4465 = vmul.f32 %v1224, %v4444
          %v4466 = vmul.f32 %v1225, %v4448
          %v4467 = vmul.f32 %v1226, %v4452
          %v4468 = vmul.f32 %v1227, %v4456
          %v4469 = vmul.f32 %v1228, %v4444
          %v4470 = vmul.f32 %v1229, %v4448
          %v4471 = vmul.f32 %v1230, %v4452
          %v4472 = vmul.f32 %v1231, %v4456
          %v4473 = vmul.f32 %v1232, %v4444
          %v4474 = vmul.f32 %v1233, %v4448
          %v4475 = vmul.f32 %v1234, %v4452
          %v4476 = vmul.f32 %v1235, %v4456
          %v4477 = vmul.f32 %v1236, %v4444
          %v4478 = vmul.f32 %v1237, %v4448
          %v4479 = vmul.f32 %v1238, %v4452
          %v4480 = vmul.f32 %v1239, %v4456
          %v4481 = vmul.f32 %v1240, %v4444
          %v4482 = vmul.f32 %v1241, %v4448
          %v4483 = vmul.f32 %v1242, %v4452
          %v4484 = vmul.f32 %v1243, %v4456
          %v4485 = vmul.f32 %v1244, %v4444
          %v4486 = vmul.f32 %v1245, %v4448
          %v4487 = vmul.f32 %v1246, %v4452
          %v4488 = vmul.f32 %v1247, %v4456
          %v4489 = vmul.f32 %v1248, %v4444
          %v4490 = vmul.f32 %v1249, %v4448
          %v4491 = vmul.f32 %v1250, %v4452
          %v4492 = vmul.f32 %v1251, %v4456
          %v4493 = vmul.f32 %v1252, %v4444
          %v4494 = vmul.f32 %v1253, %v4448
          %v4495 = vmul.f32 %v1254, %v4452
          %v4496 = vmul.f32 %v1255, %v4456
          %v4497 = vmul.f32 %v1256, %v4444
          %v4498 = vmul.f32 %v1257, %v4448
          %v4499 = vmul.f32 %v1258, %v4452
          %v4500 = vmul.f32 %v1259, %v4456
          %v4501 = vmul.f32 %v1260, %v4444
          %v4502 = vmul.f32 %v1261, %v4448
          %v4503 = vmul.f32 %v1262, %v4452
          %v4504 = vmul.f32 %v1263, %v4456
          %v4505 = vmul.f32 %v1264, %v4444
          %v4506 = vmul.f32 %v1265, %v4448
          %v4507 = vmul.f32 %v1266, %v4452
          %v4508 = vmul.f32 %v1267, %v4456
          %v4509 = vmul.f32 %v1268, %v4444
          %v4510 = vmul.f32 %v1269, %v4448
          %v4511 = vmul.f32 %v1270, %v4452
          %v4512 = vmul.f32 %v1271, %v4456
          %v4513 = vmul.f32 %v1272, %v4444
          %v4514 = vmul.f32 %v1273, %v4448
          %v4515 = vmul.f32 %v1274, %v4452
          %v4516 = vmul.f32 %v1275, %v4456
          %v4517 = vmul.f32 %v1276, %v4444
          %v4518 = vmul.f32 %v1277, %v4448
          %v4519 = vmul.f32 %v1278, %v4452
          %v4520 = vmul.f32 %v1279, %v4456
          %v4521 = vpack.c.bf16 %v4461, %v4457
          %v4522 = vpack.c.bf16 %v4462, %v4458
          %v4523 = vpack.c.bf16 %v4463, %v4459
          %v4524 = vpack.c.bf16 %v4464, %v4460
          %v4525 = vpack.c.bf16 %v4469, %v4465
          %v4526 = vpack.c.bf16 %v4470, %v4466
          %v4527 = vpack.c.bf16 %v4471, %v4467
          %v4528 = vpack.c.bf16 %v4472, %v4468
          %v4529 = vpack.c.bf16 %v4477, %v4473
          %v4530 = vpack.c.bf16 %v4478, %v4474
          %v4531 = vpack.c.bf16 %v4479, %v4475
          %v4532 = vpack.c.bf16 %v4480, %v4476
          %v4533 = vpack.c.bf16 %v4485, %v4481
          %v4534 = vpack.c.bf16 %v4486, %v4482
          %v4535 = vpack.c.bf16 %v4487, %v4483
          %v4536 = vpack.c.bf16 %v4488, %v4484
          %v4537 = vpack.c.bf16 %v4493, %v4489
          %v4538 = vpack.c.bf16 %v4494, %v4490
          %v4539 = vpack.c.bf16 %v4495, %v4491
          %v4540 = vpack.c.bf16 %v4496, %v4492
          %v4541 = vpack.c.bf16 %v4501, %v4497
          %v4542 = vpack.c.bf16 %v4502, %v4498
          %v4543 = vpack.c.bf16 %v4503, %v4499
          %v4544 = vpack.c.bf16 %v4504, %v4500
          %v4545 = vpack.c.bf16 %v4509, %v4505
          %v4546 = vpack.c.bf16 %v4510, %v4506
          %v4547 = vpack.c.bf16 %v4511, %v4507
          %v4548 = vpack.c.bf16 %v4512, %v4508
          %v4549 = vpack.c.bf16 %v4517, %v4513
          %v4550 = vpack.c.bf16 %v4518, %v4514
          %v4551 = vpack.c.bf16 %v4519, %v4515
          %v4552 = vpack.c.bf16 %v4520, %v4516
          %v4553 = vld [vmem:[#allocation2] sm:$0xff]
          %v4554 = vld [vmem:[#allocation2 + $0x8] sm:$0xff]
          %v4555 = vld [vmem:[#allocation2 + $0x10] sm:$0xff]
          %v4556 = vld [vmem:[#allocation2 + $0x18] sm:$0xff]
          %v4557 = vld [vmem:[#allocation2 + $0x20] sm:$0xff]
          %v4558 = vld [vmem:[#allocation2 + $0x28] sm:$0xff]
          %v4559 = vld [vmem:[#allocation2 + $0x30] sm:$0xff]
          %v4560 = vld [vmem:[#allocation2 + $0x38] sm:$0xff]
          %v4561 = vld [vmem:[#allocation2 + $0x40] sm:$0xff]
          %v4562 = vld [vmem:[#allocation2 + $0x48] sm:$0xff]
          %v4563 = vld [vmem:[#allocation2 + $0x50] sm:$0xff]
          %v4564 = vld [vmem:[#allocation2 + $0x58] sm:$0xff]
          %v4565 = vld [vmem:[#allocation2 + $0x60] sm:$0xff]
          %v4566 = vld [vmem:[#allocation2 + $0x68] sm:$0xff]
          %v4567 = vld [vmem:[#allocation2 + $0x70] sm:$0xff]
          %v4568 = vld [vmem:[#allocation2 + $0x78] sm:$0xff]
          %v4569 = vpack.c.bf16 %v909, %v908
          %v4570 = vpack.c.bf16 %v911, %v910
          %v4571 = vpack.c.bf16 %v913, %v912
          %v4572 = vpack.c.bf16 %v915, %v914
          %v4573 = vpack.c.bf16 %v917, %v916
          %v4574 = vpack.c.bf16 %v919, %v918
          %v4575 = vpack.c.bf16 %v921, %v920
          %v4576 = vpack.c.bf16 %v923, %v922
          %v4577 = vpack.c.bf16 %v925, %v924
          %v4578 = vpack.c.bf16 %v927, %v926
          %v4579 = vpack.c.bf16 %v929, %v928
          %v4580 = vpack.c.bf16 %v931, %v930
          %v4581 = vpack.c.bf16 %v933, %v932
          %v4582 = vpack.c.bf16 %v935, %v934
          %v4583 = vpack.c.bf16 %v937, %v936
          %v4584 = vpack.c.bf16 %v939, %v938
          %v4585 = vpack.c.bf16 %v941, %v940
          %v4586 = vpack.c.bf16 %v943, %v942
          %v4587 = vpack.c.bf16 %v945, %v944
          %v4588 = vpack.c.bf16 %v947, %v946
          %v4589 = vpack.c.bf16 %v949, %v948
          %v4590 = vpack.c.bf16 %v951, %v950
          %v4591 = vpack.c.bf16 %v953, %v952
          %v4592 = vpack.c.bf16 %v955, %v954
          %v4593 = vpack.c.bf16 %v957, %v956
          %v4594 = vpack.c.bf16 %v959, %v958
          %v4595 = vpack.c.bf16 %v961, %v960
          %v4596 = vpack.c.bf16 %v963, %v962
          %v4597 = vpack.c.bf16 %v965, %v964
          %v4598 = vpack.c.bf16 %v967, %v966
          %v4599 = vpack.c.bf16 %v969, %v968
          %v4600 = vpack.c.bf16 %v971, %v970
          %4601 = vmatprep.subr.bf16.mxu0 0
          %4602 = vmatpush1.bf16.msra.mxu0 %v4569
          %4603 = vmatprep.subr.bf16.mxu0 0
          %4604 = vmatpush1.bf16.msra.mxu0 %v4570
          %4605 = vmatprep.subr.bf16.mxu0 0
          %4606 = vmatpush1.bf16.msra.mxu0 %v4571
          %4607 = vmatprep.subr.bf16.mxu0 0
          %4608 = vmatpush1.bf16.msra.mxu0 %v4572
          %4609 = vmatprep.subr.bf16.mxu0 0
          %4610 = vmatpush1.bf16.msra.mxu0 %v4573
          %4611 = vmatprep.subr.bf16.mxu0 0
          %4612 = vmatpush1.bf16.msra.mxu0 %v4574
          %4613 = vmatprep.subr.bf16.mxu0 0
          %4614 = vmatpush1.bf16.msra.mxu0 %v4575
          %4615 = vmatprep.subr.bf16.mxu0 0
          %4616 = vmatpush1.bf16.msra.mxu0 %v4576
          %4617 = vmatprep.subr.bf16.mxu0 0
          %4618 = vmatpush1.bf16.msra.mxu0 %v4577
          %4619 = vmatprep.subr.bf16.mxu0 0
          %4620 = vmatpush1.bf16.msra.mxu0 %v4578
          %4621 = vmatprep.subr.bf16.mxu0 0
          %4622 = vmatpush1.bf16.msra.mxu0 %v4579
          %4623 = vmatprep.subr.bf16.mxu0 0
          %4624 = vmatpush1.bf16.msra.mxu0 %v4580
          %4625 = vmatprep.subr.bf16.mxu0 0
          %4626 = vmatpush1.bf16.msra.mxu0 %v4581
          %4627 = vmatprep.subr.bf16.mxu0 0
          %4628 = vmatpush1.bf16.msra.mxu0 %v4582
          %4629 = vmatprep.subr.bf16.mxu0 0
          %4630 = vmatpush1.bf16.msra.mxu0 %v4583
          %4631 = vmatprep.subr.bf16.mxu0 0
          %4632 = vmatpush1.bf16.msra.mxu0 %v4584
          %4633 = vmatprep.mubr.bf16.mxu0 %v4522
          %4634 = vmatmul.mubr.bf16.gmra.mrb[0].mxu0 %v4521
          %v4635 = vpop.f32.mrb[0].mxu0
          %v4636 = vadd.f32 0.0, %v4635
          %v4637 = vpop.f32.mrb[0].mxu0
          %v4638 = vpop.f32.mrb[0].mxu0
          %v4639 = vadd.f32 0.0, %v4638
          %v4640 = vpop.f32.mrb[0].mxu0
          %4641 = vmatprep.mubr.bf16.mxu0 %v4526
          %4642 = vmatmul.mubr.bf16.gmra.mrb[0].mxu0 %v4525
          %v4643 = vpop.f32.mrb[0].mxu0
          %v4644 = vadd.f32 0.0, %v4643
          %v4645 = vpop.f32.mrb[0].mxu0
          %v4646 = vpop.f32.mrb[0].mxu0
          %v4647 = vadd.f32 0.0, %v4646
          %v4648 = vpop.f32.mrb[0].mxu0
          %4649 = vmatprep.mubr.bf16.mxu0 %v4530
          %4650 = vmatmul.mubr.bf16.gmra.mrb[0].mxu0 %v4529
          %v4651 = vpop.f32.mrb[0].mxu0
          %v4652 = vadd.f32 0.0, %v4651
          %v4653 = vpop.f32.mrb[0].mxu0
          %v4654 = vpop.f32.mrb[0].mxu0
          %v4655 = vadd.f32 0.0, %v4654
          %v4656 = vpop.f32.mrb[0].mxu0
          %4657 = vmatprep.mubr.bf16.mxu0 %v4534
          %4658 = vmatmul.mubr.bf16.gmra.mrb[0].mxu0 %v4533
          %v4659 = vpop.f32.mrb[0].mxu0
          %v4660 = vadd.f32 0.0, %v4659
          %v4661 = vpop.f32.mrb[0].mxu0
          %v4662 = vpop.f32.mrb[0].mxu0
          %v4663 = vadd.f32 0.0, %v4662
          %v4664 = vpop.f32.mrb[0].mxu0
          %4665 = vmatprep.mubr.bf16.mxu0 %v4538
          %4666 = vmatmul.mubr.bf16.gmra.mrb[0].mxu0 %v4537
          %v4667 = vpop.f32.mrb[0].mxu0
          %v4668 = vadd.f32 0.0, %v4667
          %v4669 = vpop.f32.mrb[0].mxu0
          %v4670 = vpop.f32.mrb[0].mxu0
          %v4671 = vadd.f32 0.0, %v4670
          %v4672 = vpop.f32.mrb[0].mxu0
          %4673 = vmatprep.mubr.bf16.mxu0 %v4542
          %4674 = vmatmul.mubr.bf16.gmra.mrb[0].mxu0 %v4541
          %v4675 = vpop.f32.mrb[0].mxu0
          %v4676 = vadd.f32 0.0, %v4675
          %v4677 = vpop.f32.mrb[0].mxu0
          %v4678 = vpop.f32.mrb[0].mxu0
          %v4679 = vadd.f32 0.0, %v4678
          %v4680 = vpop.f32.mrb[0].mxu0
          %4681 = vmatprep.mubr.bf16.mxu0 %v4546
          %4682 = vmatmul.mubr.bf16.gmra.mrb[0].mxu0 %v4545
          %v4683 = vpop.f32.mrb[0].mxu0
          %v4684 = vadd.f32 0.0, %v4683
          %v4685 = vpop.f32.mrb[0].mxu0
          %v4686 = vpop.f32.mrb[0].mxu0
          %v4687 = vadd.f32 0.0, %v4686
          %v4688 = vpop.f32.mrb[0].mxu0
          %4689 = vmatprep.mubr.bf16.mxu0 %v4550
          %4690 = vmatmul.mubr.bf16.gmra.mrb[0].mxu0 %v4549
          %v4691 = vpop.f32.mrb[0].mxu0
          %v4692 = vadd.f32 0.0, %v4691
          %v4693 = vpop.f32.mrb[0].mxu0
          %v4694 = vpop.f32.mrb[0].mxu0
          %v4695 = vadd.f32 0.0, %v4694
          %v4696 = vpop.f32.mrb[0].mxu0
          %4697 = vdwg.mxu0
          %4698 = vmatprep.subr.bf16.mxu0 0
          %4699 = vmatpush1.bf16.msra.mxu0 %v4585
          %4700 = vmatprep.subr.bf16.mxu0 0
          %4701 = vmatpush1.bf16.msra.mxu0 %v4586
          %4702 = vmatprep.subr.bf16.mxu0 0
          %4703 = vmatpush1.bf16.msra.mxu0 %v4587
          %4704 = vmatprep.subr.bf16.mxu0 0
          %4705 = vmatpush1.bf16.msra.mxu0 %v4588
          %4706 = vmatprep.subr.bf16.mxu0 0
          %4707 = vmatpush1.bf16.msra.mxu0 %v4589
          %4708 = vmatprep.subr.bf16.mxu0 0
          %4709 = vmatpush1.bf16.msra.mxu0 %v4590
          %4710 = vmatprep.subr.bf16.mxu0 0
          %4711 = vmatpush1.bf16.msra.mxu0 %v4591
          %4712 = vmatprep.subr.bf16.mxu0 0
          %4713 = vmatpush1.bf16.msra.mxu0 %v4592
          %4714 = vmatprep.subr.bf16.mxu0 0
          %4715 = vmatpush1.bf16.msra.mxu0 %v4593
          %4716 = vmatprep.subr.bf16.mxu0 0
          %4717 = vmatpush1.bf16.msra.mxu0 %v4594
          %4718 = vmatprep.subr.bf16.mxu0 0
          %4719 = vmatpush1.bf16.msra.mxu0 %v4595
          %4720 = vmatprep.subr.bf16.mxu0 0
          %4721 = vmatpush1.bf16.msra.mxu0 %v4596
          %4722 = vmatprep.subr.bf16.mxu0 0
          %4723 = vmatpush1.bf16.msra.mxu0 %v4597
          %4724 = vmatprep.subr.bf16.mxu0 0
          %4725 = vmatpush1.bf16.msra.mxu0 %v4598
          %4726 = vmatprep.subr.bf16.mxu0 0
          %4727 = vmatpush1.bf16.msra.mxu0 %v4599
          %4728 = vmatprep.subr.bf16.mxu0 0
          %4729 = vmatpush1.bf16.msra.mxu0 %v4600
          %4730 = vmatprep.mubr.bf16.mxu0 %v4524
          %4731 = vmatmul.mubr.bf16.gmra.mrb[0].mxu0 %v4523
          %v4732 = vpop.f32.mrb[0].mxu0
          %v4733 = vadd.f32 %v4636, %v4732
          %v4734 = vpop.f32.mrb[0].mxu0
          %v4735 = vpop.f32.mrb[0].mxu0
          %v4736 = vadd.f32 %v4639, %v4735
          %v4737 = vpop.f32.mrb[0].mxu0
          %4738 = vmatprep.mubr.bf16.mxu0 %v4528
          %4739 = vmatmul.mubr.bf16.gmra.mrb[0].mxu0 %v4527
          %v4740 = vpop.f32.mrb[0].mxu0
          %v4741 = vadd.f32 %v4644, %v4740
          %v4742 = vpop.f32.mrb[0].mxu0
          %v4743 = vpop.f32.mrb[0].mxu0
          %v4744 = vadd.f32 %v4647, %v4743
          %v4745 = vpop.f32.mrb[0].mxu0
          %4746 = vmatprep.mubr.bf16.mxu0 %v4532
          %4747 = vmatmul.mubr.bf16.gmra.mrb[0].mxu0 %v4531
          %v4748 = vpop.f32.mrb[0].mxu0
          %v4749 = vadd.f32 %v4652, %v4748
          %v4750 = vpop.f32.mrb[0].mxu0
          %v4751 = vpop.f32.mrb[0].mxu0
          %v4752 = vadd.f32 %v4655, %v4751
          %v4753 = vpop.f32.mrb[0].mxu0
          %4754 = vmatprep.mubr.bf16.mxu0 %v4536
          %4755 = vmatmul.mubr.bf16.gmra.mrb[0].mxu0 %v4535
          %v4756 = vpop.f32.mrb[0].mxu0
          %v4757 = vadd.f32 %v4660, %v4756
          %v4758 = vpop.f32.mrb[0].mxu0
          %v4759 = vpop.f32.mrb[0].mxu0
          %v4760 = vadd.f32 %v4663, %v4759
          %v4761 = vpop.f32.mrb[0].mxu0
          %4762 = vmatprep.mubr.bf16.mxu0 %v4540
          %4763 = vmatmul.mubr.bf16.gmra.mrb[0].mxu0 %v4539
          %v4764 = vpop.f32.mrb[0].mxu0
          %v4765 = vadd.f32 %v4668, %v4764
          %v4766 = vpop.f32.mrb[0].mxu0
          %v4767 = vpop.f32.mrb[0].mxu0
          %v4768 = vadd.f32 %v4671, %v4767
          %v4769 = vpop.f32.mrb[0].mxu0
          %4770 = vmatprep.mubr.bf16.mxu0 %v4544
          %4771 = vmatmul.mubr.bf16.gmra.mrb[0].mxu0 %v4543
          %v4772 = vpop.f32.mrb[0].mxu0
          %v4773 = vadd.f32 %v4676, %v4772
          %v4774 = vpop.f32.mrb[0].mxu0
          %v4775 = vpop.f32.mrb[0].mxu0
          %v4776 = vadd.f32 %v4679, %v4775
          %v4777 = vpop.f32.mrb[0].mxu0
          %4778 = vmatprep.mubr.bf16.mxu0 %v4548
          %4779 = vmatmul.mubr.bf16.gmra.mrb[0].mxu0 %v4547
          %v4780 = vpop.f32.mrb[0].mxu0
          %v4781 = vadd.f32 %v4684, %v4780
          %v4782 = vpop.f32.mrb[0].mxu0
          %v4783 = vpop.f32.mrb[0].mxu0
          %v4784 = vadd.f32 %v4687, %v4783
          %v4785 = vpop.f32.mrb[0].mxu0
          %4786 = vmatprep.mubr.bf16.mxu0 %v4552
          %4787 = vmatmul.mubr.bf16.gmra.mrb[0].mxu0 %v4551
          %v4788 = vpop.f32.mrb[0].mxu0
          %v4789 = vadd.f32 %v4692, %v4788
          %v4790 = vpop.f32.mrb[0].mxu0
          %v4791 = vpop.f32.mrb[0].mxu0
          %v4792 = vadd.f32 %v4695, %v4791
          %v4793 = vpop.f32.mrb[0].mxu0
          %4794 = vdwg.mxu0
          %v4795 = vadd.f32 %v4553, %v4733
          %v4796 = vadd.f32 %v4554, %v4736
          %v4797 = vadd.f32 %v4555, %v4741
          %v4798 = vadd.f32 %v4556, %v4744
          %v4799 = vadd.f32 %v4557, %v4749
          %v4800 = vadd.f32 %v4558, %v4752
          %v4801 = vadd.f32 %v4559, %v4757
          %v4802 = vadd.f32 %v4560, %v4760
          %v4803 = vadd.f32 %v4561, %v4765
          %v4804 = vadd.f32 %v4562, %v4768
          %v4805 = vadd.f32 %v4563, %v4773
          %v4806 = vadd.f32 %v4564, %v4776
          %v4807 = vadd.f32 %v4565, %v4781
          %v4808 = vadd.f32 %v4566, %v4784
          %v4809 = vadd.f32 %v4567, %v4789
          %v4810 = vadd.f32 %v4568, %v4792
          %4811 = vst [vmem:[#allocation2] sm:$0xff] %v4795
          %4812 = vst [vmem:[#allocation2 + $0x8] sm:$0xff] %v4796
          %4813 = vst [vmem:[#allocation2 + $0x10] sm:$0xff] %v4797
          %4814 = vst [vmem:[#allocation2 + $0x18] sm:$0xff] %v4798
          %4815 = vst [vmem:[#allocation2 + $0x20] sm:$0xff] %v4799
          %4816 = vst [vmem:[#allocation2 + $0x28] sm:$0xff] %v4800
          %4817 = vst [vmem:[#allocation2 + $0x30] sm:$0xff] %v4801
          %4818 = vst [vmem:[#allocation2 + $0x38] sm:$0xff] %v4802
          %4819 = vst [vmem:[#allocation2 + $0x40] sm:$0xff] %v4803
          %4820 = vst [vmem:[#allocation2 + $0x48] sm:$0xff] %v4804
          %4821 = vst [vmem:[#allocation2 + $0x50] sm:$0xff] %v4805
          %4822 = vst [vmem:[#allocation2 + $0x58] sm:$0xff] %v4806
          %4823 = vst [vmem:[#allocation2 + $0x60] sm:$0xff] %v4807
          %4824 = vst [vmem:[#allocation2 + $0x68] sm:$0xff] %v4808
          %4825 = vst [vmem:[#allocation2 + $0x70] sm:$0xff] %v4809
          %4826 = vst [vmem:[#allocation2 + $0x78] sm:$0xff] %v4810
        $region112: #{tpu_custom_call.1} parent=83 // pred_fallthru
          _
        %s4827 = sld [smem:[#allocation7 + %s881]]
        %p4828 = scmp.eq.s32.totalorder %s4827, 1
        // Predicated region
        $region113: #{tpu_custom_call.1} parent=83 // pred_check
          %p4829 = pneg %p4828
        $region114: #{tpu_custom_call.1} parent=83 // pred_check_branch
          %4831 = sbr.rel (%p4829) target = $region116
        $region115: #{tpu_custom_call.1} parent=83 // pred_region
          %v4832 = vld [vmem:[#allocation2] sm:$0xff]
          %v4833 = vld [vmem:[#allocation2 + $0x8] sm:$0xff]
          %v4834 = vld [vmem:[#allocation2 + $0x10] sm:$0xff]
          %v4835 = vld [vmem:[#allocation2 + $0x18] sm:$0xff]
          %v4836 = vld [vmem:[#allocation2 + $0x20] sm:$0xff]
          %v4837 = vld [vmem:[#allocation2 + $0x28] sm:$0xff]
          %v4838 = vld [vmem:[#allocation2 + $0x30] sm:$0xff]
          %v4839 = vld [vmem:[#allocation2 + $0x38] sm:$0xff]
          %v4840 = vld [vmem:[#allocation2 + $0x40] sm:$0xff]
          %v4841 = vld [vmem:[#allocation2 + $0x48] sm:$0xff]
          %v4842 = vld [vmem:[#allocation2 + $0x50] sm:$0xff]
          %v4843 = vld [vmem:[#allocation2 + $0x58] sm:$0xff]
          %v4844 = vld [vmem:[#allocation2 + $0x60] sm:$0xff]
          %v4845 = vld [vmem:[#allocation2 + $0x68] sm:$0xff]
          %v4846 = vld [vmem:[#allocation2 + $0x70] sm:$0xff]
          %v4847 = vld [vmem:[#allocation2 + $0x78] sm:$0xff]
          %v4848 = vld [vmem:[%s839] sm:$0xff]
          %v4849 = vld [vmem:[%s839 + $0x8] sm:$0xff]
          %v4850 = vld [vmem:[%s839 + $0x10] sm:$0xff]
          %v4851 = vld [vmem:[%s839 + $0x18] sm:$0xff]
          %v4852 = vld [vmem:[%s839 + $0x20] sm:$0xff]
          %v4853 = vld [vmem:[%s839 + $0x28] sm:$0xff]
          %v4854 = vld [vmem:[%s839 + $0x30] sm:$0xff]
          %v4855 = vld [vmem:[%s839 + $0x38] sm:$0xff]
          %v4856 = vld [vmem:[%s839 + $0x40] sm:$0xff]
          %v4857 = vld [vmem:[%s839 + $0x48] sm:$0xff]
          %v4858 = vld [vmem:[%s839 + $0x50] sm:$0xff]
          %v4859 = vld [vmem:[%s839 + $0x58] sm:$0xff]
          %v4860 = vld [vmem:[%s839 + $0x60] sm:$0xff]
          %v4861 = vld [vmem:[%s839 + $0x68] sm:$0xff]
          %v4862 = vld [vmem:[%s839 + $0x70] sm:$0xff]
          %v4863 = vld [vmem:[%s839 + $0x78] sm:$0xff]
          %4865 = vset.pattern.permute.xlu0 0
          %4866 = vperm.xlu0 %4865, %v4848
          %v4867 = vpop.permute.xlu0 %4866
          %4870 = vset.pattern.permute.xlu0 0
          %4871 = vperm.xlu0 %4870, %v4849
          %v4872 = vpop.permute.xlu0 %4871
          %4875 = vset.pattern.permute.xlu0 0
          %4876 = vperm.xlu0 %4875, %v4850
          %v4877 = vpop.permute.xlu0 %4876
          %4880 = vset.pattern.permute.xlu0 0
          %4881 = vperm.xlu0 %4880, %v4851
          %v4882 = vpop.permute.xlu0 %4881
          %4885 = vset.pattern.permute.xlu0 0
          %4886 = vperm.xlu0 %4885, %v4852
          %v4887 = vpop.permute.xlu0 %4886
          %4890 = vset.pattern.permute.xlu0 0
          %4891 = vperm.xlu0 %4890, %v4853
          %v4892 = vpop.permute.xlu0 %4891
          %4895 = vset.pattern.permute.xlu0 0
          %4896 = vperm.xlu0 %4895, %v4854
          %v4897 = vpop.permute.xlu0 %4896
          %4900 = vset.pattern.permute.xlu0 0
          %4901 = vperm.xlu0 %4900, %v4855
          %v4902 = vpop.permute.xlu0 %4901
          %4905 = vset.pattern.permute.xlu0 0
          %4906 = vperm.xlu0 %4905, %v4856
          %v4907 = vpop.permute.xlu0 %4906
          %4910 = vset.pattern.permute.xlu0 0
          %4911 = vperm.xlu0 %4910, %v4857
          %v4912 = vpop.permute.xlu0 %4911
          %4915 = vset.pattern.permute.xlu0 0
          %4916 = vperm.xlu0 %4915, %v4858
          %v4917 = vpop.permute.xlu0 %4916
          %4920 = vset.pattern.permute.xlu0 0
          %4921 = vperm.xlu0 %4920, %v4859
          %v4922 = vpop.permute.xlu0 %4921
          %4925 = vset.pattern.permute.xlu0 0
          %4926 = vperm.xlu0 %4925, %v4860
          %v4927 = vpop.permute.xlu0 %4926
          %4930 = vset.pattern.permute.xlu0 0
          %4931 = vperm.xlu0 %4930, %v4861
          %v4932 = vpop.permute.xlu0 %4931
          %4935 = vset.pattern.permute.xlu0 0
          %4936 = vperm.xlu0 %4935, %v4862
          %v4937 = vpop.permute.xlu0 %4936
          %4940 = vset.pattern.permute.xlu0 0
          %4941 = vperm.xlu0 %4940, %v4863
          %v4942 = vpop.permute.xlu0 %4941
          %v4944 = vmul.f32 %v4832, %v4867
          %v4945 = vmul.f32 %v4833, %v4872
          %v4946 = vmul.f32 %v4834, %v4877
          %v4947 = vmul.f32 %v4835, %v4882
          %v4948 = vmul.f32 %v4836, %v4887
          %v4949 = vmul.f32 %v4837, %v4892
          %v4950 = vmul.f32 %v4838, %v4897
          %v4951 = vmul.f32 %v4839, %v4902
          %v4952 = vmul.f32 %v4840, %v4907
          %v4953 = vmul.f32 %v4841, %v4912
          %v4954 = vmul.f32 %v4842, %v4917
          %v4955 = vmul.f32 %v4843, %v4922
          %v4956 = vmul.f32 %v4844, %v4927
          %v4957 = vmul.f32 %v4845, %v4932
          %v4958 = vmul.f32 %v4846, %v4937
          %v4959 = vmul.f32 %v4847, %v4942
          %v4960 = vld [vmem:[%s827] sm:$0xff]
          %v4961 = vld [vmem:[%s827 + $0x8] sm:$0xff]
          %v4962 = vld [vmem:[%s827 + $0x10] sm:$0xff]
          %v4963 = vld [vmem:[%s827 + $0x18] sm:$0xff]
          %v4964 = vld [vmem:[%s827 + $0x20] sm:$0xff]
          %v4965 = vld [vmem:[%s827 + $0x28] sm:$0xff]
          %v4966 = vld [vmem:[%s827 + $0x30] sm:$0xff]
          %v4967 = vld [vmem:[%s827 + $0x38] sm:$0xff]
          %v4968 = vld [vmem:[%s827 + $0x40] sm:$0xff]
          %v4969 = vld [vmem:[%s827 + $0x48] sm:$0xff]
          %v4970 = vld [vmem:[%s827 + $0x50] sm:$0xff]
          %v4971 = vld [vmem:[%s827 + $0x58] sm:$0xff]
          %v4972 = vld [vmem:[%s827 + $0x60] sm:$0xff]
          %v4973 = vld [vmem:[%s827 + $0x68] sm:$0xff]
          %v4974 = vld [vmem:[%s827 + $0x70] sm:$0xff]
          %v4975 = vld [vmem:[%s827 + $0x78] sm:$0xff]
          %v4976 = vpack.c.bf16 %v4961, %v4960
          %v4977 = vpack.c.bf16 %v4963, %v4962
          %v4978 = vpack.c.bf16 %v4965, %v4964
          %v4979 = vpack.c.bf16 %v4967, %v4966
          %v4980 = vpack.c.bf16 %v4969, %v4968
          %v4981 = vpack.c.bf16 %v4971, %v4970
          %v4982 = vpack.c.bf16 %v4973, %v4972
          %v4983 = vpack.c.bf16 %v4975, %v4974
          %v4984 = vld [vmem:[#allocation16] sm:$0xf]
          %v4985 = vld [vmem:[#allocation16 + $0x4] sm:$0xf]
          %v4986 = vld [vmem:[#allocation16 + $0x8] sm:$0xf]
          %v4987 = vld [vmem:[#allocation16 + $0xc] sm:$0xf]
          %v4988 = vld [vmem:[#allocation16 + $0x10] sm:$0xf]
          %v4989 = vld [vmem:[#allocation16 + $0x14] sm:$0xf]
          %v4990 = vld [vmem:[#allocation16 + $0x18] sm:$0xf]
          %v4991 = vld [vmem:[#allocation16 + $0x1c] sm:$0xf]
          %v4992 = vld [vmem:[#allocation16 + $0x20] sm:$0xf]
          %v4993 = vld [vmem:[#allocation16 + $0x24] sm:$0xf]
          %v4994 = vld [vmem:[#allocation16 + $0x28] sm:$0xf]
          %v4995 = vld [vmem:[#allocation16 + $0x2c] sm:$0xf]
          %v4996 = vld [vmem:[#allocation16 + $0x30] sm:$0xf]
          %v4997 = vld [vmem:[#allocation16 + $0x34] sm:$0xf]
          %v4998 = vld [vmem:[#allocation16 + $0x38] sm:$0xf]
          %v4999 = vld [vmem:[#allocation16 + $0x3c] sm:$0xf]
          %v5000 = vpack.c.bf16 %v4945, %v4944
          %v5001 = vpack.c.bf16 %v4947, %v4946
          %v5002 = vpack.c.bf16 %v4949, %v4948
          %v5003 = vpack.c.bf16 %v4951, %v4950
          %v5004 = vpack.c.bf16 %v4953, %v4952
          %v5005 = vpack.c.bf16 %v4955, %v4954
          %v5006 = vpack.c.bf16 %v4957, %v4956
          %v5007 = vpack.c.bf16 %v4959, %v4958
          %v5008 = vld [vmem:[#allocation18] sm:$0xf]
          %v5009 = vld [vmem:[#allocation18 + $0x4] sm:$0xf]
          %v5010 = vld [vmem:[#allocation18 + $0x8] sm:$0xf]
          %v5011 = vld [vmem:[#allocation18 + $0xc] sm:$0xf]
          %v5012 = vld [vmem:[#allocation18 + $0x10] sm:$0xf]
          %v5013 = vld [vmem:[#allocation18 + $0x14] sm:$0xf]
          %v5014 = vld [vmem:[#allocation18 + $0x18] sm:$0xf]
          %v5015 = vld [vmem:[#allocation18 + $0x1c] sm:$0xf]
          %v5016 = vld [vmem:[#allocation18 + $0x20] sm:$0xf]
          %v5017 = vld [vmem:[#allocation18 + $0x24] sm:$0xf]
          %v5018 = vld [vmem:[#allocation18 + $0x28] sm:$0xf]
          %v5019 = vld [vmem:[#allocation18 + $0x2c] sm:$0xf]
          %v5020 = vld [vmem:[#allocation18 + $0x30] sm:$0xf]
          %v5021 = vld [vmem:[#allocation18 + $0x34] sm:$0xf]
          %v5022 = vld [vmem:[#allocation18 + $0x38] sm:$0xf]
          %v5023 = vld [vmem:[#allocation18 + $0x3c] sm:$0xf]
          %v5040 = vunpack.c.l.b16 %v5008
          %v5041 = vunpack.c.l.b16 %v5009
          %v5042 = vunpack.c.l.b16 %v5010
          %v5043 = vunpack.c.l.b16 %v5011
          %v5044 = vunpack.c.l.b16 %v5012
          %v5045 = vunpack.c.l.b16 %v5013
          %v5046 = vunpack.c.l.b16 %v5014
          %v5047 = vunpack.c.l.b16 %v5015
          %v5048 = vunpack.c.l.b16 %v5016
          %v5049 = vunpack.c.l.b16 %v5017
          %v5050 = vunpack.c.l.b16 %v5018
          %v5051 = vunpack.c.l.b16 %v5019
          %v5052 = vunpack.c.l.b16 %v5020
          %v5053 = vunpack.c.l.b16 %v5021
          %v5054 = vunpack.c.l.b16 %v5022
          %v5055 = vunpack.c.l.b16 %v5023
          %v5056 = vpack.c.b16 %v5041, %v5040
          %v5057 = vpack.c.b16 %v5043, %v5042
          %v5058 = vpack.c.b16 %v5045, %v5044
          %v5059 = vpack.c.b16 %v5047, %v5046
          %v5060 = vpack.c.b16 %v5049, %v5048
          %v5061 = vpack.c.b16 %v5051, %v5050
          %v5062 = vpack.c.b16 %v5053, %v5052
          %v5063 = vpack.c.b16 %v5055, %v5054
          %5072 = vmatprep.subr.bf16.mxu0 0
          %5073 = vmatpush1.bf16.msra.mxu0 %v5056
          %5074 = vmatprep.subr.bf16.mxu0 0
          %5075 = vmatpush1.bf16.msra.mxu0 %v5057
          %5076 = vmatprep.subr.bf16.mxu0 0
          %5077 = vmatpush1.bf16.msra.mxu0 %v5058
          %5078 = vmatprep.subr.bf16.mxu0 0
          %5079 = vmatpush1.bf16.msra.mxu0 %v5059
          %5080 = vmatprep.subr.bf16.mxu0 0
          %5081 = vmatpush1.bf16.msra.mxu0 %v5060
          %5082 = vmatprep.subr.bf16.mxu0 0
          %5083 = vmatpush1.bf16.msra.mxu0 %v5061
          %5084 = vmatprep.subr.bf16.mxu0 0
          %5085 = vmatpush1.bf16.msra.mxu0 %v5062
          %5086 = vmatprep.subr.bf16.mxu0 0
          %5087 = vmatpush1.bf16.msra.mxu0 %v5063
          %5088 = vmatprep.subr.bf16.mxu0 0
          %5089 = vmatpush1.bf16.msra.mxu0 0
          %5090 = vmatprep.subr.bf16.mxu0 0
          %5091 = vmatpush1.bf16.msra.mxu0 0
          %5092 = vmatprep.subr.bf16.mxu0 0
          %5093 = vmatpush1.bf16.msra.mxu0 0
          %5094 = vmatprep.subr.bf16.mxu0 0
          %5095 = vmatpush1.bf16.msra.mxu0 0
          %5096 = vmatprep.subr.bf16.mxu0 0
          %5097 = vmatpush1.bf16.msra.mxu0 0
          %5098 = vmatprep.subr.bf16.mxu0 0
          %5099 = vmatpush1.bf16.msra.mxu0 0
          %5100 = vmatprep.subr.bf16.mxu0 0
          %5101 = vmatpush1.bf16.msra.mxu0 0
          %5102 = vmatprep.subr.bf16.mxu0 0
          %5103 = vmatpush1.bf16.msra.mxu0 0
          %5104 = vmatprep.mubr.bf16.mxu0 0
          %5105 = vmatmul.mubr.bf16.gmra.mrb[0].mxu0 %v5000
          %v5106 = vpop.f32.mrb[0].mxu0
          %v5107 = vadd.f32 0.0, %v5106
          %v5108 = vpop.f32.mrb[0].mxu0
          %v5109 = vpop.f32.mrb[0].mxu0
          %v5110 = vadd.f32 0.0, %v5109
          %v5111 = vpop.f32.mrb[0].mxu0
          %5112 = vmatprep.mubr.bf16.mxu0 0
          %5113 = vmatmul.mubr.bf16.gmra.mrb[0].mxu0 %v5001
          %v5114 = vpop.f32.mrb[0].mxu0
          %v5115 = vadd.f32 0.0, %v5114
          %v5116 = vpop.f32.mrb[0].mxu0
          %v5117 = vpop.f32.mrb[0].mxu0
          %v5118 = vadd.f32 0.0, %v5117
          %v5119 = vpop.f32.mrb[0].mxu0
          %5120 = vmatprep.mubr.bf16.mxu0 0
          %5121 = vmatmul.mubr.bf16.gmra.mrb[0].mxu0 %v5002
          %v5122 = vpop.f32.mrb[0].mxu0
          %v5123 = vadd.f32 0.0, %v5122
          %v5124 = vpop.f32.mrb[0].mxu0
          %v5125 = vpop.f32.mrb[0].mxu0
          %v5126 = vadd.f32 0.0, %v5125
          %v5127 = vpop.f32.mrb[0].mxu0
          %5128 = vmatprep.mubr.bf16.mxu0 0
          %5129 = vmatmul.mubr.bf16.gmra.mrb[0].mxu0 %v5003
          %v5130 = vpop.f32.mrb[0].mxu0
          %v5131 = vadd.f32 0.0, %v5130
          %v5132 = vpop.f32.mrb[0].mxu0
          %v5133 = vpop.f32.mrb[0].mxu0
          %v5134 = vadd.f32 0.0, %v5133
          %v5135 = vpop.f32.mrb[0].mxu0
          %5136 = vmatprep.mubr.bf16.mxu0 0
          %5137 = vmatmul.mubr.bf16.gmra.mrb[0].mxu0 %v5004
          %v5138 = vpop.f32.mrb[0].mxu0
          %v5139 = vadd.f32 0.0, %v5138
          %v5140 = vpop.f32.mrb[0].mxu0
          %v5141 = vpop.f32.mrb[0].mxu0
          %v5142 = vadd.f32 0.0, %v5141
          %v5143 = vpop.f32.mrb[0].mxu0
          %5144 = vmatprep.mubr.bf16.mxu0 0
          %5145 = vmatmul.mubr.bf16.gmra.mrb[0].mxu0 %v5005
          %v5146 = vpop.f32.mrb[0].mxu0
          %v5147 = vadd.f32 0.0, %v5146
          %v5148 = vpop.f32.mrb[0].mxu0
          %v5149 = vpop.f32.mrb[0].mxu0
          %v5150 = vadd.f32 0.0, %v5149
          %v5151 = vpop.f32.mrb[0].mxu0
          %5152 = vmatprep.mubr.bf16.mxu0 0
          %5153 = vmatmul.mubr.bf16.gmra.mrb[0].mxu0 %v5006
          %v5154 = vpop.f32.mrb[0].mxu0
          %v5155 = vadd.f32 0.0, %v5154
          %v5156 = vpop.f32.mrb[0].mxu0
          %v5157 = vpop.f32.mrb[0].mxu0
          %v5158 = vadd.f32 0.0, %v5157
          %v5159 = vpop.f32.mrb[0].mxu0
          %5160 = vmatprep.mubr.bf16.mxu0 0
          %5161 = vmatmul.mubr.bf16.gmra.mrb[0].mxu0 %v5007
          %v5162 = vpop.f32.mrb[0].mxu0
          %v5163 = vadd.f32 0.0, %v5162
          %v5164 = vpop.f32.mrb[0].mxu0
          %v5165 = vpop.f32.mrb[0].mxu0
          %v5166 = vadd.f32 0.0, %v5165
          %v5167 = vpop.f32.mrb[0].mxu0
          %5168 = vdwg.mxu0
          %v5185 = vunpack.c.l.b16 %v4984
          %v5186 = vunpack.c.l.b16 %v4985
          %v5187 = vunpack.c.l.b16 %v4986
          %v5188 = vunpack.c.l.b16 %v4987
          %v5189 = vunpack.c.l.b16 %v4988
          %v5190 = vunpack.c.l.b16 %v4989
          %v5191 = vunpack.c.l.b16 %v4990
          %v5192 = vunpack.c.l.b16 %v4991
          %v5193 = vunpack.c.l.b16 %v4992
          %v5194 = vunpack.c.l.b16 %v4993
          %v5195 = vunpack.c.l.b16 %v4994
          %v5196 = vunpack.c.l.b16 %v4995
          %v5197 = vunpack.c.l.b16 %v4996
          %v5198 = vunpack.c.l.b16 %v4997
          %v5199 = vunpack.c.l.b16 %v4998
          %v5200 = vunpack.c.l.b16 %v4999
          %v5201 = vpack.c.b16 %v5186, %v5185
          %v5202 = vpack.c.b16 %v5188, %v5187
          %v5203 = vpack.c.b16 %v5190, %v5189
          %v5204 = vpack.c.b16 %v5192, %v5191
          %v5205 = vpack.c.b16 %v5194, %v5193
          %v5206 = vpack.c.b16 %v5196, %v5195
          %v5207 = vpack.c.b16 %v5198, %v5197
          %v5208 = vpack.c.b16 %v5200, %v5199
          %5217 = vmatprep.subr.bf16.mxu0 0
          %5218 = vmatpush1.bf16.msra.mxu0 %v5201
          %5219 = vmatprep.subr.bf16.mxu0 0
          %5220 = vmatpush1.bf16.msra.mxu0 %v5202
          %5221 = vmatprep.subr.bf16.mxu0 0
          %5222 = vmatpush1.bf16.msra.mxu0 %v5203
          %5223 = vmatprep.subr.bf16.mxu0 0
          %5224 = vmatpush1.bf16.msra.mxu0 %v5204
          %5225 = vmatprep.subr.bf16.mxu0 0
          %5226 = vmatpush1.bf16.msra.mxu0 %v5205
          %5227 = vmatprep.subr.bf16.mxu0 0
          %5228 = vmatpush1.bf16.msra.mxu0 %v5206
          %5229 = vmatprep.subr.bf16.mxu0 0
          %5230 = vmatpush1.bf16.msra.mxu0 %v5207
          %5231 = vmatprep.subr.bf16.mxu0 0
          %5232 = vmatpush1.bf16.msra.mxu0 %v5208
          %5233 = vmatprep.subr.bf16.mxu0 0
          %5234 = vmatpush1.bf16.msra.mxu0 0
          %5235 = vmatprep.subr.bf16.mxu0 0
          %5236 = vmatpush1.bf16.msra.mxu0 0
          %5237 = vmatprep.subr.bf16.mxu0 0
          %5238 = vmatpush1.bf16.msra.mxu0 0
          %5239 = vmatprep.subr.bf16.mxu0 0
          %5240 = vmatpush1.bf16.msra.mxu0 0
          %5241 = vmatprep.subr.bf16.mxu0 0
          %5242 = vmatpush1.bf16.msra.mxu0 0
          %5243 = vmatprep.subr.bf16.mxu0 0
          %5244 = vmatpush1.bf16.msra.mxu0 0
          %5245 = vmatprep.subr.bf16.mxu0 0
          %5246 = vmatpush1.bf16.msra.mxu0 0
          %5247 = vmatprep.subr.bf16.mxu0 0
          %5248 = vmatpush1.bf16.msra.mxu0 0
          %5249 = vmatprep.mubr.bf16.mxu0 0
          %5250 = vmatmul.mubr.bf16.gmra.mrb[0].mxu0 %v4976
          %v5251 = vpop.f32.mrb[0].mxu0
          %v5252 = vadd.f32 %v5107, %v5251
          %v5253 = vpop.f32.mrb[0].mxu0
          %v5254 = vpop.f32.mrb[0].mxu0
          %v5255 = vadd.f32 %v5110, %v5254
          %v5256 = vpop.f32.mrb[0].mxu0
          %5257 = vmatprep.mubr.bf16.mxu0 0
          %5258 = vmatmul.mubr.bf16.gmra.mrb[0].mxu0 %v4977
          %v5259 = vpop.f32.mrb[0].mxu0
          %v5260 = vadd.f32 %v5115, %v5259
          %v5261 = vpop.f32.mrb[0].mxu0
          %v5262 = vpop.f32.mrb[0].mxu0
          %v5263 = vadd.f32 %v5118, %v5262
          %v5264 = vpop.f32.mrb[0].mxu0
          %5265 = vmatprep.mubr.bf16.mxu0 0
          %5266 = vmatmul.mubr.bf16.gmra.mrb[0].mxu0 %v4978
          %v5267 = vpop.f32.mrb[0].mxu0
          %v5268 = vadd.f32 %v5123, %v5267
          %v5269 = vpop.f32.mrb[0].mxu0
          %v5270 = vpop.f32.mrb[0].mxu0
          %v5271 = vadd.f32 %v5126, %v5270
          %v5272 = vpop.f32.mrb[0].mxu0
          %5273 = vmatprep.mubr.bf16.mxu0 0
          %5274 = vmatmul.mubr.bf16.gmra.mrb[0].mxu0 %v4979
          %v5275 = vpop.f32.mrb[0].mxu0
          %v5276 = vadd.f32 %v5131, %v5275
          %v5277 = vpop.f32.mrb[0].mxu0
          %v5278 = vpop.f32.mrb[0].mxu0
          %v5279 = vadd.f32 %v5134, %v5278
          %v5280 = vpop.f32.mrb[0].mxu0
          %5281 = vmatprep.mubr.bf16.mxu0 0
          %5282 = vmatmul.mubr.bf16.gmra.mrb[0].mxu0 %v4980
          %v5283 = vpop.f32.mrb[0].mxu0
          %v5284 = vadd.f32 %v5139, %v5283
          %v5285 = vpop.f32.mrb[0].mxu0
          %v5286 = vpop.f32.mrb[0].mxu0
          %v5287 = vadd.f32 %v5142, %v5286
          %v5288 = vpop.f32.mrb[0].mxu0
          %5289 = vmatprep.mubr.bf16.mxu0 0
          %5290 = vmatmul.mubr.bf16.gmra.mrb[0].mxu0 %v4981
          %v5291 = vpop.f32.mrb[0].mxu0
          %v5292 = vadd.f32 %v5147, %v5291
          %v5293 = vpop.f32.mrb[0].mxu0
          %v5294 = vpop.f32.mrb[0].mxu0
          %v5295 = vadd.f32 %v5150, %v5294
          %v5296 = vpop.f32.mrb[0].mxu0
          %5297 = vmatprep.mubr.bf16.mxu0 0
          %5298 = vmatmul.mubr.bf16.gmra.mrb[0].mxu0 %v4982
          %v5299 = vpop.f32.mrb[0].mxu0
          %v5300 = vadd.f32 %v5155, %v5299
          %v5301 = vpop.f32.mrb[0].mxu0
          %v5302 = vpop.f32.mrb[0].mxu0
          %v5303 = vadd.f32 %v5158, %v5302
          %v5304 = vpop.f32.mrb[0].mxu0
          %5305 = vmatprep.mubr.bf16.mxu0 0
          %5306 = vmatmul.mubr.bf16.gmra.mrb[0].mxu0 %v4983
          %v5307 = vpop.f32.mrb[0].mxu0
          %v5308 = vadd.f32 %v5163, %v5307
          %v5309 = vpop.f32.mrb[0].mxu0
          %v5310 = vpop.f32.mrb[0].mxu0
          %v5311 = vadd.f32 %v5166, %v5310
          %v5312 = vpop.f32.mrb[0].mxu0
          %5313 = vdwg.mxu0
          %v5314 = vld [vmem:[%s20] sm:$0x1]
          %v5316 = vlaneseq
          %v5317 = vshrl.u32 %v5316, 7
          %v5318 = vsub.s32 0, %v5317
          %v5319 = vrot.slane %v5314, %v5318
          %v5321 = vadd.f32 %v5252, %v5319
          %v5322 = vadd.f32 %v5255, %v5319
          %v5323 = vadd.f32 %v5260, %v5319
          %v5324 = vadd.f32 %v5263, %v5319
          %v5325 = vadd.f32 %v5268, %v5319
          %v5326 = vadd.f32 %v5271, %v5319
          %v5327 = vadd.f32 %v5276, %v5319
          %v5328 = vadd.f32 %v5279, %v5319
          %v5329 = vadd.f32 %v5284, %v5319
          %v5330 = vadd.f32 %v5287, %v5319
          %v5331 = vadd.f32 %v5292, %v5319
          %v5332 = vadd.f32 %v5295, %v5319
          %v5333 = vadd.f32 %v5300, %v5319
          %v5334 = vadd.f32 %v5303, %v5319
          %v5335 = vadd.f32 %v5308, %v5319
          %v5336 = vadd.f32 %v5311, %v5319
          %vm5337 = vcmp.gt.f32.partialorder %v5321, 0.0
          %vm5338 = vcmp.gt.f32.partialorder %v5322, 0.0
          %vm5339 = vcmp.gt.f32.partialorder %v5323, 0.0
          %vm5340 = vcmp.gt.f32.partialorder %v5324, 0.0
          %vm5341 = vcmp.gt.f32.partialorder %v5325, 0.0
          %vm5342 = vcmp.gt.f32.partialorder %v5326, 0.0
          %vm5343 = vcmp.gt.f32.partialorder %v5327, 0.0
          %vm5344 = vcmp.gt.f32.partialorder %v5328, 0.0
          %vm5345 = vcmp.gt.f32.partialorder %v5329, 0.0
          %vm5346 = vcmp.gt.f32.partialorder %v5330, 0.0
          %vm5347 = vcmp.gt.f32.partialorder %v5331, 0.0
          %vm5348 = vcmp.gt.f32.partialorder %v5332, 0.0
          %vm5349 = vcmp.gt.f32.partialorder %v5333, 0.0
          %vm5350 = vcmp.gt.f32.partialorder %v5334, 0.0
          %vm5351 = vcmp.gt.f32.partialorder %v5335, 0.0
          %vm5352 = vcmp.gt.f32.partialorder %v5336, 0.0
          %v5353 = vmul.f32 %v5321, 0.01
          %v5354 = vmul.f32 %v5322, 0.01
          %v5355 = vmul.f32 %v5323, 0.01
          %v5356 = vmul.f32 %v5324, 0.01
          %v5357 = vmul.f32 %v5325, 0.01
          %v5358 = vmul.f32 %v5326, 0.01
          %v5359 = vmul.f32 %v5327, 0.01
          %v5360 = vmul.f32 %v5328, 0.01
          %v5361 = vmul.f32 %v5329, 0.01
          %v5362 = vmul.f32 %v5330, 0.01
          %v5363 = vmul.f32 %v5331, 0.01
          %v5364 = vmul.f32 %v5332, 0.01
          %v5365 = vmul.f32 %v5333, 0.01
          %v5366 = vmul.f32 %v5334, 0.01
          %v5367 = vmul.f32 %v5335, 0.01
          %v5368 = vmul.f32 %v5336, 0.01
          %v5369 = vsel %vm5337, %v5321, %v5353
          %v5370 = vsel %vm5338, %v5322, %v5354
          %v5371 = vsel %vm5339, %v5323, %v5355
          %v5372 = vsel %vm5340, %v5324, %v5356
          %v5373 = vsel %vm5341, %v5325, %v5357
          %v5374 = vsel %vm5342, %v5326, %v5358
          %v5375 = vsel %vm5343, %v5327, %v5359
          %v5376 = vsel %vm5344, %v5328, %v5360
          %v5377 = vsel %vm5345, %v5329, %v5361
          %v5378 = vsel %vm5346, %v5330, %v5362
          %v5379 = vsel %vm5347, %v5331, %v5363
          %v5380 = vsel %vm5348, %v5332, %v5364
          %v5381 = vsel %vm5349, %v5333, %v5365
          %v5382 = vsel %vm5350, %v5334, %v5366
          %v5383 = vsel %vm5351, %v5335, %v5367
          %v5384 = vsel %vm5352, %v5336, %v5368
          %v5385 = vmul.f32 %v5369, %v5369
          %v5386 = vmul.f32 %v5370, %v5370
          %v5387 = vmul.f32 %v5371, %v5371
          %v5388 = vmul.f32 %v5372, %v5372
          %v5389 = vmul.f32 %v5373, %v5373
          %v5390 = vmul.f32 %v5374, %v5374
          %v5391 = vmul.f32 %v5375, %v5375
          %v5392 = vmul.f32 %v5376, %v5376
          %v5393 = vmul.f32 %v5377, %v5377
          %v5394 = vmul.f32 %v5378, %v5378
          %v5395 = vmul.f32 %v5379, %v5379
          %v5396 = vmul.f32 %v5380, %v5380
          %v5397 = vmul.f32 %v5381, %v5381
          %v5398 = vmul.f32 %v5382, %v5382
          %v5399 = vmul.f32 %v5383, %v5383
          %v5400 = vmul.f32 %v5384, %v5384
          %5401 = vadd.xlane.f32.xlu0 %v5385
          %v5402 = vpop.xlane.xlu0 %5401
          %5403 = vadd.xlane.f32.xlu0 %v5386
          %v5404 = vpop.xlane.xlu0 %5403
          %5405 = vadd.xlane.f32.xlu0 %v5387
          %v5406 = vpop.xlane.xlu0 %5405
          %5407 = vadd.xlane.f32.xlu0 %v5388
          %v5408 = vpop.xlane.xlu0 %5407
          %5409 = vadd.xlane.f32.xlu0 %v5389
          %v5410 = vpop.xlane.xlu0 %5409
          %5411 = vadd.xlane.f32.xlu0 %v5390
          %v5412 = vpop.xlane.xlu0 %5411
          %5413 = vadd.xlane.f32.xlu0 %v5391
          %v5414 = vpop.xlane.xlu0 %5413
          %5415 = vadd.xlane.f32.xlu0 %v5392
          %v5416 = vpop.xlane.xlu0 %5415
          %5417 = vadd.xlane.f32.xlu0 %v5393
          %v5418 = vpop.xlane.xlu0 %5417
          %5419 = vadd.xlane.f32.xlu0 %v5394
          %v5420 = vpop.xlane.xlu0 %5419
          %5421 = vadd.xlane.f32.xlu0 %v5395
          %v5422 = vpop.xlane.xlu0 %5421
          %5423 = vadd.xlane.f32.xlu0 %v5396
          %v5424 = vpop.xlane.xlu0 %5423
          %5425 = vadd.xlane.f32.xlu0 %v5397
          %v5426 = vpop.xlane.xlu0 %5425
          %5427 = vadd.xlane.f32.xlu0 %v5398
          %v5428 = vpop.xlane.xlu0 %5427
          %5429 = vadd.xlane.f32.xlu0 %v5399
          %v5430 = vpop.xlane.xlu0 %5429
          %5431 = vadd.xlane.f32.xlu0 %v5400
          %v5432 = vpop.xlane.xlu0 %5431
          %v5433 = vmax.f32 %v5402, 1e-24
          %v5434 = vmax.f32 %v5404, 1e-24
          %v5435 = vmax.f32 %v5406, 1e-24
          %v5436 = vmax.f32 %v5408, 1e-24
          %v5437 = vmax.f32 %v5410, 1e-24
          %v5438 = vmax.f32 %v5412, 1e-24
          %v5439 = vmax.f32 %v5414, 1e-24
          %v5440 = vmax.f32 %v5416, 1e-24
          %v5441 = vmax.f32 %v5418, 1e-24
          %v5442 = vmax.f32 %v5420, 1e-24
          %v5443 = vmax.f32 %v5422, 1e-24
          %v5444 = vmax.f32 %v5424, 1e-24
          %v5445 = vmax.f32 %v5426, 1e-24
          %v5446 = vmax.f32 %v5428, 1e-24
          %v5447 = vmax.f32 %v5430, 1e-24
          %v5448 = vmax.f32 %v5432, 1e-24
          %v5449 = vrsqrt.pop %v5433
          %v5450 = vrsqrt.pop %v5434
          %v5451 = vrsqrt.pop %v5435
          %v5452 = vrsqrt.pop %v5436
          %v5453 = vrsqrt.pop %v5437
          %v5454 = vrsqrt.pop %v5438
          %v5455 = vrsqrt.pop %v5439
          %v5456 = vrsqrt.pop %v5440
          %v5457 = vrsqrt.pop %v5441
          %v5458 = vrsqrt.pop %v5442
          %v5459 = vrsqrt.pop %v5443
          %v5460 = vrsqrt.pop %v5444
          %v5461 = vrsqrt.pop %v5445
          %v5462 = vrsqrt.pop %v5446
          %v5463 = vrsqrt.pop %v5447
          %v5464 = vrsqrt.pop %v5448
          %v5465 = vmul.f32 %v5369, %v5449
          %v5466 = vmul.f32 %v5370, %v5450
          %v5467 = vmul.f32 %v5371, %v5451
          %v5468 = vmul.f32 %v5372, %v5452
          %v5469 = vmul.f32 %v5373, %v5453
          %v5470 = vmul.f32 %v5374, %v5454
          %v5471 = vmul.f32 %v5375, %v5455
          %v5472 = vmul.f32 %v5376, %v5456
          %v5473 = vmul.f32 %v5377, %v5457
          %v5474 = vmul.f32 %v5378, %v5458
          %v5475 = vmul.f32 %v5379, %v5459
          %v5476 = vmul.f32 %v5380, %v5460
          %v5477 = vmul.f32 %v5381, %v5461
          %v5478 = vmul.f32 %v5382, %v5462
          %v5479 = vmul.f32 %v5383, %v5463
          %v5480 = vmul.f32 %v5384, %v5464
          %5481 = vst [vmem:[%s812] sm:$0xff] %v5465
          %5482 = vst [vmem:[%s812 + $0x8] sm:$0xff] %v5466
          %5483 = vst [vmem:[%s812 + $0x10] sm:$0xff] %v5467
          %5484 = vst [vmem:[%s812 + $0x18] sm:$0xff] %v5468
          %5485 = vst [vmem:[%s812 + $0x20] sm:$0xff] %v5469
          %5486 = vst [vmem:[%s812 + $0x28] sm:$0xff] %v5470
          %5487 = vst [vmem:[%s812 + $0x30] sm:$0xff] %v5471
          %5488 = vst [vmem:[%s812 + $0x38] sm:$0xff] %v5472
          %5489 = vst [vmem:[%s812 + $0x40] sm:$0xff] %v5473
          %5490 = vst [vmem:[%s812 + $0x48] sm:$0xff] %v5474
          %5491 = vst [vmem:[%s812 + $0x50] sm:$0xff] %v5475
          %5492 = vst [vmem:[%s812 + $0x58] sm:$0xff] %v5476
          %5493 = vst [vmem:[%s812 + $0x60] sm:$0xff] %v5477
          %5494 = vst [vmem:[%s812 + $0x68] sm:$0xff] %v5478
          %5495 = vst [vmem:[%s812 + $0x70] sm:$0xff] %v5479
          %5496 = vst [vmem:[%s812 + $0x78] sm:$0xff] %v5480
        $region116: #{tpu_custom_call.1} parent=83 // pred_fallthru
          _
        %s5497 = sand.u32 %s486, 1
        %s5498 = scalar_lea.sflag [#allocation12], %s5497
        %s5499 = sand.u32 %s486, 1
        %s5500 = smul.addr %s5499, 128
        %s5501 = scalar_lea.vmem [#allocation19], %s5500
        %s5502 = sand.u32 %s518, 1
        %s5503 = scalar_lea.sflag [#allocation21], %s5502
        %s5504 = sand.u32 %s518, 1
        %s5505 = smul.addr %s5504, 4
        %s5506 = scalar_lea.vmem [#allocation20], %s5505
        // Predicated region
        $region117: #{tpu_custom_call.1} parent=83 // pred_check
          %p5507 = pneg %p496
        $region118: #{tpu_custom_call.1} parent=83 // pred_check_branch
          %5509 = sbr.rel (%p5507) target = $region120
        $region119: #{tpu_custom_call.1} parent=83 // pred_region
          %s5510 = smul.u32 %s73, 6
          %s5511 = sadd.s32 %s5510, %s74
          %s5512 = sld [smem:[#allocation4 + %s5511]]
          %s5513 = smul.u32 16, %s5512
          %s5515 = ssub.s32 2048, 2048
          %5516 = vsyncadd %s5498, %s5515
          %s5517 = smul.addr %s5513, 128
          %s5518 = scalar_lea.hbm %s21, %s5517
          %s5519 = sshll.u32 %s5501, 4
          %s5520 = int_to_ptr.vmem [resolvable:$true] %s5519
          %5525 = dma.vmem_to_hbm [thread:$0]  %s5520, 2048, %s5518, %s5498, 128, 128, 8
        $region120: #{tpu_custom_call.1} parent=83 // pred_fallthru
          _
        // Predicated region
        $region121: #{tpu_custom_call.1} parent=83 // pred_check
          %p5526 = pneg %p528
        $region122: #{tpu_custom_call.1} parent=83 // pred_check_branch
          %5528 = sbr.rel (%p5526) target = $region124
        $region123: #{tpu_custom_call.1} parent=83 // pred_region
          %s5529 = smul.u32 %s73, 6
          %s5530 = sadd.s32 %s5529, %s74
          %s5531 = sld [smem:[#allocation5 + %s5530]]
          %s5533 = ssub.s32 64, 64
          %5534 = vsyncadd %s5503, %s5533
          %s5535 = smul.addr %s5531, 4
          %s5536 = smul.addr %s5535, 16
          %s5537 = scalar_lea.hbm %s22, %s5536
          %s5539 = sshll.u32 %s5506, 4
          %s5540 = int_to_ptr.vmem [resolvable:$true] %s5539
          %5542 = dma.vmem_to_hbm [thread:$0]  %s5540, 64, %s5537, %s5503
        $region124: #{tpu_custom_call.1} parent=83 // pred_fallthru
          _
      $region84: #{tpu_custom_call.1} parent=5 // pred_fallthru
        _
      %p5543 = scmp.le.s32.totalorder 2, %s64
      // Predicated region
      $region125: #{tpu_custom_call.1} parent=5 // pred_check
        %p5544 = pneg %p5543
      $region126: #{tpu_custom_call.1} parent=5 // pred_check_branch
        %5546 = sbr.rel (%p5544) target = $region128
      $region127: #{tpu_custom_call.1} parent=5 // pred_region
        %s5547 = ssub.s32 %s64, 2
        // Predicated region
        $region129: #{tpu_custom_call.1} parent=127 // pred_check
          %p5548 = pneg %p502
        $region130: #{tpu_custom_call.1} parent=127 // pred_check_branch
          %5550 = sbr.rel (%p5548) target = $region132
        $region131: #{tpu_custom_call.1} parent=127 // pred_region
          %s5551 = sand.u32 %s487, 1
          %s5552 = scalar_lea.sflag [#allocation12], %s5551
          %s5553 = sand.u32 %s487, 1
          %s5554 = smul.addr %s5553, 128
          %s5555 = scalar_lea.vmem [#allocation19], %s5554
          %5556 = dma.done %s5552, 2048
        $region132: #{tpu_custom_call.1} parent=127 // pred_fallthru
          _
        // Predicated region
        $region133: #{tpu_custom_call.1} parent=127 // pred_check
          %p5557 = pneg %p534
        $region134: #{tpu_custom_call.1} parent=127 // pred_check_branch
          %5559 = sbr.rel (%p5557) target = $region136
        $region135: #{tpu_custom_call.1} parent=127 // pred_region
          %s5560 = sand.u32 %s519, 1
          %s5561 = scalar_lea.sflag [#allocation21], %s5560
          %s5562 = sand.u32 %s519, 1
          %s5563 = smul.addr %s5562, 4
          %s5564 = scalar_lea.vmem [#allocation20], %s5563
          %5565 = dma.done %s5561, 64
        $region136: #{tpu_custom_call.1} parent=127 // pred_fallthru
          _
      $region128: #{tpu_custom_call.1} parent=5 // pred_fallthru
        _
    $region6: #{tpu_custom_call.1} parent=1 // loop_footer
      %s68 = sadd.s32 1, %s64
    $region7: #{tpu_custom_call.1} parent=1 // loop_footer_branch
      %63 = sbr.rel target = $region3
    $region8: #{tpu_custom_call.1} parent=1 // loop_exit
      _
    %5566 = vsyncpa [#allocation11], 1
    %s5567 = scalar_lea.sflag [#allocation11], 1
    %5568 = vsyncpa %s5567, 1
    %5569 = vsyncpa [#allocation14], 1
    %5570 = vsyncpa [#allocation17], 1
    %5571 = vsyncpa [#allocation12], 1
    %s5572 = scalar_lea.sflag [#allocation12], 1
    %5573 = vsyncpa %s5572, 1
    %5574 = vsyncpa [#allocation21], 1
    %s5575 = scalar_lea.sflag [#allocation21], 1
    %5576 = vsyncpa %s5575, 1

</llo_original>
